<compile_context>
chip_gen: v7x
topology: tpu7x:2x2x1
jax: 0.10.0
libtpu: 0.0.40
codegen_flags: <defaults>
</compile_context>

<pallas_src>
import math

import numpy as np
import jax
import jax.numpy as jnp
from jax import lax
from jax.experimental import pallas as pl
from jax.experimental.pallas import tpu as pltpu

_LANE = 128                      # boxes per lane row
_SUB = 8                         # sublanes per sub-tile -> one vreg intermediates
_BOX_PER_SUBTILE = _SUB * _LANE  # 1024 boxes per sub-tile
_MAX_SUBTILES_PER_BLOCK = 8      # up to 8192 boxes per grid step


# ---------------------------------------------------------------------------
# in-kernel helpers (pure Python, fully unrolled at trace time)
# ---------------------------------------------------------------------------
class _ShoelaceSink:
    """Streams polygon vertices; accumulates 2 * signed area into round-robin
    partial sums (breaks the serial add chain), tree-combined at close()."""

    def __init__(self, n_parts=4):
        self.first = None
        self.prev = None
        self.parts = [None] * n_parts
        self.idx = 0

    def _acc(self, term):
        i = self.idx
        self.parts[i] = term if self.parts[i] is None else self.parts[i] + term
        self.idx = (i + 1) % len(self.parts)

    def feed(self, v):
        if self.first is None:
            self.first = v
        else:
            px, py = self.prev
            vx, vy = v
            self._acc(px * vy - vx * py)
        self.prev = v

    def close(self):
        px, py = self.prev
        fx, fy = self.first
        self._acc(px * fy - fx * py)
        parts = [p for p in self.parts if p is not None]
        while len(parts) > 1:
            nxt = [parts[i] + parts[i + 1] for i in range(0, len(parts) - 1, 2)]
            if len(parts) % 2:
                nxt.append(parts[-1])
            parts = nxt
        return parts[0]


class _AxisClipStage:
    """Streaming Sutherland-Hodgman clip against an axis-aligned half-plane in
    the target box frame: clip line is {coord[axis] == line_val}, inside iff
    sgn * (line_val - coord[axis]) >= 0.  Emits exactly 2 vertices per input
    edge; duplicates and on-the-clip-line insertions are area-neutral for the
    convex subjects produced upstream, so the downstream shoelace sum equals
    the true clipped area."""

    def __init__(self, axis, line_val, sgn, downstream):
        self.axis = axis          # 0 -> clip line x = line_val, 1 -> y = line_val
        self.line = line_val      # (8, 128) tile
        self.sgn = sgn            # python-level +1 / -1 (folded at trace time)
        self.down = downstream
        self.first_v = None
        self.first_d = None
        self.prev_v = None
        self.prev_d = None

    def _signed(self, v):
        c = v[self.axis]
        return (self.line - c) if self.sgn > 0 else (c - self.line)

    def _edge(self, s, ds, t, de):
        ax, ot = self.axis, 1 - self.axis
        s_ot, t_ot, t_ax = s[ot], t[ot], t[ax]

        s_in = ds >= 0.0
        e_in = de >= 0.0
        crossing = s_in != e_in
        both_in = s_in & e_in
        exiting = s_in & jnp.logical_not(e_in)

        # tt is only consumed under `crossing`, where ds - de = |ds| + |de| > 0.
        denom = jnp.where(crossing, ds - de, 1.0)
        tt = ds * pl.reciprocal(denom, approx=True)
        i_ot = s_ot + tt * (t_ot - s_ot)     # intersection, free coordinate
        # the constrained coordinate of intersection / projection is line_val.

        o1_ot = jnp.where(crossing, i_ot, t_ot)
        o1_ax = jnp.where(both_in, t_ax, self.line)
        o2_ot = jnp.where(exiting, i_ot, t_ot)
        o2_ax = jnp.where(e_in, t_ax, self.line)

        if ax == 0:
            self.down.feed((o1_ax, o1_ot))
            self.down.feed((o2_ax, o2_ot))
        else:
            self.down.feed((o1_ot, o1_ax))
            self.down.feed((o2_ot, o2_ax))

    def feed(self, v):
        d = self._signed(v)                  # one subtract per vertex per stage
        if self.first_v is None:
            self.first_v, self.first_d = v, d
        else:
            self._edge(self.prev_v, self.prev_d, v, d)
        self.prev_v, self.prev_d = v, d

    def close(self):
        self._edge(self.prev_v, self.prev_d, self.first_v, self.first_d)
        return self.down.close()


def _loss_subtile(a_ref, t_ref, s):
    """1 - iou3d for sub-tile `s`; refs are (8, n_sub, 8, 128); returns (8, 128)."""
    # hoist the attribute rows once (NaN-merge done once per attribute)
    a = [a_ref[i, s] for i in range(7)]
    t = [t_ref[i, s] for i in range(7)]
    b = [jnp.where(jnp.isnan(t[i]), a[i], t[i]) for i in range(7)]

    ax_, ay_, az_, dxa, dya, dza, ra = a
    bx_, by_, bz_, dxb, dyb, dzb, rb = b

    # ---- rotated BEV overlap, computed in the target box frame -------------
    cb, sb = jnp.cos(rb), jnp.sin(rb)
    tx0, ty0 = ax_ - bx_, ay_ - by_
    cx = cb * tx0 + sb * ty0                 # subject center in target frame
    cy = cb * ty0 - sb * tx0
    rel = ra - rb
    cr, sr = jnp.cos(rel), jnp.sin(rel)
    hxa, hya = dxa * 0.5, dya * 0.5
    chx, shx = cr * hxa, sr * hxa
    chy, shy = cr * hya, sr * hya
    subj = [                                 # CCW subject corners, target frame
        (cx + chx - shy, cy + shx + chy),
        (cx - chx - shy, cy - shx + chy),
        (cx - chx + shy, cy - shx - chy),
        (cx + chx + shy, cy + shx - chy),
    ]
    hxb, hyb = dxb * 0.5, dyb * 0.5

    # streamed clip chain: subject -> 4 axis-aligned half-planes -> shoelace
    stage = _ShoelaceSink(n_parts=4)
    stage = _AxisClipStage(0, hxb, +1, stage)    # x <= +hxb
    stage = _AxisClipStage(1, -hyb, -1, stage)   # y >= -hyb
    stage = _AxisClipStage(0, -hxb, -1, stage)   # x >= -hxb
    stage = _AxisClipStage(1, hyb, +1, stage)    # y <= +hyb
    for v in subj:
        stage.feed(v)
    overlap_bev = 0.5 * jnp.abs(stage.close())

    area_a = dxa * dya
    area_b = dxb * dyb
    overlap_bev = jnp.clip(overlap_bev, 0.0,
                           jnp.maximum(jnp.minimum(area_a, area_b), 0.0))

    # ---- height overlap (z is the box center) ------------------------------
    overlap_h = jnp.maximum(
        jnp.minimum(az_ + 0.5 * dza, bz_ + 0.5 * dzb)
        - jnp.maximum(az_ - 0.5 * dza, bz_ - 0.5 * dzb), 0.0)

    # ---- 3D IoU (exact divide: it scales the loss directly) ----------------
    inter = overlap_bev * overlap_h
    vol_a = area_a * dza
    vol_b = area_b * dzb
    union = jnp.maximum(vol_a + vol_b - inter, 1e-6)
    return 1.0 - inter / union


def _make_kernel(n_sub, weighted):
    if weighted:
        def kernel(a_ref, t_ref, w_ref, out_ref):
            def body(s, carry):
                loss = _loss_subtile(a_ref, t_ref, s) * w_ref[s]
                out_ref[s] = loss.astype(out_ref.dtype)
                return carry
            lax.fori_loop(0, n_sub, body, 0)
    else:
        def kernel(a_ref, t_ref, out_ref):
            def body(s, carry):
                out_ref[s] = _loss_subtile(a_ref, t_ref, s).astype(out_ref.dtype)
                return carry
            lax.fori_loop(0, n_sub, body, 0)
    return kernel


# ---------------------------------------------------------------------------
# host wrapper
# ---------------------------------------------------------------------------
def _choose_subtiles_per_block(n):
    """Largest sub-tiles-per-grid-step (<= 8, i.e. <= 8192 boxes) that still
    leaves >= 4 grid steps (keeps both v7x TensorCores fed and the pipeline
    primed); falls back to 1 sub-tile per step for small N."""
    subtiles_needed = max(1, -(-n // _BOX_PER_SUBTILE))
    for cand in (_MAX_SUBTILES_PER_BLOCK, 4, 2, 1):
        if -(-subtiles_needed // cand) >= 4:
            return cand
    return 1


def iou3d_loss(input_boxes, target_boxes, weights=None, *, subtiles_per_block=None):
    """input_boxes, target_boxes: (N, 7) [x, y, z, dx, dy, dz, heading];
    weights: optional (N,).  Returns loss of shape (N,)."""
    input_boxes = jnp.asarray(input_boxes, jnp.float32)
    target_boxes = jnp.asarray(target_boxes, jnp.float32)
    n = input_boxes.shape[0]
    if n == 0:  # matches the PyTorch module's empty-input branch
        loss = jnp.sum(input_boxes - target_boxes, axis=1) * 0.0
        if weights is not None:
            loss = loss * jnp.asarray(weights, jnp.float32)
        return loss

    n_sub = subtiles_per_block or _choose_subtiles_per_block(n)
    block_boxes = n_sub * _BOX_PER_SUBTILE
    n_blocks = -(-n // block_boxes)
    n_pad = n_blocks * block_boxes
    st_total = n_pad // _BOX_PER_SUBTILE

    # TODO(synk): this pad->transpose->reshape repack is a separate HBM pass;
    # producing/storing boxes attribute-major upstream would remove it.
    def prep(boxes):
        boxes = jnp.pad(boxes, ((0, n_pad - n), (0, 1)))                 # (n_pad, 8)
        return jnp.transpose(boxes).reshape(8, st_total, _SUB, _LANE)    # attr-major

    a = prep(input_boxes)
    t = prep(target_boxes)

    box_spec = pl.BlockSpec((8, n_sub, _SUB, _LANE), lambda i: (0, i, 0, 0))
    vec_spec = pl.BlockSpec((n_sub, _SUB, _LANE), lambda i: (i, 0, 0))
    cparams = pltpu.CompilerParams(
        dimension_semantics=("parallel",),
        vmem_limit_bytes=32 * 1024 * 1024,
    )
    out_shape = jax.ShapeDtypeStruct((st_total, _SUB, _LANE), jnp.float32)

    if weights is None:
        out = pl.pallas_call(
            _make_kernel(n_sub, weighted=False),
            out_shape=out_shape,
            grid_spec=pltpu.PrefetchScalarGridSpec(
                num_scalar_prefetch=0,
                grid=(n_blocks,),
                in_specs=[box_spec, box_spec],
                out_specs=vec_spec),
            compiler_params=cparams,
        )(a, t)
    else:
        weights = jnp.asarray(weights, jnp.float32)
        assert weights.shape == (n,)
        w = jnp.pad(weights, (0, n_pad - n)).reshape(st_total, _SUB, _LANE)
        out = pl.pallas_call(
            _make_kernel(n_sub, weighted=True),
            out_shape=out_shape,
            grid_spec=pltpu.PrefetchScalarGridSpec(
                num_scalar_prefetch=0,
                grid=(n_blocks,),
                in_specs=[box_spec, box_spec, vec_spec],
                out_specs=vec_spec),
            compiler_params=cparams,
        )(a, t, w)
    return out.reshape(-1)[:n]


# ---------------------------------------------------------------------------
# exact numpy reference (standard variable-length Sutherland-Hodgman)
# ---------------------------------------------------------------------------
def _ref_corners(box):
    x, y, _, dx, dy, _, r = box
    c, s = math.cos(r), math.sin(r)
    pts = []
    for sx, sy in ((1.0, 1.0), (-1.0, 1.0), (-1.0, -1.0), (1.0, -1.0)):
        lx, ly = sx * dx * 0.5, sy * dy * 0.5
        pts.append((x + c * lx - s * ly, y + s * lx + c * ly))
    return pts


def _ref_clip(poly, c1, c2):
    ex, ey = c2[0] - c1[0], c2[1] - c1[1]

    def side(p):
        return ex * (p[1] - c1[1]) - ey * (p[0] - c1[0])

    out = []
    n = len(poly)
    for i in range(n):
        s, t = poly[i], poly[(i + 1) % n]
        ds, de = side(s), side(t)
        if ds >= 0.0 and de >= 0.0:
            out.append(t)
        elif ds >= 0.0 or de >= 0.0:                        # crossing
            tt = ds / (ds - de)
            out.append((s[0] + tt * (t[0] - s[0]), s[1] + tt * (t[1] - s[1])))
            if de >= 0.0:
                out.append(t)
        # both outside: emit nothing
    return out


def _ref_area(poly):
    if len(poly) < 3:
        return 0.0
    acc = 0.0
    n = len(poly)
    for i in range(n):
        x1, y1 = poly[i]
        x2, y2 = poly[(i + 1) % n]
        acc += x1 * y2 - x2 * y1
    return 0.5 * abs(acc)


def _ref_iou3d(a, b):
    poly = _ref_corners(a)
    clip = _ref_corners(b)
    for j in range(4):
        poly = _ref_clip(poly, clip[j], clip[(j + 1) % 4])
        if not poly:
            break
    area_a, area_b = a[3] * a[4], b[3] * b[4]
    overlap = min(max(_ref_area(poly), 0.0), max(min(area_a, area_b), 0.0))
    oh = max(min(a[2] + 0.5 * a[5], b[2] + 0.5 * b[5])
             - max(a[2] - 0.5 * a[5], b[2] - 0.5 * b[5]), 0.0)
    inter = overlap * oh
    vol_a, vol_b = area_a * a[5], area_b * b[5]
    return inter / max(vol_a + vol_b - inter, 1e-6)


def _reference_iou3d_loss(inp, tgt, weights=None):
    inp = np.asarray(inp, np.float64)
    tgt = np.asarray(tgt, np.float64)
    tgt = np.where(np.isnan(tgt), inp, tgt)
    loss = np.array([1.0 - _ref_iou3d(inp[i], tgt[i]) for i in range(inp.shape[0])])
    if weights is not None:
        loss = loss * np.asarray(weights, np.float64)
    return loss


# ---------------------------------------------------------------------------
# self-test
# ---------------------------------------------------------------------------
if __name__ == "__main__":
    key = jax.random.PRNGKey(0)
    keys = jax.random.split(key, 8)

    # ---- small mixed test: random boxes + crafted corner cases -------------
    n_rand = 16
    centers = jax.random.uniform(keys[0], (n_rand, 3), minval=-2.0, maxval=2.0)
    dims = jax.random.uniform(keys[1], (n_rand, 3), minval=0.8, maxval=3.0)
    heading = jax.random.uniform(keys[2], (n_rand, 1), minval=-3.14, maxval=3.14)
    pred_rand = jnp.concatenate([centers, dims, heading], axis=1)        # (16, 7)
    target_rand = pred_rand + 0.2 * jax.random.normal(keys[3], (n_rand, 7))

    # identical / contained / disjoint / shared edge / rotated / no z-overlap
    crafted_pred = jnp.array([
        [0.0, 0.0, 0.0, 2.0, 2.0, 2.0, 0.0],
        [0.0, 0.0, 0.0, 4.0, 4.0, 4.0, 0.0],
        [0.0, 0.0, 0.0, 2.0, 2.0, 2.0, 0.0],
        [0.0, 0.0, 0.0, 2.0, 2.0, 2.0, 0.0],
        [0.0, 0.0, 0.0, 2.0, 3.0, 2.0, 0.3],
        [1.0, 1.0, 0.0, 2.0, 2.0, 2.0, 0.78539816],
    ], jnp.float32)
    crafted_tgt = jnp.array([
        [0.0, 0.0, 0.0, 2.0, 2.0, 2.0, 0.0],          # identical        -> loss 0
        [0.5, -0.25, 0.1, 1.0, 1.0, 1.0, 0.2],        # contained
        [5.0, 5.0, 0.0, 2.0, 2.0, 2.0, 0.0],          # disjoint         -> loss 1
        [2.0, 0.0, 0.0, 2.0, 2.0, 2.0, 0.0],          # shares an edge   -> loss 1
        [0.5, -0.5, 0.25, 3.0, 2.0, 1.5, -0.6],       # rotated overlap
        [1.0, 1.0, 5.0, 2.0, 2.0, 2.0, 0.78539816],   # no height overlap-> loss 1
    ], jnp.float32)

    pred = jnp.concatenate([pred_rand, crafted_pred], axis=0)
    target = jnp.concatenate([target_rand, crafted_tgt], axis=0)
    n = pred.shape[0]

    # NaNs in target -> replaced by input inside the kernel
    target = target.at[0, 2].set(jnp.nan)
    target = target.at[3, 6].set(jnp.nan)

    weights = jnp.linspace(0.5, 1.5, n, dtype=jnp.float32)

    loss_w = iou3d_loss(pred, target, weights)
    loss_nw = iou3d_loss(pred, target)
    # force 4 sub-tiles per grid step to exercise the inner fori_loop path
    loss_loop = iou3d_loss(pred, target, weights, subtiles_per_block=4)
    jax.block_until_ready((loss_w, loss_nw, loss_loop))

    assert loss_w.shape == (n,) and loss_nw.shape == (n,) and loss_loop.shape == (n,)
    assert bool(jnp.all(jnp.isfinite(loss_w)))
    assert bool(jnp.all(jnp.isfinite(loss_nw)))
    assert bool(jnp.all(jnp.isfinite(loss_loop)))

    ref_w = _reference_iou3d_loss(np.asarray(pred), np.asarray(target), np.asarray(weights))
    ref_nw = _reference_iou3d_loss(np.asarray(pred), np.asarray(target))
    err_nw = float(np.max(np.abs(np.asarray(loss_nw, np.float64) - ref_nw)))
    err_w = float(np.max(np.abs(np.asarray(loss_w, np.float64) - ref_w)))
    err_loop = float(np.max(np.abs(np.asarray(loss_loop, np.float64) - ref_w)))
    # tolerance budget covers f32 rounding + EUP approx-reciprocal error
    assert err_nw < 1e-2, f"unweighted max abs err {err_nw}"
    assert err_w < 1.5e-2, f"weighted max abs err {err_w}"
    assert err_loop < 1.5e-2, f"inner-loop path max abs err {err_loop}"

    # crafted sanity checks (unweighted)
    base = np.asarray(loss_nw)[n_rand:]
    assert base[0] < 1e-3                      # identical boxes -> ~0
    assert abs(base[2] - 1.0) < 1e-3           # disjoint        -> ~1
    assert abs(base[3] - 1.0) < 1e-2           # shared edge     -> ~1
    assert abs(base[5] - 1.0) < 1e-3           # no z overlap    -> ~1

    # ---- moderate test exercising a multi-step grid (3 blocks of 1024) -----
    n_big = 2500
    kb = jax.random.split(keys[4], 4)
    centers_b = jax.random.uniform(kb[0], (n_big, 3), minval=-3.0, maxval=3.0)
    dims_b = jax.random.uniform(kb[1], (n_big, 3), minval=1.0, maxval=3.0)
    heading_b = jax.random.uniform(kb[2], (n_big, 1), minval=-3.14, maxval=3.14)
    pred_big = jnp.concatenate([centers_b, dims_b, heading_b], axis=1)
    target_big = pred_big + 0.2 * jax.random.normal(kb[3], (n_big, 7))

    loss_big = iou3d_loss(pred_big, target_big)
    jax.block_until_ready(loss_big)
    assert loss_big.shape == (n_big,)
    assert bool(jnp.all(jnp.isfinite(loss_big)))
    ref_big = _reference_iou3d_loss(np.asarray(pred_big), np.asarray(target_big))
    err_big = float(np.max(np.abs(np.asarray(loss_big, np.float64) - ref_big)))
    assert err_big < 4e-2, f"multi-block max abs err {err_big}"

    # empty-input branch
    empty = iou3d_loss(jnp.zeros((0, 7), jnp.float32), jnp.zeros((0, 7), jnp.float32))
    assert empty.shape == (0,)

    print("KERNEL_OK")
</pallas_src>

<mosaic_0001>
module attributes {stable_mosaic.version = 11 : i64} {
  func.func @kernel(%arg0: i32, %arg1: memref<8x1x8x128xf32, #tpu.memory_space<vmem>>, %arg2: memref<8x1x8x128xf32, #tpu.memory_space<vmem>>, %arg3: memref<1x8x128xf32, #tpu.memory_space<vmem>>, %arg4: memref<1x8x128xf32, #tpu.memory_space<vmem>>) attributes {dimension_semantics = [#tpu.dimension_semantics<parallel>], iteration_bounds = array<i64: 1>, scalar_prefetch = 0 : i64, scratch_operands = 0 : i64, tpu.core_type = #tpu.core_type<tc>, window_params = [{transform_indices = @transform_0, window_bounds = array<i64: 8, 1, 8, 128>}, {transform_indices = @transform_1, window_bounds = array<i64: 8, 1, 8, 128>}, {transform_indices = @transform_2, window_bounds = array<i64: 1, 8, 128>}, {transform_indices = @transform_3, window_bounds = array<i64: 1, 8, 128>}]} {
    %c0_i32 = arith.constant 0 : i32
    %c0 = arith.constant 0 : index
    %0 = arith.index_cast %c0_i32 : i32 to index
    %c0_0 = arith.constant 0 : index
    %c0_1 = arith.constant 0 : index
    %1 = vector.load %arg1[%c0, %0, %c0_0, %c0_1] : memref<8x1x8x128xf32, #tpu.memory_space<vmem>>, vector<1x1x8x128xf32>
    %2 = vector.shape_cast %1 : vector<1x1x8x128xf32> to vector<8x128xf32>
    %c1 = arith.constant 1 : index
    %3 = arith.index_cast %c0_i32 : i32 to index
    %c0_2 = arith.constant 0 : index
    %c0_3 = arith.constant 0 : index
    %4 = vector.load %arg1[%c1, %3, %c0_2, %c0_3] : memref<8x1x8x128xf32, #tpu.memory_space<vmem>>, vector<1x1x8x128xf32>
    %5 = vector.shape_cast %4 : vector<1x1x8x128xf32> to vector<8x128xf32>
    %c2 = arith.constant 2 : index
    %6 = arith.index_cast %c0_i32 : i32 to index
    %c0_4 = arith.constant 0 : index
    %c0_5 = arith.constant 0 : index
    %7 = vector.load %arg1[%c2, %6, %c0_4, %c0_5] : memref<8x1x8x128xf32, #tpu.memory_space<vmem>>, vector<1x1x8x128xf32>
    %8 = vector.shape_cast %7 : vector<1x1x8x128xf32> to vector<8x128xf32>
    %c3 = arith.constant 3 : index
    %9 = arith.index_cast %c0_i32 : i32 to index
    %c0_6 = arith.constant 0 : index
    %c0_7 = arith.constant 0 : index
    %10 = vector.load %arg1[%c3, %9, %c0_6, %c0_7] : memref<8x1x8x128xf32, #tpu.memory_space<vmem>>, vector<1x1x8x128xf32>
    %11 = vector.shape_cast %10 : vector<1x1x8x128xf32> to vector<8x128xf32>
    %c4 = arith.constant 4 : index
    %12 = arith.index_cast %c0_i32 : i32 to index
    %c0_8 = arith.constant 0 : index
    %c0_9 = arith.constant 0 : index
    %13 = vector.load %arg1[%c4, %12, %c0_8, %c0_9] : memref<8x1x8x128xf32, #tpu.memory_space<vmem>>, vector<1x1x8x128xf32>
    %14 = vector.shape_cast %13 : vector<1x1x8x128xf32> to vector<8x128xf32>
    %c5 = arith.constant 5 : index
    %15 = arith.index_cast %c0_i32 : i32 to index
    %c0_10 = arith.constant 0 : index
    %c0_11 = arith.constant 0 : index
    %16 = vector.load %arg1[%c5, %15, %c0_10, %c0_11] : memref<8x1x8x128xf32, #tpu.memory_space<vmem>>, vector<1x1x8x128xf32>
    %17 = vector.shape_cast %16 : vector<1x1x8x128xf32> to vector<8x128xf32>
    %c6 = arith.constant 6 : index
    %18 = arith.index_cast %c0_i32 : i32 to index
    %c0_12 = arith.constant 0 : index
    %c0_13 = arith.constant 0 : index
    %19 = vector.load %arg1[%c6, %18, %c0_12, %c0_13] : memref<8x1x8x128xf32, #tpu.memory_space<vmem>>, vector<1x1x8x128xf32>
    %20 = vector.shape_cast %19 : vector<1x1x8x128xf32> to vector<8x128xf32>
    %c0_14 = arith.constant 0 : index
    %21 = arith.index_cast %c0_i32 : i32 to index
    %c0_15 = arith.constant 0 : index
    %c0_16 = arith.constant 0 : index
    %22 = vector.load %arg2[%c0_14, %21, %c0_15, %c0_16] : memref<8x1x8x128xf32, #tpu.memory_space<vmem>>, vector<1x1x8x128xf32>
    %23 = vector.shape_cast %22 : vector<1x1x8x128xf32> to vector<8x128xf32>
    %c1_17 = arith.constant 1 : index
    %24 = arith.index_cast %c0_i32 : i32 to index
    %c0_18 = arith.constant 0 : index
    %c0_19 = arith.constant 0 : index
    %25 = vector.load %arg2[%c1_17, %24, %c0_18, %c0_19] : memref<8x1x8x128xf32, #tpu.memory_space<vmem>>, vector<1x1x8x128xf32>
    %26 = vector.shape_cast %25 : vector<1x1x8x128xf32> to vector<8x128xf32>
    %c2_20 = arith.constant 2 : index
    %27 = arith.index_cast %c0_i32 : i32 to index
    %c0_21 = arith.constant 0 : index
    %c0_22 = arith.constant 0 : index
    %28 = vector.load %arg2[%c2_20, %27, %c0_21, %c0_22] : memref<8x1x8x128xf32, #tpu.memory_space<vmem>>, vector<1x1x8x128xf32>
    %29 = vector.shape_cast %28 : vector<1x1x8x128xf32> to vector<8x128xf32>
    %c3_23 = arith.constant 3 : index
    %30 = arith.index_cast %c0_i32 : i32 to index
    %c0_24 = arith.constant 0 : index
    %c0_25 = arith.constant 0 : index
    %31 = vector.load %arg2[%c3_23, %30, %c0_24, %c0_25] : memref<8x1x8x128xf32, #tpu.memory_space<vmem>>, vector<1x1x8x128xf32>
    %32 = vector.shape_cast %31 : vector<1x1x8x128xf32> to vector<8x128xf32>
    %c4_26 = arith.constant 4 : index
    %33 = arith.index_cast %c0_i32 : i32 to index
    %c0_27 = arith.constant 0 : index
    %c0_28 = arith.constant 0 : index
    %34 = vector.load %arg2[%c4_26, %33, %c0_27, %c0_28] : memref<8x1x8x128xf32, #tpu.memory_space<vmem>>, vector<1x1x8x128xf32>
    %35 = vector.shape_cast %34 : vector<1x1x8x128xf32> to vector<8x128xf32>
    %c5_29 = arith.constant 5 : index
    %36 = arith.index_cast %c0_i32 : i32 to index
    %c0_30 = arith.constant 0 : index
    %c0_31 = arith.constant 0 : index
    %37 = vector.load %arg2[%c5_29, %36, %c0_30, %c0_31] : memref<8x1x8x128xf32, #tpu.memory_space<vmem>>, vector<1x1x8x128xf32>
    %38 = vector.shape_cast %37 : vector<1x1x8x128xf32> to vector<8x128xf32>
    %c6_32 = arith.constant 6 : index
    %39 = arith.index_cast %c0_i32 : i32 to index
    %c0_33 = arith.constant 0 : index
    %c0_34 = arith.constant 0 : index
    %40 = vector.load %arg2[%c6_32, %39, %c0_33, %c0_34] : memref<8x1x8x128xf32, #tpu.memory_space<vmem>>, vector<1x1x8x128xf32>
    %41 = vector.shape_cast %40 : vector<1x1x8x128xf32> to vector<8x128xf32>
    %42 = arith.cmpf one, %23, %23 : vector<8x128xf32>
    %43 = arith.select %42, %2, %23 : vector<8x128xi1>, vector<8x128xf32>
    %44 = arith.cmpf one, %26, %26 : vector<8x128xf32>
    %45 = arith.select %44, %5, %26 : vector<8x128xi1>, vector<8x128xf32>
    %46 = arith.cmpf one, %29, %29 : vector<8x128xf32>
    %47 = arith.select %46, %8, %29 : vector<8x128xi1>, vector<8x128xf32>
    %48 = arith.cmpf one, %32, %32 : vector<8x128xf32>
    %49 = arith.select %48, %11, %32 : vector<8x128xi1>, vector<8x128xf32>
    %50 = arith.cmpf one, %35, %35 : vector<8x128xf32>
    %51 = arith.select %50, %14, %35 : vector<8x128xi1>, vector<8x128xf32>
    %52 = arith.cmpf one, %38, %38 : vector<8x128xf32>
    %53 = arith.select %52, %17, %38 : vector<8x128xi1>, vector<8x128xf32>
    %54 = arith.cmpf one, %41, %41 : vector<8x128xf32>
    %55 = arith.select %54, %20, %41 : vector<8x128xi1>, vector<8x128xf32>
    %56 = math.cos %55 : vector<8x128xf32>
    %57 = math.sin %55 : vector<8x128xf32>
    %58 = arith.subf %2, %43 : vector<8x128xf32>
    %59 = arith.subf %5, %45 : vector<8x128xf32>
    %60 = arith.mulf %56, %58 : vector<8x128xf32>
    %61 = arith.mulf %57, %59 : vector<8x128xf32>
    %62 = arith.addf %60, %61 : vector<8x128xf32>
    %63 = arith.mulf %56, %59 : vector<8x128xf32>
    %64 = arith.mulf %57, %58 : vector<8x128xf32>
    %65 = arith.subf %63, %64 : vector<8x128xf32>
    %66 = arith.subf %20, %55 : vector<8x128xf32>
    %67 = math.cos %66 : vector<8x128xf32>
    %68 = math.sin %66 : vector<8x128xf32>
    %cst = arith.constant 5.000000e-01 : f32
    %69 = vector.broadcast %cst : f32 to vector<8x128xf32>
    %70 = arith.mulf %11, %69 : vector<8x128xf32>
    %cst_35 = arith.constant 5.000000e-01 : f32
    %71 = vector.broadcast %cst_35 : f32 to vector<8x128xf32>
    %72 = arith.mulf %14, %71 : vector<8x128xf32>
    %73 = arith.mulf %67, %70 : vector<8x128xf32>
    %74 = arith.mulf %68, %70 : vector<8x128xf32>
    %75 = arith.mulf %67, %72 : vector<8x128xf32>
    %76 = arith.mulf %68, %72 : vector<8x128xf32>
    %77 = arith.addf %62, %73 : vector<8x128xf32>
    %78 = arith.subf %77, %76 : vector<8x128xf32>
    %79 = arith.addf %65, %74 : vector<8x128xf32>
    %80 = arith.addf %79, %75 : vector<8x128xf32>
    %81 = arith.subf %62, %73 : vector<8x128xf32>
    %82 = arith.subf %81, %76 : vector<8x128xf32>
    %83 = arith.subf %65, %74 : vector<8x128xf32>
    %84 = arith.addf %83, %75 : vector<8x128xf32>
    %85 = arith.subf %62, %73 : vector<8x128xf32>
    %86 = arith.addf %85, %76 : vector<8x128xf32>
    %87 = arith.subf %65, %74 : vector<8x128xf32>
    %88 = arith.subf %87, %75 : vector<8x128xf32>
    %89 = arith.addf %62, %73 : vector<8x128xf32>
    %90 = arith.addf %89, %76 : vector<8x128xf32>
    %91 = arith.addf %65, %74 : vector<8x128xf32>
    %92 = arith.subf %91, %75 : vector<8x128xf32>
    %cst_36 = arith.constant 5.000000e-01 : f32
    %93 = vector.broadcast %cst_36 : f32 to vector<8x128xf32>
    %94 = arith.mulf %49, %93 : vector<8x128xf32>
    %cst_37 = arith.constant 5.000000e-01 : f32
    %95 = vector.broadcast %cst_37 : f32 to vector<8x128xf32>
    %96 = arith.mulf %51, %95 : vector<8x128xf32>
    %cst_38 = arith.constant 0.000000e+00 : f32
    %97 = vector.broadcast %cst_38 : f32 to vector<8x128xf32>
    %98 = arith.subf %97, %96 : vector<8x128xf32>
    %cst_39 = arith.constant 0.000000e+00 : f32
    %99 = vector.broadcast %cst_39 : f32 to vector<8x128xf32>
    %100 = arith.subf %99, %94 : vector<8x128xf32>
    %101 = arith.subf %96, %80 : vector<8x128xf32>
    %102 = arith.subf %96, %84 : vector<8x128xf32>
    %cst_40 = arith.constant 0.000000e+00 : f32
    %103 = vector.broadcast %cst_40 : f32 to vector<8x128xf32>
    %104 = arith.cmpf oge, %101, %103 : vector<8x128xf32>
    %cst_41 = arith.constant 0.000000e+00 : f32
    %105 = vector.broadcast %cst_41 : f32 to vector<8x128xf32>
    %106 = arith.cmpf oge, %102, %105 : vector<8x128xf32>
    %107 = arith.xori %104, %106 : vector<8x128xi1>
    %108 = arith.andi %104, %106 : vector<8x128xi1>
    %cst_42 = arith.constant dense<true> : vector<8x128xi1>
    %109 = arith.xori %106, %cst_42 : vector<8x128xi1>
    %110 = arith.andi %104, %109 : vector<8x128xi1>
    %111 = arith.subf %101, %102 : vector<8x128xf32>
    %cst_43 = arith.constant 1.000000e+00 : f32
    %112 = vector.broadcast %cst_43 : f32 to vector<8x128xf32>
    %113 = arith.select %107, %111, %112 : vector<8x128xi1>, vector<8x128xf32>
    %114 = tpu.reciprocal %113 {approx = true} : vector<8x128xf32> -> vector<8x128xf32>
    %115 = arith.mulf %101, %114 : vector<8x128xf32>
    %116 = arith.subf %82, %78 : vector<8x128xf32>
    %117 = arith.mulf %115, %116 : vector<8x128xf32>
    %118 = arith.addf %78, %117 : vector<8x128xf32>
    %119 = arith.select %107, %118, %82 : vector<8x128xi1>, vector<8x128xf32>
    %120 = arith.select %108, %84, %96 : vector<8x128xi1>, vector<8x128xf32>
    %121 = arith.select %110, %118, %82 : vector<8x128xi1>, vector<8x128xf32>
    %122 = arith.select %106, %84, %96 : vector<8x128xi1>, vector<8x128xf32>
    %123 = arith.subf %119, %100 : vector<8x128xf32>
    %124 = arith.subf %121, %100 : vector<8x128xf32>
    %cst_44 = arith.constant 0.000000e+00 : f32
    %125 = vector.broadcast %cst_44 : f32 to vector<8x128xf32>
    %126 = arith.cmpf oge, %123, %125 : vector<8x128xf32>
    %cst_45 = arith.constant 0.000000e+00 : f32
    %127 = vector.broadcast %cst_45 : f32 to vector<8x128xf32>
    %128 = arith.cmpf oge, %124, %127 : vector<8x128xf32>
    %129 = arith.xori %126, %128 : vector<8x128xi1>
    %130 = arith.andi %126, %128 : vector<8x128xi1>
    %cst_46 = arith.constant dense<true> : vector<8x128xi1>
    %131 = arith.xori %128, %cst_46 : vector<8x128xi1>
    %132 = arith.andi %126, %131 : vector<8x128xi1>
    %133 = arith.subf %123, %124 : vector<8x128xf32>
    %cst_47 = arith.constant 1.000000e+00 : f32
    %134 = vector.broadcast %cst_47 : f32 to vector<8x128xf32>
    %135 = arith.select %129, %133, %134 : vector<8x128xi1>, vector<8x128xf32>
    %136 = tpu.reciprocal %135 {approx = true} : vector<8x128xf32> -> vector<8x128xf32>
    %137 = arith.mulf %123, %136 : vector<8x128xf32>
    %138 = arith.subf %122, %120 : vector<8x128xf32>
    %139 = arith.mulf %137, %138 : vector<8x128xf32>
    %140 = arith.addf %120, %139 : vector<8x128xf32>
    %141 = arith.select %129, %140, %122 : vector<8x128xi1>, vector<8x128xf32>
    %142 = arith.select %130, %121, %100 : vector<8x128xi1>, vector<8x128xf32>
    %143 = arith.select %132, %140, %122 : vector<8x128xi1>, vector<8x128xf32>
    %144 = arith.select %128, %121, %100 : vector<8x128xi1>, vector<8x128xf32>
    %145 = arith.subf %141, %98 : vector<8x128xf32>
    %146 = arith.subf %143, %98 : vector<8x128xf32>
    %cst_48 = arith.constant 0.000000e+00 : f32
    %147 = vector.broadcast %cst_48 : f32 to vector<8x128xf32>
    %148 = arith.cmpf oge, %145, %147 : vector<8x128xf32>
    %cst_49 = arith.constant 0.000000e+00 : f32
    %149 = vector.broadcast %cst_49 : f32 to vector<8x128xf32>
    %150 = arith.cmpf oge, %146, %149 : vector<8x128xf32>
    %151 = arith.xori %148, %150 : vector<8x128xi1>
    %152 = arith.andi %148, %150 : vector<8x128xi1>
    %cst_50 = arith.constant dense<true> : vector<8x128xi1>
    %153 = arith.xori %150, %cst_50 : vector<8x128xi1>
    %154 = arith.andi %148, %153 : vector<8x128xi1>
    %155 = arith.subf %145, %146 : vector<8x128xf32>
    %cst_51 = arith.constant 1.000000e+00 : f32
    %156 = vector.broadcast %cst_51 : f32 to vector<8x128xf32>
    %157 = arith.select %151, %155, %156 : vector<8x128xi1>, vector<8x128xf32>
    %158 = tpu.reciprocal %157 {approx = true} : vector<8x128xf32> -> vector<8x128xf32>
    %159 = arith.mulf %145, %158 : vector<8x128xf32>
    %160 = arith.subf %144, %142 : vector<8x128xf32>
    %161 = arith.mulf %159, %160 : vector<8x128xf32>
    %162 = arith.addf %142, %161 : vector<8x128xf32>
    %163 = arith.select %151, %162, %144 : vector<8x128xi1>, vector<8x128xf32>
    %164 = arith.select %152, %143, %98 : vector<8x128xi1>, vector<8x128xf32>
    %165 = arith.select %154, %162, %144 : vector<8x128xi1>, vector<8x128xf32>
    %166 = arith.select %150, %143, %98 : vector<8x128xi1>, vector<8x128xf32>
    %167 = arith.subf %94, %163 : vector<8x128xf32>
    %168 = arith.subf %94, %165 : vector<8x128xf32>
    %cst_52 = arith.constant 0.000000e+00 : f32
    %169 = vector.broadcast %cst_52 : f32 to vector<8x128xf32>
    %170 = arith.cmpf oge, %167, %169 : vector<8x128xf32>
    %cst_53 = arith.constant 0.000000e+00 : f32
    %171 = vector.broadcast %cst_53 : f32 to vector<8x128xf32>
    %172 = arith.cmpf oge, %168, %171 : vector<8x128xf32>
    %173 = arith.xori %170, %172 : vector<8x128xi1>
    %174 = arith.andi %170, %172 : vector<8x128xi1>
    %cst_54 = arith.constant dense<true> : vector<8x128xi1>
    %175 = arith.xori %172, %cst_54 : vector<8x128xi1>
    %176 = arith.andi %170, %175 : vector<8x128xi1>
    %177 = arith.subf %167, %168 : vector<8x128xf32>
    %cst_55 = arith.constant 1.000000e+00 : f32
    %178 = vector.broadcast %cst_55 : f32 to vector<8x128xf32>
    %179 = arith.select %173, %177, %178 : vector<8x128xi1>, vector<8x128xf32>
    %180 = tpu.reciprocal %179 {approx = true} : vector<8x128xf32> -> vector<8x128xf32>
    %181 = arith.mulf %167, %180 : vector<8x128xf32>
    %182 = arith.subf %166, %164 : vector<8x128xf32>
    %183 = arith.mulf %181, %182 : vector<8x128xf32>
    %184 = arith.addf %164, %183 : vector<8x128xf32>
    %185 = arith.select %173, %184, %166 : vector<8x128xi1>, vector<8x128xf32>
    %186 = arith.select %174, %165, %94 : vector<8x128xi1>, vector<8x128xf32>
    %187 = arith.select %176, %184, %166 : vector<8x128xi1>, vector<8x128xf32>
    %188 = arith.select %172, %165, %94 : vector<8x128xi1>, vector<8x128xf32>
    %189 = arith.mulf %186, %187 : vector<8x128xf32>
    %190 = arith.mulf %188, %185 : vector<8x128xf32>
    %191 = arith.subf %189, %190 : vector<8x128xf32>
    %192 = arith.subf %96, %88 : vector<8x128xf32>
    %cst_56 = arith.constant 0.000000e+00 : f32
    %193 = vector.broadcast %cst_56 : f32 to vector<8x128xf32>
    %194 = arith.cmpf oge, %102, %193 : vector<8x128xf32>
    %cst_57 = arith.constant 0.000000e+00 : f32
    %195 = vector.broadcast %cst_57 : f32 to vector<8x128xf32>
    %196 = arith.cmpf oge, %192, %195 : vector<8x128xf32>
    %197 = arith.xori %194, %196 : vector<8x128xi1>
    %198 = arith.andi %194, %196 : vector<8x128xi1>
    %cst_58 = arith.constant dense<true> : vector<8x128xi1>
    %199 = arith.xori %196, %cst_58 : vector<8x128xi1>
    %200 = arith.andi %194, %199 : vector<8x128xi1>
    %201 = arith.subf %102, %192 : vector<8x128xf32>
    %cst_59 = arith.constant 1.000000e+00 : f32
    %202 = vector.broadcast %cst_59 : f32 to vector<8x128xf32>
    %203 = arith.select %197, %201, %202 : vector<8x128xi1>, vector<8x128xf32>
    %204 = tpu.reciprocal %203 {approx = true} : vector<8x128xf32> -> vector<8x128xf32>
    %205 = arith.mulf %102, %204 : vector<8x128xf32>
    %206 = arith.subf %86, %82 : vector<8x128xf32>
    %207 = arith.mulf %205, %206 : vector<8x128xf32>
    %208 = arith.addf %82, %207 : vector<8x128xf32>
    %209 = arith.select %197, %208, %86 : vector<8x128xi1>, vector<8x128xf32>
    %210 = arith.select %198, %88, %96 : vector<8x128xi1>, vector<8x128xf32>
    %211 = arith.select %200, %208, %86 : vector<8x128xi1>, vector<8x128xf32>
    %212 = arith.select %196, %88, %96 : vector<8x128xi1>, vector<8x128xf32>
    %213 = arith.subf %209, %100 : vector<8x128xf32>
    %cst_60 = arith.constant 0.000000e+00 : f32
    %214 = vector.broadcast %cst_60 : f32 to vector<8x128xf32>
    %215 = arith.cmpf oge, %124, %214 : vector<8x128xf32>
    %cst_61 = arith.constant 0.000000e+00 : f32
    %216 = vector.broadcast %cst_61 : f32 to vector<8x128xf32>
    %217 = arith.cmpf oge, %213, %216 : vector<8x128xf32>
    %218 = arith.xori %215, %217 : vector<8x128xi1>
    %219 = arith.andi %215, %217 : vector<8x128xi1>
    %cst_62 = arith.constant dense<true> : vector<8x128xi1>
    %220 = arith.xori %217, %cst_62 : vector<8x128xi1>
    %221 = arith.andi %215, %220 : vector<8x128xi1>
    %222 = arith.subf %124, %213 : vector<8x128xf32>
    %cst_63 = arith.constant 1.000000e+00 : f32
    %223 = vector.broadcast %cst_63 : f32 to vector<8x128xf32>
    %224 = arith.select %218, %222, %223 : vector<8x128xi1>, vector<8x128xf32>
    %225 = tpu.reciprocal %224 {approx = true} : vector<8x128xf32> -> vector<8x128xf32>
    %226 = arith.mulf %124, %225 : vector<8x128xf32>
    %227 = arith.subf %210, %122 : vector<8x128xf32>
    %228 = arith.mulf %226, %227 : vector<8x128xf32>
    %229 = arith.addf %122, %228 : vector<8x128xf32>
    %230 = arith.select %218, %229, %210 : vector<8x128xi1>, vector<8x128xf32>
    %231 = arith.select %219, %209, %100 : vector<8x128xi1>, vector<8x128xf32>
    %232 = arith.select %221, %229, %210 : vector<8x128xi1>, vector<8x128xf32>
    %233 = arith.select %217, %209, %100 : vector<8x128xi1>, vector<8x128xf32>
    %234 = arith.subf %230, %98 : vector<8x128xf32>
    %cst_64 = arith.constant 0.000000e+00 : f32
    %235 = vector.broadcast %cst_64 : f32 to vector<8x128xf32>
    %236 = arith.cmpf oge, %146, %235 : vector<8x128xf32>
    %cst_65 = arith.constant 0.000000e+00 : f32
    %237 = vector.broadcast %cst_65 : f32 to vector<8x128xf32>
    %238 = arith.cmpf oge, %234, %237 : vector<8x128xf32>
    %239 = arith.xori %236, %238 : vector<8x128xi1>
    %240 = arith.andi %236, %238 : vector<8x128xi1>
    %cst_66 = arith.constant dense<true> : vector<8x128xi1>
    %241 = arith.xori %238, %cst_66 : vector<8x128xi1>
    %242 = arith.andi %236, %241 : vector<8x128xi1>
    %243 = arith.subf %146, %234 : vector<8x128xf32>
    %cst_67 = arith.constant 1.000000e+00 : f32
    %244 = vector.broadcast %cst_67 : f32 to vector<8x128xf32>
    %245 = arith.select %239, %243, %244 : vector<8x128xi1>, vector<8x128xf32>
    %246 = tpu.reciprocal %245 {approx = true} : vector<8x128xf32> -> vector<8x128xf32>
    %247 = arith.mulf %146, %246 : vector<8x128xf32>
    %248 = arith.subf %231, %144 : vector<8x128xf32>
    %249 = arith.mulf %247, %248 : vector<8x128xf32>
    %250 = arith.addf %144, %249 : vector<8x128xf32>
    %251 = arith.select %239, %250, %231 : vector<8x128xi1>, vector<8x128xf32>
    %252 = arith.select %240, %230, %98 : vector<8x128xi1>, vector<8x128xf32>
    %253 = arith.select %242, %250, %231 : vector<8x128xi1>, vector<8x128xf32>
    %254 = arith.select %238, %230, %98 : vector<8x128xi1>, vector<8x128xf32>
    %255 = arith.subf %94, %251 : vector<8x128xf32>
    %cst_68 = arith.constant 0.000000e+00 : f32
    %256 = vector.broadcast %cst_68 : f32 to vector<8x128xf32>
    %257 = arith.cmpf oge, %168, %256 : vector<8x128xf32>
    %cst_69 = arith.constant 0.000000e+00 : f32
    %258 = vector.broadcast %cst_69 : f32 to vector<8x128xf32>
    %259 = arith.cmpf oge, %255, %258 : vector<8x128xf32>
    %260 = arith.xori %257, %259 : vector<8x128xi1>
    %261 = arith.andi %257, %259 : vector<8x128xi1>
    %cst_70 = arith.constant dense<true> : vector<8x128xi1>
    %262 = arith.xori %259, %cst_70 : vector<8x128xi1>
    %263 = arith.andi %257, %262 : vector<8x128xi1>
    %264 = arith.subf %168, %255 : vector<8x128xf32>
    %cst_71 = arith.constant 1.000000e+00 : f32
    %265 = vector.broadcast %cst_71 : f32 to vector<8x128xf32>
    %266 = arith.select %260, %264, %265 : vector<8x128xi1>, vector<8x128xf32>
    %267 = tpu.reciprocal %266 {approx = true} : vector<8x128xf32> -> vector<8x128xf32>
    %268 = arith.mulf %168, %267 : vector<8x128xf32>
    %269 = arith.subf %252, %166 : vector<8x128xf32>
    %270 = arith.mulf %268, %269 : vector<8x128xf32>
    %271 = arith.addf %166, %270 : vector<8x128xf32>
    %272 = arith.select %260, %271, %252 : vector<8x128xi1>, vector<8x128xf32>
    %273 = arith.select %261, %251, %94 : vector<8x128xi1>, vector<8x128xf32>
    %274 = arith.select %263, %271, %252 : vector<8x128xi1>, vector<8x128xf32>
    %275 = arith.select %259, %251, %94 : vector<8x128xi1>, vector<8x128xf32>
    %276 = arith.mulf %188, %272 : vector<8x128xf32>
    %277 = arith.mulf %273, %187 : vector<8x128xf32>
    %278 = arith.subf %276, %277 : vector<8x128xf32>
    %279 = arith.mulf %273, %274 : vector<8x128xf32>
    %280 = arith.mulf %275, %272 : vector<8x128xf32>
    %281 = arith.subf %279, %280 : vector<8x128xf32>
    %282 = arith.subf %94, %253 : vector<8x128xf32>
    %cst_72 = arith.constant 0.000000e+00 : f32
    %283 = vector.broadcast %cst_72 : f32 to vector<8x128xf32>
    %284 = arith.cmpf oge, %255, %283 : vector<8x128xf32>
    %cst_73 = arith.constant 0.000000e+00 : f32
    %285 = vector.broadcast %cst_73 : f32 to vector<8x128xf32>
    %286 = arith.cmpf oge, %282, %285 : vector<8x128xf32>
    %287 = arith.xori %284, %286 : vector<8x128xi1>
    %288 = arith.andi %284, %286 : vector<8x128xi1>
    %cst_74 = arith.constant dense<true> : vector<8x128xi1>
    %289 = arith.xori %286, %cst_74 : vector<8x128xi1>
    %290 = arith.andi %284, %289 : vector<8x128xi1>
    %291 = arith.subf %255, %282 : vector<8x128xf32>
    %cst_75 = arith.constant 1.000000e+00 : f32
    %292 = vector.broadcast %cst_75 : f32 to vector<8x128xf32>
    %293 = arith.select %287, %291, %292 : vector<8x128xi1>, vector<8x128xf32>
    %294 = tpu.reciprocal %293 {approx = true} : vector<8x128xf32> -> vector<8x128xf32>
    %295 = arith.mulf %255, %294 : vector<8x128xf32>
    %296 = arith.subf %254, %252 : vector<8x128xf32>
    %297 = arith.mulf %295, %296 : vector<8x128xf32>
    %298 = arith.addf %252, %297 : vector<8x128xf32>
    %299 = arith.select %287, %298, %254 : vector<8x128xi1>, vector<8x128xf32>
    %300 = arith.select %288, %253, %94 : vector<8x128xi1>, vector<8x128xf32>
    %301 = arith.select %290, %298, %254 : vector<8x128xi1>, vector<8x128xf32>
    %302 = arith.select %286, %253, %94 : vector<8x128xi1>, vector<8x128xf32>
    %303 = arith.mulf %275, %299 : vector<8x128xf32>
    %304 = arith.mulf %300, %274 : vector<8x128xf32>
    %305 = arith.subf %303, %304 : vector<8x128xf32>
    %306 = arith.mulf %300, %301 : vector<8x128xf32>
    %307 = arith.mulf %302, %299 : vector<8x128xf32>
    %308 = arith.subf %306, %307 : vector<8x128xf32>
    %309 = arith.addf %191, %308 : vector<8x128xf32>
    %310 = arith.subf %232, %98 : vector<8x128xf32>
    %cst_76 = arith.constant 0.000000e+00 : f32
    %311 = vector.broadcast %cst_76 : f32 to vector<8x128xf32>
    %312 = arith.cmpf oge, %234, %311 : vector<8x128xf32>
    %cst_77 = arith.constant 0.000000e+00 : f32
    %313 = vector.broadcast %cst_77 : f32 to vector<8x128xf32>
    %314 = arith.cmpf oge, %310, %313 : vector<8x128xf32>
    %315 = arith.xori %312, %314 : vector<8x128xi1>
    %316 = arith.andi %312, %314 : vector<8x128xi1>
    %cst_78 = arith.constant dense<true> : vector<8x128xi1>
    %317 = arith.xori %314, %cst_78 : vector<8x128xi1>
    %318 = arith.andi %312, %317 : vector<8x128xi1>
    %319 = arith.subf %234, %310 : vector<8x128xf32>
    %cst_79 = arith.constant 1.000000e+00 : f32
    %320 = vector.broadcast %cst_79 : f32 to vector<8x128xf32>
    %321 = arith.select %315, %319, %320 : vector<8x128xi1>, vector<8x128xf32>
    %322 = tpu.reciprocal %321 {approx = true} : vector<8x128xf32> -> vector<8x128xf32>
    %323 = arith.mulf %234, %322 : vector<8x128xf32>
    %324 = arith.subf %233, %231 : vector<8x128xf32>
    %325 = arith.mulf %323, %324 : vector<8x128xf32>
    %326 = arith.addf %231, %325 : vector<8x128xf32>
    %327 = arith.select %315, %326, %233 : vector<8x128xi1>, vector<8x128xf32>
    %328 = arith.select %316, %232, %98 : vector<8x128xi1>, vector<8x128xf32>
    %329 = arith.select %318, %326, %233 : vector<8x128xi1>, vector<8x128xf32>
    %330 = arith.select %314, %232, %98 : vector<8x128xi1>, vector<8x128xf32>
    %331 = arith.subf %94, %327 : vector<8x128xf32>
    %cst_80 = arith.constant 0.000000e+00 : f32
    %332 = vector.broadcast %cst_80 : f32 to vector<8x128xf32>
    %333 = arith.cmpf oge, %282, %332 : vector<8x128xf32>
    %cst_81 = arith.constant 0.000000e+00 : f32
    %334 = vector.broadcast %cst_81 : f32 to vector<8x128xf32>
    %335 = arith.cmpf oge, %331, %334 : vector<8x128xf32>
    %336 = arith.xori %333, %335 : vector<8x128xi1>
    %337 = arith.andi %333, %335 : vector<8x128xi1>
    %cst_82 = arith.constant dense<true> : vector<8x128xi1>
    %338 = arith.xori %335, %cst_82 : vector<8x128xi1>
    %339 = arith.andi %333, %338 : vector<8x128xi1>
    %340 = arith.subf %282, %331 : vector<8x128xf32>
    %cst_83 = arith.constant 1.000000e+00 : f32
    %341 = vector.broadcast %cst_83 : f32 to vector<8x128xf32>
    %342 = arith.select %336, %340, %341 : vector<8x128xi1>, vector<8x128xf32>
    %343 = tpu.reciprocal %342 {approx = true} : vector<8x128xf32> -> vector<8x128xf32>
    %344 = arith.mulf %282, %343 : vector<8x128xf32>
    %345 = arith.subf %328, %254 : vector<8x128xf32>
    %346 = arith.mulf %344, %345 : vector<8x128xf32>
    %347 = arith.addf %254, %346 : vector<8x128xf32>
    %348 = arith.select %336, %347, %328 : vector<8x128xi1>, vector<8x128xf32>
    %349 = arith.select %337, %327, %94 : vector<8x128xi1>, vector<8x128xf32>
    %350 = arith.select %339, %347, %328 : vector<8x128xi1>, vector<8x128xf32>
    %351 = arith.select %335, %327, %94 : vector<8x128xi1>, vector<8x128xf32>
    %352 = arith.mulf %302, %348 : vector<8x128xf32>
    %353 = arith.mulf %349, %301 : vector<8x128xf32>
    %354 = arith.subf %352, %353 : vector<8x128xf32>
    %355 = arith.addf %278, %354 : vector<8x128xf32>
    %356 = arith.mulf %349, %350 : vector<8x128xf32>
    %357 = arith.mulf %351, %348 : vector<8x128xf32>
    %358 = arith.subf %356, %357 : vector<8x128xf32>
    %359 = arith.addf %281, %358 : vector<8x128xf32>
    %360 = arith.subf %94, %329 : vector<8x128xf32>
    %cst_84 = arith.constant 0.000000e+00 : f32
    %361 = vector.broadcast %cst_84 : f32 to vector<8x128xf32>
    %362 = arith.cmpf oge, %331, %361 : vector<8x128xf32>
    %cst_85 = arith.constant 0.000000e+00 : f32
    %363 = vector.broadcast %cst_85 : f32 to vector<8x128xf32>
    %364 = arith.cmpf oge, %360, %363 : vector<8x128xf32>
    %365 = arith.xori %362, %364 : vector<8x128xi1>
    %366 = arith.andi %362, %364 : vector<8x128xi1>
    %cst_86 = arith.constant dense<true> : vector<8x128xi1>
    %367 = arith.xori %364, %cst_86 : vector<8x128xi1>
    %368 = arith.andi %362, %367 : vector<8x128xi1>
    %369 = arith.subf %331, %360 : vector<8x128xf32>
    %cst_87 = arith.constant 1.000000e+00 : f32
    %370 = vector.broadcast %cst_87 : f32 to vector<8x128xf32>
    %371 = arith.select %365, %369, %370 : vector<8x128xi1>, vector<8x128xf32>
    %372 = tpu.reciprocal %371 {approx = true} : vector<8x128xf32> -> vector<8x128xf32>
    %373 = arith.mulf %331, %372 : vector<8x128xf32>
    %374 = arith.subf %330, %328 : vector<8x128xf32>
    %375 = arith.mulf %373, %374 : vector<8x128xf32>
    %376 = arith.addf %328, %375 : vector<8x128xf32>
    %377 = arith.select %365, %376, %330 : vector<8x128xi1>, vector<8x128xf32>
    %378 = arith.select %366, %329, %94 : vector<8x128xi1>, vector<8x128xf32>
    %379 = arith.select %368, %376, %330 : vector<8x128xi1>, vector<8x128xf32>
    %380 = arith.select %364, %329, %94 : vector<8x128xi1>, vector<8x128xf32>
    %381 = arith.mulf %351, %377 : vector<8x128xf32>
    %382 = arith.mulf %378, %350 : vector<8x128xf32>
    %383 = arith.subf %381, %382 : vector<8x128xf32>
    %384 = arith.addf %305, %383 : vector<8x128xf32>
    %385 = arith.mulf %378, %379 : vector<8x128xf32>
    %386 = arith.mulf %380, %377 : vector<8x128xf32>
    %387 = arith.subf %385, %386 : vector<8x128xf32>
    %388 = arith.addf %309, %387 : vector<8x128xf32>
    %389 = arith.subf %211, %100 : vector<8x128xf32>
    %cst_88 = arith.constant 0.000000e+00 : f32
    %390 = vector.broadcast %cst_88 : f32 to vector<8x128xf32>
    %391 = arith.cmpf oge, %213, %390 : vector<8x128xf32>
    %cst_89 = arith.constant 0.000000e+00 : f32
    %392 = vector.broadcast %cst_89 : f32 to vector<8x128xf32>
    %393 = arith.cmpf oge, %389, %392 : vector<8x128xf32>
    %394 = arith.xori %391, %393 : vector<8x128xi1>
    %395 = arith.andi %391, %393 : vector<8x128xi1>
    %cst_90 = arith.constant dense<true> : vector<8x128xi1>
    %396 = arith.xori %393, %cst_90 : vector<8x128xi1>
    %397 = arith.andi %391, %396 : vector<8x128xi1>
    %398 = arith.subf %213, %389 : vector<8x128xf32>
    %cst_91 = arith.constant 1.000000e+00 : f32
    %399 = vector.broadcast %cst_91 : f32 to vector<8x128xf32>
    %400 = arith.select %394, %398, %399 : vector<8x128xi1>, vector<8x128xf32>
    %401 = tpu.reciprocal %400 {approx = true} : vector<8x128xf32> -> vector<8x128xf32>
    %402 = arith.mulf %213, %401 : vector<8x128xf32>
    %403 = arith.subf %212, %210 : vector<8x128xf32>
    %404 = arith.mulf %402, %403 : vector<8x128xf32>
    %405 = arith.addf %210, %404 : vector<8x128xf32>
    %406 = arith.select %394, %405, %212 : vector<8x128xi1>, vector<8x128xf32>
    %407 = arith.select %395, %211, %100 : vector<8x128xi1>, vector<8x128xf32>
    %408 = arith.select %397, %405, %212 : vector<8x128xi1>, vector<8x128xf32>
    %409 = arith.select %393, %211, %100 : vector<8x128xi1>, vector<8x128xf32>
    %410 = arith.subf %406, %98 : vector<8x128xf32>
    %cst_92 = arith.constant 0.000000e+00 : f32
    %411 = vector.broadcast %cst_92 : f32 to vector<8x128xf32>
    %412 = arith.cmpf oge, %310, %411 : vector<8x128xf32>
    %cst_93 = arith.constant 0.000000e+00 : f32
    %413 = vector.broadcast %cst_93 : f32 to vector<8x128xf32>
    %414 = arith.cmpf oge, %410, %413 : vector<8x128xf32>
    %415 = arith.xori %412, %414 : vector<8x128xi1>
    %416 = arith.andi %412, %414 : vector<8x128xi1>
    %cst_94 = arith.constant dense<true> : vector<8x128xi1>
    %417 = arith.xori %414, %cst_94 : vector<8x128xi1>
    %418 = arith.andi %412, %417 : vector<8x128xi1>
    %419 = arith.subf %310, %410 : vector<8x128xf32>
    %cst_95 = arith.constant 1.000000e+00 : f32
    %420 = vector.broadcast %cst_95 : f32 to vector<8x128xf32>
    %421 = arith.select %415, %419, %420 : vector<8x128xi1>, vector<8x128xf32>
    %422 = tpu.reciprocal %421 {approx = true} : vector<8x128xf32> -> vector<8x128xf32>
    %423 = arith.mulf %310, %422 : vector<8x128xf32>
    %424 = arith.subf %407, %233 : vector<8x128xf32>
    %425 = arith.mulf %423, %424 : vector<8x128xf32>
    %426 = arith.addf %233, %425 : vector<8x128xf32>
    %427 = arith.select %415, %426, %407 : vector<8x128xi1>, vector<8x128xf32>
    %428 = arith.select %416, %406, %98 : vector<8x128xi1>, vector<8x128xf32>
    %429 = arith.select %418, %426, %407 : vector<8x128xi1>, vector<8x128xf32>
    %430 = arith.select %414, %406, %98 : vector<8x128xi1>, vector<8x128xf32>
    %431 = arith.subf %94, %427 : vector<8x128xf32>
    %cst_96 = arith.constant 0.000000e+00 : f32
    %432 = vector.broadcast %cst_96 : f32 to vector<8x128xf32>
    %433 = arith.cmpf oge, %360, %432 : vector<8x128xf32>
    %cst_97 = arith.constant 0.000000e+00 : f32
    %434 = vector.broadcast %cst_97 : f32 to vector<8x128xf32>
    %435 = arith.cmpf oge, %431, %434 : vector<8x128xf32>
    %436 = arith.xori %433, %435 : vector<8x128xi1>
    %437 = arith.andi %433, %435 : vector<8x128xi1>
    %cst_98 = arith.constant dense<true> : vector<8x128xi1>
    %438 = arith.xori %435, %cst_98 : vector<8x128xi1>
    %439 = arith.andi %433, %438 : vector<8x128xi1>
    %440 = arith.subf %360, %431 : vector<8x128xf32>
    %cst_99 = arith.constant 1.000000e+00 : f32
    %441 = vector.broadcast %cst_99 : f32 to vector<8x128xf32>
    %442 = arith.select %436, %440, %441 : vector<8x128xi1>, vector<8x128xf32>
    %443 = tpu.reciprocal %442 {approx = true} : vector<8x128xf32> -> vector<8x128xf32>
    %444 = arith.mulf %360, %443 : vector<8x128xf32>
    %445 = arith.subf %428, %330 : vector<8x128xf32>
    %446 = arith.mulf %444, %445 : vector<8x128xf32>
    %447 = arith.addf %330, %446 : vector<8x128xf32>
    %448 = arith.select %436, %447, %428 : vector<8x128xi1>, vector<8x128xf32>
    %449 = arith.select %437, %427, %94 : vector<8x128xi1>, vector<8x128xf32>
    %450 = arith.select %439, %447, %428 : vector<8x128xi1>, vector<8x128xf32>
    %451 = arith.select %435, %427, %94 : vector<8x128xi1>, vector<8x128xf32>
    %452 = arith.mulf %380, %448 : vector<8x128xf32>
    %453 = arith.mulf %449, %379 : vector<8x128xf32>
    %454 = arith.subf %452, %453 : vector<8x128xf32>
    %455 = arith.addf %355, %454 : vector<8x128xf32>
    %456 = arith.mulf %449, %450 : vector<8x128xf32>
    %457 = arith.mulf %451, %448 : vector<8x128xf32>
    %458 = arith.subf %456, %457 : vector<8x128xf32>
    %459 = arith.addf %359, %458 : vector<8x128xf32>
    %460 = arith.subf %94, %429 : vector<8x128xf32>
    %cst_100 = arith.constant 0.000000e+00 : f32
    %461 = vector.broadcast %cst_100 : f32 to vector<8x128xf32>
    %462 = arith.cmpf oge, %431, %461 : vector<8x128xf32>
    %cst_101 = arith.constant 0.000000e+00 : f32
    %463 = vector.broadcast %cst_101 : f32 to vector<8x128xf32>
    %464 = arith.cmpf oge, %460, %463 : vector<8x128xf32>
    %465 = arith.xori %462, %464 : vector<8x128xi1>
    %466 = arith.andi %462, %464 : vector<8x128xi1>
    %cst_102 = arith.constant dense<true> : vector<8x128xi1>
    %467 = arith.xori %464, %cst_102 : vector<8x128xi1>
    %468 = arith.andi %462, %467 : vector<8x128xi1>
    %469 = arith.subf %431, %460 : vector<8x128xf32>
    %cst_103 = arith.constant 1.000000e+00 : f32
    %470 = vector.broadcast %cst_103 : f32 to vector<8x128xf32>
    %471 = arith.select %465, %469, %470 : vector<8x128xi1>, vector<8x128xf32>
    %472 = tpu.reciprocal %471 {approx = true} : vector<8x128xf32> -> vector<8x128xf32>
    %473 = arith.mulf %431, %472 : vector<8x128xf32>
    %474 = arith.subf %430, %428 : vector<8x128xf32>
    %475 = arith.mulf %473, %474 : vector<8x128xf32>
    %476 = arith.addf %428, %475 : vector<8x128xf32>
    %477 = arith.select %465, %476, %430 : vector<8x128xi1>, vector<8x128xf32>
    %478 = arith.select %466, %429, %94 : vector<8x128xi1>, vector<8x128xf32>
    %479 = arith.select %468, %476, %430 : vector<8x128xi1>, vector<8x128xf32>
    %480 = arith.select %464, %429, %94 : vector<8x128xi1>, vector<8x128xf32>
    %481 = arith.mulf %451, %477 : vector<8x128xf32>
    %482 = arith.mulf %478, %450 : vector<8x128xf32>
    %483 = arith.subf %481, %482 : vector<8x128xf32>
    %484 = arith.addf %384, %483 : vector<8x128xf32>
    %485 = arith.mulf %478, %479 : vector<8x128xf32>
    %486 = arith.mulf %480, %477 : vector<8x128xf32>
    %487 = arith.subf %485, %486 : vector<8x128xf32>
    %488 = arith.addf %388, %487 : vector<8x128xf32>
    %489 = arith.subf %408, %98 : vector<8x128xf32>
    %cst_104 = arith.constant 0.000000e+00 : f32
    %490 = vector.broadcast %cst_104 : f32 to vector<8x128xf32>
    %491 = arith.cmpf oge, %410, %490 : vector<8x128xf32>
    %cst_105 = arith.constant 0.000000e+00 : f32
    %492 = vector.broadcast %cst_105 : f32 to vector<8x128xf32>
    %493 = arith.cmpf oge, %489, %492 : vector<8x128xf32>
    %494 = arith.xori %491, %493 : vector<8x128xi1>
    %495 = arith.andi %491, %493 : vector<8x128xi1>
    %cst_106 = arith.constant dense<true> : vector<8x128xi1>
    %496 = arith.xori %493, %cst_106 : vector<8x128xi1>
    %497 = arith.andi %491, %496 : vector<8x128xi1>
    %498 = arith.subf %410, %489 : vector<8x128xf32>
    %cst_107 = arith.constant 1.000000e+00 : f32
    %499 = vector.broadcast %cst_107 : f32 to vector<8x128xf32>
    %500 = arith.select %494, %498, %499 : vector<8x128xi1>, vector<8x128xf32>
    %501 = tpu.reciprocal %500 {approx = true} : vector<8x128xf32> -> vector<8x128xf32>
    %502 = arith.mulf %410, %501 : vector<8x128xf32>
    %503 = arith.subf %409, %407 : vector<8x128xf32>
    %504 = arith.mulf %502, %503 : vector<8x128xf32>
    %505 = arith.addf %407, %504 : vector<8x128xf32>
    %506 = arith.select %494, %505, %409 : vector<8x128xi1>, vector<8x128xf32>
    %507 = arith.select %495, %408, %98 : vector<8x128xi1>, vector<8x128xf32>
    %508 = arith.select %497, %505, %409 : vector<8x128xi1>, vector<8x128xf32>
    %509 = arith.select %493, %408, %98 : vector<8x128xi1>, vector<8x128xf32>
    %510 = arith.subf %94, %506 : vector<8x128xf32>
    %cst_108 = arith.constant 0.000000e+00 : f32
    %511 = vector.broadcast %cst_108 : f32 to vector<8x128xf32>
    %512 = arith.cmpf oge, %460, %511 : vector<8x128xf32>
    %cst_109 = arith.constant 0.000000e+00 : f32
    %513 = vector.broadcast %cst_109 : f32 to vector<8x128xf32>
    %514 = arith.cmpf oge, %510, %513 : vector<8x128xf32>
    %515 = arith.xori %512, %514 : vector<8x128xi1>
    %516 = arith.andi %512, %514 : vector<8x128xi1>
    %cst_110 = arith.constant dense<true> : vector<8x128xi1>
    %517 = arith.xori %514, %cst_110 : vector<8x128xi1>
    %518 = arith.andi %512, %517 : vector<8x128xi1>
    %519 = arith.subf %460, %510 : vector<8x128xf32>
    %cst_111 = arith.constant 1.000000e+00 : f32
    %520 = vector.broadcast %cst_111 : f32 to vector<8x128xf32>
    %521 = arith.select %515, %519, %520 : vector<8x128xi1>, vector<8x128xf32>
    %522 = tpu.reciprocal %521 {approx = true} : vector<8x128xf32> -> vector<8x128xf32>
    %523 = arith.mulf %460, %522 : vector<8x128xf32>
    %524 = arith.subf %507, %430 : vector<8x128xf32>
    %525 = arith.mulf %523, %524 : vector<8x128xf32>
    %526 = arith.addf %430, %525 : vector<8x128xf32>
    %527 = arith.select %515, %526, %507 : vector<8x128xi1>, vector<8x128xf32>
    %528 = arith.select %516, %506, %94 : vector<8x128xi1>, vector<8x128xf32>
    %529 = arith.select %518, %526, %507 : vector<8x128xi1>, vector<8x128xf32>
    %530 = arith.select %514, %506, %94 : vector<8x128xi1>, vector<8x128xf32>
    %531 = arith.mulf %480, %527 : vector<8x128xf32>
    %532 = arith.mulf %528, %479 : vector<8x128xf32>
    %533 = arith.subf %531, %532 : vector<8x128xf32>
    %534 = arith.addf %455, %533 : vector<8x128xf32>
    %535 = arith.mulf %528, %529 : vector<8x128xf32>
    %536 = arith.mulf %530, %527 : vector<8x128xf32>
    %537 = arith.subf %535, %536 : vector<8x128xf32>
    %538 = arith.addf %459, %537 : vector<8x128xf32>
    %539 = arith.subf %94, %508 : vector<8x128xf32>
    %cst_112 = arith.constant 0.000000e+00 : f32
    %540 = vector.broadcast %cst_112 : f32 to vector<8x128xf32>
    %541 = arith.cmpf oge, %510, %540 : vector<8x128xf32>
    %cst_113 = arith.constant 0.000000e+00 : f32
    %542 = vector.broadcast %cst_113 : f32 to vector<8x128xf32>
    %543 = arith.cmpf oge, %539, %542 : vector<8x128xf32>
    %544 = arith.xori %541, %543 : vector<8x128xi1>
    %545 = arith.andi %541, %543 : vector<8x128xi1>
    %cst_114 = arith.constant dense<true> : vector<8x128xi1>
    %546 = arith.xori %543, %cst_114 : vector<8x128xi1>
    %547 = arith.andi %541, %546 : vector<8x128xi1>
    %548 = arith.subf %510, %539 : vector<8x128xf32>
    %cst_115 = arith.constant 1.000000e+00 : f32
    %549 = vector.broadcast %cst_115 : f32 to vector<8x128xf32>
    %550 = arith.select %544, %548, %549 : vector<8x128xi1>, vector<8x128xf32>
    %551 = tpu.reciprocal %550 {approx = true} : vector<8x128xf32> -> vector<8x128xf32>
    %552 = arith.mulf %510, %551 : vector<8x128xf32>
    %553 = arith.subf %509, %507 : vector<8x128xf32>
    %554 = arith.mulf %552, %553 : vector<8x128xf32>
    %555 = arith.addf %507, %554 : vector<8x128xf32>
    %556 = arith.select %544, %555, %509 : vector<8x128xi1>, vector<8x128xf32>
    %557 = arith.select %545, %508, %94 : vector<8x128xi1>, vector<8x128xf32>
    %558 = arith.select %547, %555, %509 : vector<8x128xi1>, vector<8x128xf32>
    %559 = arith.select %543, %508, %94 : vector<8x128xi1>, vector<8x128xf32>
    %560 = arith.mulf %530, %556 : vector<8x128xf32>
    %561 = arith.mulf %557, %529 : vector<8x128xf32>
    %562 = arith.subf %560, %561 : vector<8x128xf32>
    %563 = arith.addf %484, %562 : vector<8x128xf32>
    %564 = arith.mulf %557, %558 : vector<8x128xf32>
    %565 = arith.mulf %559, %556 : vector<8x128xf32>
    %566 = arith.subf %564, %565 : vector<8x128xf32>
    %567 = arith.addf %488, %566 : vector<8x128xf32>
    %568 = arith.subf %96, %92 : vector<8x128xf32>
    %cst_116 = arith.constant 0.000000e+00 : f32
    %569 = vector.broadcast %cst_116 : f32 to vector<8x128xf32>
    %570 = arith.cmpf oge, %192, %569 : vector<8x128xf32>
    %cst_117 = arith.constant 0.000000e+00 : f32
    %571 = vector.broadcast %cst_117 : f32 to vector<8x128xf32>
    %572 = arith.cmpf oge, %568, %571 : vector<8x128xf32>
    %573 = arith.xori %570, %572 : vector<8x128xi1>
    %574 = arith.andi %570, %572 : vector<8x128xi1>
    %cst_118 = arith.constant dense<true> : vector<8x128xi1>
    %575 = arith.xori %572, %cst_118 : vector<8x128xi1>
    %576 = arith.andi %570, %575 : vector<8x128xi1>
    %577 = arith.subf %192, %568 : vector<8x128xf32>
    %cst_119 = arith.constant 1.000000e+00 : f32
    %578 = vector.broadcast %cst_119 : f32 to vector<8x128xf32>
    %579 = arith.select %573, %577, %578 : vector<8x128xi1>, vector<8x128xf32>
    %580 = tpu.reciprocal %579 {approx = true} : vector<8x128xf32> -> vector<8x128xf32>
    %581 = arith.mulf %192, %580 : vector<8x128xf32>
    %582 = arith.subf %90, %86 : vector<8x128xf32>
    %583 = arith.mulf %581, %582 : vector<8x128xf32>
    %584 = arith.addf %86, %583 : vector<8x128xf32>
    %585 = arith.select %573, %584, %90 : vector<8x128xi1>, vector<8x128xf32>
    %586 = arith.select %574, %92, %96 : vector<8x128xi1>, vector<8x128xf32>
    %587 = arith.select %576, %584, %90 : vector<8x128xi1>, vector<8x128xf32>
    %588 = arith.select %572, %92, %96 : vector<8x128xi1>, vector<8x128xf32>
    %589 = arith.subf %585, %100 : vector<8x128xf32>
    %cst_120 = arith.constant 0.000000e+00 : f32
    %590 = vector.broadcast %cst_120 : f32 to vector<8x128xf32>
    %591 = arith.cmpf oge, %389, %590 : vector<8x128xf32>
    %cst_121 = arith.constant 0.000000e+00 : f32
    %592 = vector.broadcast %cst_121 : f32 to vector<8x128xf32>
    %593 = arith.cmpf oge, %589, %592 : vector<8x128xf32>
    %594 = arith.xori %591, %593 : vector<8x128xi1>
    %595 = arith.andi %591, %593 : vector<8x128xi1>
    %cst_122 = arith.constant dense<true> : vector<8x128xi1>
    %596 = arith.xori %593, %cst_122 : vector<8x128xi1>
    %597 = arith.andi %591, %596 : vector<8x128xi1>
    %598 = arith.subf %389, %589 : vector<8x128xf32>
    %cst_123 = arith.constant 1.000000e+00 : f32
    %599 = vector.broadcast %cst_123 : f32 to vector<8x128xf32>
    %600 = arith.select %594, %598, %599 : vector<8x128xi1>, vector<8x128xf32>
    %601 = tpu.reciprocal %600 {approx = true} : vector<8x128xf32> -> vector<8x128xf32>
    %602 = arith.mulf %389, %601 : vector<8x128xf32>
    %603 = arith.subf %586, %212 : vector<8x128xf32>
    %604 = arith.mulf %602, %603 : vector<8x128xf32>
    %605 = arith.addf %212, %604 : vector<8x128xf32>
    %606 = arith.select %594, %605, %586 : vector<8x128xi1>, vector<8x128xf32>
    %607 = arith.select %595, %585, %100 : vector<8x128xi1>, vector<8x128xf32>
    %608 = arith.select %597, %605, %586 : vector<8x128xi1>, vector<8x128xf32>
    %609 = arith.select %593, %585, %100 : vector<8x128xi1>, vector<8x128xf32>
    %610 = arith.subf %606, %98 : vector<8x128xf32>
    %cst_124 = arith.constant 0.000000e+00 : f32
    %611 = vector.broadcast %cst_124 : f32 to vector<8x128xf32>
    %612 = arith.cmpf oge, %489, %611 : vector<8x128xf32>
    %cst_125 = arith.constant 0.000000e+00 : f32
    %613 = vector.broadcast %cst_125 : f32 to vector<8x128xf32>
    %614 = arith.cmpf oge, %610, %613 : vector<8x128xf32>
    %615 = arith.xori %612, %614 : vector<8x128xi1>
    %616 = arith.andi %612, %614 : vector<8x128xi1>
    %cst_126 = arith.constant dense<true> : vector<8x128xi1>
    %617 = arith.xori %614, %cst_126 : vector<8x128xi1>
    %618 = arith.andi %612, %617 : vector<8x128xi1>
    %619 = arith.subf %489, %610 : vector<8x128xf32>
    %cst_127 = arith.constant 1.000000e+00 : f32
    %620 = vector.broadcast %cst_127 : f32 to vector<8x128xf32>
    %621 = arith.select %615, %619, %620 : vector<8x128xi1>, vector<8x128xf32>
    %622 = tpu.reciprocal %621 {approx = true} : vector<8x128xf32> -> vector<8x128xf32>
    %623 = arith.mulf %489, %622 : vector<8x128xf32>
    %624 = arith.subf %607, %409 : vector<8x128xf32>
    %625 = arith.mulf %623, %624 : vector<8x128xf32>
    %626 = arith.addf %409, %625 : vector<8x128xf32>
    %627 = arith.select %615, %626, %607 : vector<8x128xi1>, vector<8x128xf32>
    %628 = arith.select %616, %606, %98 : vector<8x128xi1>, vector<8x128xf32>
    %629 = arith.select %618, %626, %607 : vector<8x128xi1>, vector<8x128xf32>
    %630 = arith.select %614, %606, %98 : vector<8x128xi1>, vector<8x128xf32>
    %631 = arith.subf %94, %627 : vector<8x128xf32>
    %cst_128 = arith.constant 0.000000e+00 : f32
    %632 = vector.broadcast %cst_128 : f32 to vector<8x128xf32>
    %633 = arith.cmpf oge, %539, %632 : vector<8x128xf32>
    %cst_129 = arith.constant 0.000000e+00 : f32
    %634 = vector.broadcast %cst_129 : f32 to vector<8x128xf32>
    %635 = arith.cmpf oge, %631, %634 : vector<8x128xf32>
    %636 = arith.xori %633, %635 : vector<8x128xi1>
    %637 = arith.andi %633, %635 : vector<8x128xi1>
    %cst_130 = arith.constant dense<true> : vector<8x128xi1>
    %638 = arith.xori %635, %cst_130 : vector<8x128xi1>
    %639 = arith.andi %633, %638 : vector<8x128xi1>
    %640 = arith.subf %539, %631 : vector<8x128xf32>
    %cst_131 = arith.constant 1.000000e+00 : f32
    %641 = vector.broadcast %cst_131 : f32 to vector<8x128xf32>
    %642 = arith.select %636, %640, %641 : vector<8x128xi1>, vector<8x128xf32>
    %643 = tpu.reciprocal %642 {approx = true} : vector<8x128xf32> -> vector<8x128xf32>
    %644 = arith.mulf %539, %643 : vector<8x128xf32>
    %645 = arith.subf %628, %509 : vector<8x128xf32>
    %646 = arith.mulf %644, %645 : vector<8x128xf32>
    %647 = arith.addf %509, %646 : vector<8x128xf32>
    %648 = arith.select %636, %647, %628 : vector<8x128xi1>, vector<8x128xf32>
    %649 = arith.select %637, %627, %94 : vector<8x128xi1>, vector<8x128xf32>
    %650 = arith.select %639, %647, %628 : vector<8x128xi1>, vector<8x128xf32>
    %651 = arith.select %635, %627, %94 : vector<8x128xi1>, vector<8x128xf32>
    %652 = arith.mulf %559, %648 : vector<8x128xf32>
    %653 = arith.mulf %649, %558 : vector<8x128xf32>
    %654 = arith.subf %652, %653 : vector<8x128xf32>
    %655 = arith.addf %534, %654 : vector<8x128xf32>
    %656 = arith.mulf %649, %650 : vector<8x128xf32>
    %657 = arith.mulf %651, %648 : vector<8x128xf32>
    %658 = arith.subf %656, %657 : vector<8x128xf32>
    %659 = arith.addf %538, %658 : vector<8x128xf32>
    %660 = arith.subf %94, %629 : vector<8x128xf32>
    %cst_132 = arith.constant 0.000000e+00 : f32
    %661 = vector.broadcast %cst_132 : f32 to vector<8x128xf32>
    %662 = arith.cmpf oge, %631, %661 : vector<8x128xf32>
    %cst_133 = arith.constant 0.000000e+00 : f32
    %663 = vector.broadcast %cst_133 : f32 to vector<8x128xf32>
    %664 = arith.cmpf oge, %660, %663 : vector<8x128xf32>
    %665 = arith.xori %662, %664 : vector<8x128xi1>
    %666 = arith.andi %662, %664 : vector<8x128xi1>
    %cst_134 = arith.constant dense<true> : vector<8x128xi1>
    %667 = arith.xori %664, %cst_134 : vector<8x128xi1>
    %668 = arith.andi %662, %667 : vector<8x128xi1>
    %669 = arith.subf %631, %660 : vector<8x128xf32>
    %cst_135 = arith.constant 1.000000e+00 : f32
    %670 = vector.broadcast %cst_135 : f32 to vector<8x128xf32>
    %671 = arith.select %665, %669, %670 : vector<8x128xi1>, vector<8x128xf32>
    %672 = tpu.reciprocal %671 {approx = true} : vector<8x128xf32> -> vector<8x128xf32>
    %673 = arith.mulf %631, %672 : vector<8x128xf32>
    %674 = arith.subf %630, %628 : vector<8x128xf32>
    %675 = arith.mulf %673, %674 : vector<8x128xf32>
    %676 = arith.addf %628, %675 : vector<8x128xf32>
    %677 = arith.select %665, %676, %630 : vector<8x128xi1>, vector<8x128xf32>
    %678 = arith.select %666, %629, %94 : vector<8x128xi1>, vector<8x128xf32>
    %679 = arith.select %668, %676, %630 : vector<8x128xi1>, vector<8x128xf32>
    %680 = arith.select %664, %629, %94 : vector<8x128xi1>, vector<8x128xf32>
    %681 = arith.mulf %651, %677 : vector<8x128xf32>
    %682 = arith.mulf %678, %650 : vector<8x128xf32>
    %683 = arith.subf %681, %682 : vector<8x128xf32>
    %684 = arith.addf %563, %683 : vector<8x128xf32>
    %685 = arith.mulf %678, %679 : vector<8x128xf32>
    %686 = arith.mulf %680, %677 : vector<8x128xf32>
    %687 = arith.subf %685, %686 : vector<8x128xf32>
    %688 = arith.addf %567, %687 : vector<8x128xf32>
    %689 = arith.subf %608, %98 : vector<8x128xf32>
    %cst_136 = arith.constant 0.000000e+00 : f32
    %690 = vector.broadcast %cst_136 : f32 to vector<8x128xf32>
    %691 = arith.cmpf oge, %610, %690 : vector<8x128xf32>
    %cst_137 = arith.constant 0.000000e+00 : f32
    %692 = vector.broadcast %cst_137 : f32 to vector<8x128xf32>
    %693 = arith.cmpf oge, %689, %692 : vector<8x128xf32>
    %694 = arith.xori %691, %693 : vector<8x128xi1>
    %695 = arith.andi %691, %693 : vector<8x128xi1>
    %cst_138 = arith.constant dense<true> : vector<8x128xi1>
    %696 = arith.xori %693, %cst_138 : vector<8x128xi1>
    %697 = arith.andi %691, %696 : vector<8x128xi1>
    %698 = arith.subf %610, %689 : vector<8x128xf32>
    %cst_139 = arith.constant 1.000000e+00 : f32
    %699 = vector.broadcast %cst_139 : f32 to vector<8x128xf32>
    %700 = arith.select %694, %698, %699 : vector<8x128xi1>, vector<8x128xf32>
    %701 = tpu.reciprocal %700 {approx = true} : vector<8x128xf32> -> vector<8x128xf32>
    %702 = arith.mulf %610, %701 : vector<8x128xf32>
    %703 = arith.subf %609, %607 : vector<8x128xf32>
    %704 = arith.mulf %702, %703 : vector<8x128xf32>
    %705 = arith.addf %607, %704 : vector<8x128xf32>
    %706 = arith.select %694, %705, %609 : vector<8x128xi1>, vector<8x128xf32>
    %707 = arith.select %695, %608, %98 : vector<8x128xi1>, vector<8x128xf32>
    %708 = arith.select %697, %705, %609 : vector<8x128xi1>, vector<8x128xf32>
    %709 = arith.select %693, %608, %98 : vector<8x128xi1>, vector<8x128xf32>
    %710 = arith.subf %94, %706 : vector<8x128xf32>
    %cst_140 = arith.constant 0.000000e+00 : f32
    %711 = vector.broadcast %cst_140 : f32 to vector<8x128xf32>
    %712 = arith.cmpf oge, %660, %711 : vector<8x128xf32>
    %cst_141 = arith.constant 0.000000e+00 : f32
    %713 = vector.broadcast %cst_141 : f32 to vector<8x128xf32>
    %714 = arith.cmpf oge, %710, %713 : vector<8x128xf32>
    %715 = arith.xori %712, %714 : vector<8x128xi1>
    %716 = arith.andi %712, %714 : vector<8x128xi1>
    %cst_142 = arith.constant dense<true> : vector<8x128xi1>
    %717 = arith.xori %714, %cst_142 : vector<8x128xi1>
    %718 = arith.andi %712, %717 : vector<8x128xi1>
    %719 = arith.subf %660, %710 : vector<8x128xf32>
    %cst_143 = arith.constant 1.000000e+00 : f32
    %720 = vector.broadcast %cst_143 : f32 to vector<8x128xf32>
    %721 = arith.select %715, %719, %720 : vector<8x128xi1>, vector<8x128xf32>
    %722 = tpu.reciprocal %721 {approx = true} : vector<8x128xf32> -> vector<8x128xf32>
    %723 = arith.mulf %660, %722 : vector<8x128xf32>
    %724 = arith.subf %707, %630 : vector<8x128xf32>
    %725 = arith.mulf %723, %724 : vector<8x128xf32>
    %726 = arith.addf %630, %725 : vector<8x128xf32>
    %727 = arith.select %715, %726, %707 : vector<8x128xi1>, vector<8x128xf32>
    %728 = arith.select %716, %706, %94 : vector<8x128xi1>, vector<8x128xf32>
    %729 = arith.select %718, %726, %707 : vector<8x128xi1>, vector<8x128xf32>
    %730 = arith.select %714, %706, %94 : vector<8x128xi1>, vector<8x128xf32>
    %731 = arith.mulf %680, %727 : vector<8x128xf32>
    %732 = arith.mulf %728, %679 : vector<8x128xf32>
    %733 = arith.subf %731, %732 : vector<8x128xf32>
    %734 = arith.addf %655, %733 : vector<8x128xf32>
    %735 = arith.mulf %728, %729 : vector<8x128xf32>
    %736 = arith.mulf %730, %727 : vector<8x128xf32>
    %737 = arith.subf %735, %736 : vector<8x128xf32>
    %738 = arith.addf %659, %737 : vector<8x128xf32>
    %739 = arith.subf %94, %708 : vector<8x128xf32>
    %cst_144 = arith.constant 0.000000e+00 : f32
    %740 = vector.broadcast %cst_144 : f32 to vector<8x128xf32>
    %741 = arith.cmpf oge, %710, %740 : vector<8x128xf32>
    %cst_145 = arith.constant 0.000000e+00 : f32
    %742 = vector.broadcast %cst_145 : f32 to vector<8x128xf32>
    %743 = arith.cmpf oge, %739, %742 : vector<8x128xf32>
    %744 = arith.xori %741, %743 : vector<8x128xi1>
    %745 = arith.andi %741, %743 : vector<8x128xi1>
    %cst_146 = arith.constant dense<true> : vector<8x128xi1>
    %746 = arith.xori %743, %cst_146 : vector<8x128xi1>
    %747 = arith.andi %741, %746 : vector<8x128xi1>
    %748 = arith.subf %710, %739 : vector<8x128xf32>
    %cst_147 = arith.constant 1.000000e+00 : f32
    %749 = vector.broadcast %cst_147 : f32 to vector<8x128xf32>
    %750 = arith.select %744, %748, %749 : vector<8x128xi1>, vector<8x128xf32>
    %751 = tpu.reciprocal %750 {approx = true} : vector<8x128xf32> -> vector<8x128xf32>
    %752 = arith.mulf %710, %751 : vector<8x128xf32>
    %753 = arith.subf %709, %707 : vector<8x128xf32>
    %754 = arith.mulf %752, %753 : vector<8x128xf32>
    %755 = arith.addf %707, %754 : vector<8x128xf32>
    %756 = arith.select %744, %755, %709 : vector<8x128xi1>, vector<8x128xf32>
    %757 = arith.select %745, %708, %94 : vector<8x128xi1>, vector<8x128xf32>
    %758 = arith.select %747, %755, %709 : vector<8x128xi1>, vector<8x128xf32>
    %759 = arith.select %743, %708, %94 : vector<8x128xi1>, vector<8x128xf32>
    %760 = arith.mulf %730, %756 : vector<8x128xf32>
    %761 = arith.mulf %757, %729 : vector<8x128xf32>
    %762 = arith.subf %760, %761 : vector<8x128xf32>
    %763 = arith.addf %684, %762 : vector<8x128xf32>
    %764 = arith.mulf %757, %758 : vector<8x128xf32>
    %765 = arith.mulf %759, %756 : vector<8x128xf32>
    %766 = arith.subf %764, %765 : vector<8x128xf32>
    %767 = arith.addf %688, %766 : vector<8x128xf32>
    %768 = arith.subf %587, %100 : vector<8x128xf32>
    %cst_148 = arith.constant 0.000000e+00 : f32
    %769 = vector.broadcast %cst_148 : f32 to vector<8x128xf32>
    %770 = arith.cmpf oge, %589, %769 : vector<8x128xf32>
    %cst_149 = arith.constant 0.000000e+00 : f32
    %771 = vector.broadcast %cst_149 : f32 to vector<8x128xf32>
    %772 = arith.cmpf oge, %768, %771 : vector<8x128xf32>
    %773 = arith.xori %770, %772 : vector<8x128xi1>
    %774 = arith.andi %770, %772 : vector<8x128xi1>
    %cst_150 = arith.constant dense<true> : vector<8x128xi1>
    %775 = arith.xori %772, %cst_150 : vector<8x128xi1>
    %776 = arith.andi %770, %775 : vector<8x128xi1>
    %777 = arith.subf %589, %768 : vector<8x128xf32>
    %cst_151 = arith.constant 1.000000e+00 : f32
    %778 = vector.broadcast %cst_151 : f32 to vector<8x128xf32>
    %779 = arith.select %773, %777, %778 : vector<8x128xi1>, vector<8x128xf32>
    %780 = tpu.reciprocal %779 {approx = true} : vector<8x128xf32> -> vector<8x128xf32>
    %781 = arith.mulf %589, %780 : vector<8x128xf32>
    %782 = arith.subf %588, %586 : vector<8x128xf32>
    %783 = arith.mulf %781, %782 : vector<8x128xf32>
    %784 = arith.addf %586, %783 : vector<8x128xf32>
    %785 = arith.select %773, %784, %588 : vector<8x128xi1>, vector<8x128xf32>
    %786 = arith.select %774, %587, %100 : vector<8x128xi1>, vector<8x128xf32>
    %787 = arith.select %776, %784, %588 : vector<8x128xi1>, vector<8x128xf32>
    %788 = arith.select %772, %587, %100 : vector<8x128xi1>, vector<8x128xf32>
    %789 = arith.subf %785, %98 : vector<8x128xf32>
    %cst_152 = arith.constant 0.000000e+00 : f32
    %790 = vector.broadcast %cst_152 : f32 to vector<8x128xf32>
    %791 = arith.cmpf oge, %689, %790 : vector<8x128xf32>
    %cst_153 = arith.constant 0.000000e+00 : f32
    %792 = vector.broadcast %cst_153 : f32 to vector<8x128xf32>
    %793 = arith.cmpf oge, %789, %792 : vector<8x128xf32>
    %794 = arith.xori %791, %793 : vector<8x128xi1>
    %795 = arith.andi %791, %793 : vector<8x128xi1>
    %cst_154 = arith.constant dense<true> : vector<8x128xi1>
    %796 = arith.xori %793, %cst_154 : vector<8x128xi1>
    %797 = arith.andi %791, %796 : vector<8x128xi1>
    %798 = arith.subf %689, %789 : vector<8x128xf32>
    %cst_155 = arith.constant 1.000000e+00 : f32
    %799 = vector.broadcast %cst_155 : f32 to vector<8x128xf32>
    %800 = arith.select %794, %798, %799 : vector<8x128xi1>, vector<8x128xf32>
    %801 = tpu.reciprocal %800 {approx = true} : vector<8x128xf32> -> vector<8x128xf32>
    %802 = arith.mulf %689, %801 : vector<8x128xf32>
    %803 = arith.subf %786, %609 : vector<8x128xf32>
    %804 = arith.mulf %802, %803 : vector<8x128xf32>
    %805 = arith.addf %609, %804 : vector<8x128xf32>
    %806 = arith.select %794, %805, %786 : vector<8x128xi1>, vector<8x128xf32>
    %807 = arith.select %795, %785, %98 : vector<8x128xi1>, vector<8x128xf32>
    %808 = arith.select %797, %805, %786 : vector<8x128xi1>, vector<8x128xf32>
    %809 = arith.select %793, %785, %98 : vector<8x128xi1>, vector<8x128xf32>
    %810 = arith.subf %94, %806 : vector<8x128xf32>
    %cst_156 = arith.constant 0.000000e+00 : f32
    %811 = vector.broadcast %cst_156 : f32 to vector<8x128xf32>
    %812 = arith.cmpf oge, %739, %811 : vector<8x128xf32>
    %cst_157 = arith.constant 0.000000e+00 : f32
    %813 = vector.broadcast %cst_157 : f32 to vector<8x128xf32>
    %814 = arith.cmpf oge, %810, %813 : vector<8x128xf32>
    %815 = arith.xori %812, %814 : vector<8x128xi1>
    %816 = arith.andi %812, %814 : vector<8x128xi1>
    %cst_158 = arith.constant dense<true> : vector<8x128xi1>
    %817 = arith.xori %814, %cst_158 : vector<8x128xi1>
    %818 = arith.andi %812, %817 : vector<8x128xi1>
    %819 = arith.subf %739, %810 : vector<8x128xf32>
    %cst_159 = arith.constant 1.000000e+00 : f32
    %820 = vector.broadcast %cst_159 : f32 to vector<8x128xf32>
    %821 = arith.select %815, %819, %820 : vector<8x128xi1>, vector<8x128xf32>
    %822 = tpu.reciprocal %821 {approx = true} : vector<8x128xf32> -> vector<8x128xf32>
    %823 = arith.mulf %739, %822 : vector<8x128xf32>
    %824 = arith.subf %807, %709 : vector<8x128xf32>
    %825 = arith.mulf %823, %824 : vector<8x128xf32>
    %826 = arith.addf %709, %825 : vector<8x128xf32>
    %827 = arith.select %815, %826, %807 : vector<8x128xi1>, vector<8x128xf32>
    %828 = arith.select %816, %806, %94 : vector<8x128xi1>, vector<8x128xf32>
    %829 = arith.select %818, %826, %807 : vector<8x128xi1>, vector<8x128xf32>
    %830 = arith.select %814, %806, %94 : vector<8x128xi1>, vector<8x128xf32>
    %831 = arith.mulf %759, %827 : vector<8x128xf32>
    %832 = arith.mulf %828, %758 : vector<8x128xf32>
    %833 = arith.subf %831, %832 : vector<8x128xf32>
    %834 = arith.addf %734, %833 : vector<8x128xf32>
    %835 = arith.mulf %828, %829 : vector<8x128xf32>
    %836 = arith.mulf %830, %827 : vector<8x128xf32>
    %837 = arith.subf %835, %836 : vector<8x128xf32>
    %838 = arith.addf %738, %837 : vector<8x128xf32>
    %839 = arith.subf %94, %808 : vector<8x128xf32>
    %cst_160 = arith.constant 0.000000e+00 : f32
    %840 = vector.broadcast %cst_160 : f32 to vector<8x128xf32>
    %841 = arith.cmpf oge, %810, %840 : vector<8x128xf32>
    %cst_161 = arith.constant 0.000000e+00 : f32
    %842 = vector.broadcast %cst_161 : f32 to vector<8x128xf32>
    %843 = arith.cmpf oge, %839, %842 : vector<8x128xf32>
    %844 = arith.xori %841, %843 : vector<8x128xi1>
    %845 = arith.andi %841, %843 : vector<8x128xi1>
    %cst_162 = arith.constant dense<true> : vector<8x128xi1>
    %846 = arith.xori %843, %cst_162 : vector<8x128xi1>
    %847 = arith.andi %841, %846 : vector<8x128xi1>
    %848 = arith.subf %810, %839 : vector<8x128xf32>
    %cst_163 = arith.constant 1.000000e+00 : f32
    %849 = vector.broadcast %cst_163 : f32 to vector<8x128xf32>
    %850 = arith.select %844, %848, %849 : vector<8x128xi1>, vector<8x128xf32>
    %851 = tpu.reciprocal %850 {approx = true} : vector<8x128xf32> -> vector<8x128xf32>
    %852 = arith.mulf %810, %851 : vector<8x128xf32>
    %853 = arith.subf %809, %807 : vector<8x128xf32>
    %854 = arith.mulf %852, %853 : vector<8x128xf32>
    %855 = arith.addf %807, %854 : vector<8x128xf32>
    %856 = arith.select %844, %855, %809 : vector<8x128xi1>, vector<8x128xf32>
    %857 = arith.select %845, %808, %94 : vector<8x128xi1>, vector<8x128xf32>
    %858 = arith.select %847, %855, %809 : vector<8x128xi1>, vector<8x128xf32>
    %859 = arith.select %843, %808, %94 : vector<8x128xi1>, vector<8x128xf32>
    %860 = arith.mulf %830, %856 : vector<8x128xf32>
    %861 = arith.mulf %857, %829 : vector<8x128xf32>
    %862 = arith.subf %860, %861 : vector<8x128xf32>
    %863 = arith.addf %763, %862 : vector<8x128xf32>
    %864 = arith.mulf %857, %858 : vector<8x128xf32>
    %865 = arith.mulf %859, %856 : vector<8x128xf32>
    %866 = arith.subf %864, %865 : vector<8x128xf32>
    %867 = arith.addf %767, %866 : vector<8x128xf32>
    %868 = arith.subf %787, %98 : vector<8x128xf32>
    %cst_164 = arith.constant 0.000000e+00 : f32
    %869 = vector.broadcast %cst_164 : f32 to vector<8x128xf32>
    %870 = arith.cmpf oge, %789, %869 : vector<8x128xf32>
    %cst_165 = arith.constant 0.000000e+00 : f32
    %871 = vector.broadcast %cst_165 : f32 to vector<8x128xf32>
    %872 = arith.cmpf oge, %868, %871 : vector<8x128xf32>
    %873 = arith.xori %870, %872 : vector<8x128xi1>
    %874 = arith.andi %870, %872 : vector<8x128xi1>
    %cst_166 = arith.constant dense<true> : vector<8x128xi1>
    %875 = arith.xori %872, %cst_166 : vector<8x128xi1>
    %876 = arith.andi %870, %875 : vector<8x128xi1>
    %877 = arith.subf %789, %868 : vector<8x128xf32>
    %cst_167 = arith.constant 1.000000e+00 : f32
    %878 = vector.broadcast %cst_167 : f32 to vector<8x128xf32>
    %879 = arith.select %873, %877, %878 : vector<8x128xi1>, vector<8x128xf32>
    %880 = tpu.reciprocal %879 {approx = true} : vector<8x128xf32> -> vector<8x128xf32>
    %881 = arith.mulf %789, %880 : vector<8x128xf32>
    %882 = arith.subf %788, %786 : vector<8x128xf32>
    %883 = arith.mulf %881, %882 : vector<8x128xf32>
    %884 = arith.addf %786, %883 : vector<8x128xf32>
    %885 = arith.select %873, %884, %788 : vector<8x128xi1>, vector<8x128xf32>
    %886 = arith.select %874, %787, %98 : vector<8x128xi1>, vector<8x128xf32>
    %887 = arith.select %876, %884, %788 : vector<8x128xi1>, vector<8x128xf32>
    %888 = arith.select %872, %787, %98 : vector<8x128xi1>, vector<8x128xf32>
    %889 = arith.subf %94, %885 : vector<8x128xf32>
    %cst_168 = arith.constant 0.000000e+00 : f32
    %890 = vector.broadcast %cst_168 : f32 to vector<8x128xf32>
    %891 = arith.cmpf oge, %839, %890 : vector<8x128xf32>
    %cst_169 = arith.constant 0.000000e+00 : f32
    %892 = vector.broadcast %cst_169 : f32 to vector<8x128xf32>
    %893 = arith.cmpf oge, %889, %892 : vector<8x128xf32>
    %894 = arith.xori %891, %893 : vector<8x128xi1>
    %895 = arith.andi %891, %893 : vector<8x128xi1>
    %cst_170 = arith.constant dense<true> : vector<8x128xi1>
    %896 = arith.xori %893, %cst_170 : vector<8x128xi1>
    %897 = arith.andi %891, %896 : vector<8x128xi1>
    %898 = arith.subf %839, %889 : vector<8x128xf32>
    %cst_171 = arith.constant 1.000000e+00 : f32
    %899 = vector.broadcast %cst_171 : f32 to vector<8x128xf32>
    %900 = arith.select %894, %898, %899 : vector<8x128xi1>, vector<8x128xf32>
    %901 = tpu.reciprocal %900 {approx = true} : vector<8x128xf32> -> vector<8x128xf32>
    %902 = arith.mulf %839, %901 : vector<8x128xf32>
    %903 = arith.subf %886, %809 : vector<8x128xf32>
    %904 = arith.mulf %902, %903 : vector<8x128xf32>
    %905 = arith.addf %809, %904 : vector<8x128xf32>
    %906 = arith.select %894, %905, %886 : vector<8x128xi1>, vector<8x128xf32>
    %907 = arith.select %895, %885, %94 : vector<8x128xi1>, vector<8x128xf32>
    %908 = arith.select %897, %905, %886 : vector<8x128xi1>, vector<8x128xf32>
    %909 = arith.select %893, %885, %94 : vector<8x128xi1>, vector<8x128xf32>
    %910 = arith.mulf %859, %906 : vector<8x128xf32>
    %911 = arith.mulf %907, %858 : vector<8x128xf32>
    %912 = arith.subf %910, %911 : vector<8x128xf32>
    %913 = arith.addf %834, %912 : vector<8x128xf32>
    %914 = arith.mulf %907, %908 : vector<8x128xf32>
    %915 = arith.mulf %909, %906 : vector<8x128xf32>
    %916 = arith.subf %914, %915 : vector<8x128xf32>
    %917 = arith.addf %838, %916 : vector<8x128xf32>
    %918 = arith.subf %94, %887 : vector<8x128xf32>
    %cst_172 = arith.constant 0.000000e+00 : f32
    %919 = vector.broadcast %cst_172 : f32 to vector<8x128xf32>
    %920 = arith.cmpf oge, %889, %919 : vector<8x128xf32>
    %cst_173 = arith.constant 0.000000e+00 : f32
    %921 = vector.broadcast %cst_173 : f32 to vector<8x128xf32>
    %922 = arith.cmpf oge, %918, %921 : vector<8x128xf32>
    %923 = arith.xori %920, %922 : vector<8x128xi1>
    %924 = arith.andi %920, %922 : vector<8x128xi1>
    %cst_174 = arith.constant dense<true> : vector<8x128xi1>
    %925 = arith.xori %922, %cst_174 : vector<8x128xi1>
    %926 = arith.andi %920, %925 : vector<8x128xi1>
    %927 = arith.subf %889, %918 : vector<8x128xf32>
    %cst_175 = arith.constant 1.000000e+00 : f32
    %928 = vector.broadcast %cst_175 : f32 to vector<8x128xf32>
    %929 = arith.select %923, %927, %928 : vector<8x128xi1>, vector<8x128xf32>
    %930 = tpu.reciprocal %929 {approx = true} : vector<8x128xf32> -> vector<8x128xf32>
    %931 = arith.mulf %889, %930 : vector<8x128xf32>
    %932 = arith.subf %888, %886 : vector<8x128xf32>
    %933 = arith.mulf %931, %932 : vector<8x128xf32>
    %934 = arith.addf %886, %933 : vector<8x128xf32>
    %935 = arith.select %923, %934, %888 : vector<8x128xi1>, vector<8x128xf32>
    %936 = arith.select %924, %887, %94 : vector<8x128xi1>, vector<8x128xf32>
    %937 = arith.select %926, %934, %888 : vector<8x128xi1>, vector<8x128xf32>
    %938 = arith.select %922, %887, %94 : vector<8x128xi1>, vector<8x128xf32>
    %939 = arith.mulf %909, %935 : vector<8x128xf32>
    %940 = arith.mulf %936, %908 : vector<8x128xf32>
    %941 = arith.subf %939, %940 : vector<8x128xf32>
    %942 = arith.addf %863, %941 : vector<8x128xf32>
    %943 = arith.mulf %936, %937 : vector<8x128xf32>
    %944 = arith.mulf %938, %935 : vector<8x128xf32>
    %945 = arith.subf %943, %944 : vector<8x128xf32>
    %946 = arith.addf %867, %945 : vector<8x128xf32>
    %cst_176 = arith.constant 0.000000e+00 : f32
    %947 = vector.broadcast %cst_176 : f32 to vector<8x128xf32>
    %948 = arith.cmpf oge, %568, %947 : vector<8x128xf32>
    %cst_177 = arith.constant 0.000000e+00 : f32
    %949 = vector.broadcast %cst_177 : f32 to vector<8x128xf32>
    %950 = arith.cmpf oge, %101, %949 : vector<8x128xf32>
    %951 = arith.xori %948, %950 : vector<8x128xi1>
    %952 = arith.andi %948, %950 : vector<8x128xi1>
    %cst_178 = arith.constant dense<true> : vector<8x128xi1>
    %953 = arith.xori %950, %cst_178 : vector<8x128xi1>
    %954 = arith.andi %948, %953 : vector<8x128xi1>
    %955 = arith.subf %568, %101 : vector<8x128xf32>
    %cst_179 = arith.constant 1.000000e+00 : f32
    %956 = vector.broadcast %cst_179 : f32 to vector<8x128xf32>
    %957 = arith.select %951, %955, %956 : vector<8x128xi1>, vector<8x128xf32>
    %958 = tpu.reciprocal %957 {approx = true} : vector<8x128xf32> -> vector<8x128xf32>
    %959 = arith.mulf %568, %958 : vector<8x128xf32>
    %960 = arith.subf %78, %90 : vector<8x128xf32>
    %961 = arith.mulf %959, %960 : vector<8x128xf32>
    %962 = arith.addf %90, %961 : vector<8x128xf32>
    %963 = arith.select %951, %962, %78 : vector<8x128xi1>, vector<8x128xf32>
    %964 = arith.select %952, %80, %96 : vector<8x128xi1>, vector<8x128xf32>
    %965 = arith.select %954, %962, %78 : vector<8x128xi1>, vector<8x128xf32>
    %966 = arith.select %950, %80, %96 : vector<8x128xi1>, vector<8x128xf32>
    %967 = arith.subf %963, %100 : vector<8x128xf32>
    %cst_180 = arith.constant 0.000000e+00 : f32
    %968 = vector.broadcast %cst_180 : f32 to vector<8x128xf32>
    %969 = arith.cmpf oge, %768, %968 : vector<8x128xf32>
    %cst_181 = arith.constant 0.000000e+00 : f32
    %970 = vector.broadcast %cst_181 : f32 to vector<8x128xf32>
    %971 = arith.cmpf oge, %967, %970 : vector<8x128xf32>
    %972 = arith.xori %969, %971 : vector<8x128xi1>
    %973 = arith.andi %969, %971 : vector<8x128xi1>
    %cst_182 = arith.constant dense<true> : vector<8x128xi1>
    %974 = arith.xori %971, %cst_182 : vector<8x128xi1>
    %975 = arith.andi %969, %974 : vector<8x128xi1>
    %976 = arith.subf %768, %967 : vector<8x128xf32>
    %cst_183 = arith.constant 1.000000e+00 : f32
    %977 = vector.broadcast %cst_183 : f32 to vector<8x128xf32>
    %978 = arith.select %972, %976, %977 : vector<8x128xi1>, vector<8x128xf32>
    %979 = tpu.reciprocal %978 {approx = true} : vector<8x128xf32> -> vector<8x128xf32>
    %980 = arith.mulf %768, %979 : vector<8x128xf32>
    %981 = arith.subf %964, %588 : vector<8x128xf32>
    %982 = arith.mulf %980, %981 : vector<8x128xf32>
    %983 = arith.addf %588, %982 : vector<8x128xf32>
    %984 = arith.select %972, %983, %964 : vector<8x128xi1>, vector<8x128xf32>
    %985 = arith.select %973, %963, %100 : vector<8x128xi1>, vector<8x128xf32>
    %986 = arith.select %975, %983, %964 : vector<8x128xi1>, vector<8x128xf32>
    %987 = arith.select %971, %963, %100 : vector<8x128xi1>, vector<8x128xf32>
    %988 = arith.subf %984, %98 : vector<8x128xf32>
    %cst_184 = arith.constant 0.000000e+00 : f32
    %989 = vector.broadcast %cst_184 : f32 to vector<8x128xf32>
    %990 = arith.cmpf oge, %868, %989 : vector<8x128xf32>
    %cst_185 = arith.constant 0.000000e+00 : f32
    %991 = vector.broadcast %cst_185 : f32 to vector<8x128xf32>
    %992 = arith.cmpf oge, %988, %991 : vector<8x128xf32>
    %993 = arith.xori %990, %992 : vector<8x128xi1>
    %994 = arith.andi %990, %992 : vector<8x128xi1>
    %cst_186 = arith.constant dense<true> : vector<8x128xi1>
    %995 = arith.xori %992, %cst_186 : vector<8x128xi1>
    %996 = arith.andi %990, %995 : vector<8x128xi1>
    %997 = arith.subf %868, %988 : vector<8x128xf32>
    %cst_187 = arith.constant 1.000000e+00 : f32
    %998 = vector.broadcast %cst_187 : f32 to vector<8x128xf32>
    %999 = arith.select %993, %997, %998 : vector<8x128xi1>, vector<8x128xf32>
    %1000 = tpu.reciprocal %999 {approx = true} : vector<8x128xf32> -> vector<8x128xf32>
    %1001 = arith.mulf %868, %1000 : vector<8x128xf32>
    %1002 = arith.subf %985, %788 : vector<8x128xf32>
    %1003 = arith.mulf %1001, %1002 : vector<8x128xf32>
    %1004 = arith.addf %788, %1003 : vector<8x128xf32>
    %1005 = arith.select %993, %1004, %985 : vector<8x128xi1>, vector<8x128xf32>
    %1006 = arith.select %994, %984, %98 : vector<8x128xi1>, vector<8x128xf32>
    %1007 = arith.select %996, %1004, %985 : vector<8x128xi1>, vector<8x128xf32>
    %1008 = arith.select %992, %984, %98 : vector<8x128xi1>, vector<8x128xf32>
    %1009 = arith.subf %94, %1005 : vector<8x128xf32>
    %cst_188 = arith.constant 0.000000e+00 : f32
    %1010 = vector.broadcast %cst_188 : f32 to vector<8x128xf32>
    %1011 = arith.cmpf oge, %918, %1010 : vector<8x128xf32>
    %cst_189 = arith.constant 0.000000e+00 : f32
    %1012 = vector.broadcast %cst_189 : f32 to vector<8x128xf32>
    %1013 = arith.cmpf oge, %1009, %1012 : vector<8x128xf32>
    %1014 = arith.xori %1011, %1013 : vector<8x128xi1>
    %1015 = arith.andi %1011, %1013 : vector<8x128xi1>
    %cst_190 = arith.constant dense<true> : vector<8x128xi1>
    %1016 = arith.xori %1013, %cst_190 : vector<8x128xi1>
    %1017 = arith.andi %1011, %1016 : vector<8x128xi1>
    %1018 = arith.subf %918, %1009 : vector<8x128xf32>
    %cst_191 = arith.constant 1.000000e+00 : f32
    %1019 = vector.broadcast %cst_191 : f32 to vector<8x128xf32>
    %1020 = arith.select %1014, %1018, %1019 : vector<8x128xi1>, vector<8x128xf32>
    %1021 = tpu.reciprocal %1020 {approx = true} : vector<8x128xf32> -> vector<8x128xf32>
    %1022 = arith.mulf %918, %1021 : vector<8x128xf32>
    %1023 = arith.subf %1006, %888 : vector<8x128xf32>
    %1024 = arith.mulf %1022, %1023 : vector<8x128xf32>
    %1025 = arith.addf %888, %1024 : vector<8x128xf32>
    %1026 = arith.select %1014, %1025, %1006 : vector<8x128xi1>, vector<8x128xf32>
    %1027 = arith.select %1015, %1005, %94 : vector<8x128xi1>, vector<8x128xf32>
    %1028 = arith.select %1017, %1025, %1006 : vector<8x128xi1>, vector<8x128xf32>
    %1029 = arith.select %1013, %1005, %94 : vector<8x128xi1>, vector<8x128xf32>
    %1030 = arith.mulf %938, %1026 : vector<8x128xf32>
    %1031 = arith.mulf %1027, %937 : vector<8x128xf32>
    %1032 = arith.subf %1030, %1031 : vector<8x128xf32>
    %1033 = arith.addf %913, %1032 : vector<8x128xf32>
    %1034 = arith.mulf %1027, %1028 : vector<8x128xf32>
    %1035 = arith.mulf %1029, %1026 : vector<8x128xf32>
    %1036 = arith.subf %1034, %1035 : vector<8x128xf32>
    %1037 = arith.addf %917, %1036 : vector<8x128xf32>
    %1038 = arith.subf %94, %1007 : vector<8x128xf32>
    %cst_192 = arith.constant 0.000000e+00 : f32
    %1039 = vector.broadcast %cst_192 : f32 to vector<8x128xf32>
    %1040 = arith.cmpf oge, %1009, %1039 : vector<8x128xf32>
    %cst_193 = arith.constant 0.000000e+00 : f32
    %1041 = vector.broadcast %cst_193 : f32 to vector<8x128xf32>
    %1042 = arith.cmpf oge, %1038, %1041 : vector<8x128xf32>
    %1043 = arith.xori %1040, %1042 : vector<8x128xi1>
    %1044 = arith.andi %1040, %1042 : vector<8x128xi1>
    %cst_194 = arith.constant dense<true> : vector<8x128xi1>
    %1045 = arith.xori %1042, %cst_194 : vector<8x128xi1>
    %1046 = arith.andi %1040, %1045 : vector<8x128xi1>
    %1047 = arith.subf %1009, %1038 : vector<8x128xf32>
    %cst_195 = arith.constant 1.000000e+00 : f32
    %1048 = vector.broadcast %cst_195 : f32 to vector<8x128xf32>
    %1049 = arith.select %1043, %1047, %1048 : vector<8x128xi1>, vector<8x128xf32>
    %1050 = tpu.reciprocal %1049 {approx = true} : vector<8x128xf32> -> vector<8x128xf32>
    %1051 = arith.mulf %1009, %1050 : vector<8x128xf32>
    %1052 = arith.subf %1008, %1006 : vector<8x128xf32>
    %1053 = arith.mulf %1051, %1052 : vector<8x128xf32>
    %1054 = arith.addf %1006, %1053 : vector<8x128xf32>
    %1055 = arith.select %1043, %1054, %1008 : vector<8x128xi1>, vector<8x128xf32>
    %1056 = arith.select %1044, %1007, %94 : vector<8x128xi1>, vector<8x128xf32>
    %1057 = arith.select %1046, %1054, %1008 : vector<8x128xi1>, vector<8x128xf32>
    %1058 = arith.select %1042, %1007, %94 : vector<8x128xi1>, vector<8x128xf32>
    %1059 = arith.mulf %1029, %1055 : vector<8x128xf32>
    %1060 = arith.mulf %1056, %1028 : vector<8x128xf32>
    %1061 = arith.subf %1059, %1060 : vector<8x128xf32>
    %1062 = arith.addf %942, %1061 : vector<8x128xf32>
    %1063 = arith.mulf %1056, %1057 : vector<8x128xf32>
    %1064 = arith.mulf %1058, %1055 : vector<8x128xf32>
    %1065 = arith.subf %1063, %1064 : vector<8x128xf32>
    %1066 = arith.addf %946, %1065 : vector<8x128xf32>
    %1067 = arith.subf %986, %98 : vector<8x128xf32>
    %cst_196 = arith.constant 0.000000e+00 : f32
    %1068 = vector.broadcast %cst_196 : f32 to vector<8x128xf32>
    %1069 = arith.cmpf oge, %988, %1068 : vector<8x128xf32>
    %cst_197 = arith.constant 0.000000e+00 : f32
    %1070 = vector.broadcast %cst_197 : f32 to vector<8x128xf32>
    %1071 = arith.cmpf oge, %1067, %1070 : vector<8x128xf32>
    %1072 = arith.xori %1069, %1071 : vector<8x128xi1>
    %1073 = arith.andi %1069, %1071 : vector<8x128xi1>
    %cst_198 = arith.constant dense<true> : vector<8x128xi1>
    %1074 = arith.xori %1071, %cst_198 : vector<8x128xi1>
    %1075 = arith.andi %1069, %1074 : vector<8x128xi1>
    %1076 = arith.subf %988, %1067 : vector<8x128xf32>
    %cst_199 = arith.constant 1.000000e+00 : f32
    %1077 = vector.broadcast %cst_199 : f32 to vector<8x128xf32>
    %1078 = arith.select %1072, %1076, %1077 : vector<8x128xi1>, vector<8x128xf32>
    %1079 = tpu.reciprocal %1078 {approx = true} : vector<8x128xf32> -> vector<8x128xf32>
    %1080 = arith.mulf %988, %1079 : vector<8x128xf32>
    %1081 = arith.subf %987, %985 : vector<8x128xf32>
    %1082 = arith.mulf %1080, %1081 : vector<8x128xf32>
    %1083 = arith.addf %985, %1082 : vector<8x128xf32>
    %1084 = arith.select %1072, %1083, %987 : vector<8x128xi1>, vector<8x128xf32>
    %1085 = arith.select %1073, %986, %98 : vector<8x128xi1>, vector<8x128xf32>
    %1086 = arith.select %1075, %1083, %987 : vector<8x128xi1>, vector<8x128xf32>
    %1087 = arith.select %1071, %986, %98 : vector<8x128xi1>, vector<8x128xf32>
    %1088 = arith.subf %94, %1084 : vector<8x128xf32>
    %cst_200 = arith.constant 0.000000e+00 : f32
    %1089 = vector.broadcast %cst_200 : f32 to vector<8x128xf32>
    %1090 = arith.cmpf oge, %1038, %1089 : vector<8x128xf32>
    %cst_201 = arith.constant 0.000000e+00 : f32
    %1091 = vector.broadcast %cst_201 : f32 to vector<8x128xf32>
    %1092 = arith.cmpf oge, %1088, %1091 : vector<8x128xf32>
    %1093 = arith.xori %1090, %1092 : vector<8x128xi1>
    %1094 = arith.andi %1090, %1092 : vector<8x128xi1>
    %cst_202 = arith.constant dense<true> : vector<8x128xi1>
    %1095 = arith.xori %1092, %cst_202 : vector<8x128xi1>
    %1096 = arith.andi %1090, %1095 : vector<8x128xi1>
    %1097 = arith.subf %1038, %1088 : vector<8x128xf32>
    %cst_203 = arith.constant 1.000000e+00 : f32
    %1098 = vector.broadcast %cst_203 : f32 to vector<8x128xf32>
    %1099 = arith.select %1093, %1097, %1098 : vector<8x128xi1>, vector<8x128xf32>
    %1100 = tpu.reciprocal %1099 {approx = true} : vector<8x128xf32> -> vector<8x128xf32>
    %1101 = arith.mulf %1038, %1100 : vector<8x128xf32>
    %1102 = arith.subf %1085, %1008 : vector<8x128xf32>
    %1103 = arith.mulf %1101, %1102 : vector<8x128xf32>
    %1104 = arith.addf %1008, %1103 : vector<8x128xf32>
    %1105 = arith.select %1093, %1104, %1085 : vector<8x128xi1>, vector<8x128xf32>
    %1106 = arith.select %1094, %1084, %94 : vector<8x128xi1>, vector<8x128xf32>
    %1107 = arith.select %1096, %1104, %1085 : vector<8x128xi1>, vector<8x128xf32>
    %1108 = arith.select %1092, %1084, %94 : vector<8x128xi1>, vector<8x128xf32>
    %1109 = arith.mulf %1058, %1105 : vector<8x128xf32>
    %1110 = arith.mulf %1106, %1057 : vector<8x128xf32>
    %1111 = arith.subf %1109, %1110 : vector<8x128xf32>
    %1112 = arith.addf %1033, %1111 : vector<8x128xf32>
    %1113 = arith.mulf %1106, %1107 : vector<8x128xf32>
    %1114 = arith.mulf %1108, %1105 : vector<8x128xf32>
    %1115 = arith.subf %1113, %1114 : vector<8x128xf32>
    %1116 = arith.addf %1037, %1115 : vector<8x128xf32>
    %1117 = arith.subf %94, %1086 : vector<8x128xf32>
    %cst_204 = arith.constant 0.000000e+00 : f32
    %1118 = vector.broadcast %cst_204 : f32 to vector<8x128xf32>
    %1119 = arith.cmpf oge, %1088, %1118 : vector<8x128xf32>
    %cst_205 = arith.constant 0.000000e+00 : f32
    %1120 = vector.broadcast %cst_205 : f32 to vector<8x128xf32>
    %1121 = arith.cmpf oge, %1117, %1120 : vector<8x128xf32>
    %1122 = arith.xori %1119, %1121 : vector<8x128xi1>
    %1123 = arith.andi %1119, %1121 : vector<8x128xi1>
    %cst_206 = arith.constant dense<true> : vector<8x128xi1>
    %1124 = arith.xori %1121, %cst_206 : vector<8x128xi1>
    %1125 = arith.andi %1119, %1124 : vector<8x128xi1>
    %1126 = arith.subf %1088, %1117 : vector<8x128xf32>
    %cst_207 = arith.constant 1.000000e+00 : f32
    %1127 = vector.broadcast %cst_207 : f32 to vector<8x128xf32>
    %1128 = arith.select %1122, %1126, %1127 : vector<8x128xi1>, vector<8x128xf32>
    %1129 = tpu.reciprocal %1128 {approx = true} : vector<8x128xf32> -> vector<8x128xf32>
    %1130 = arith.mulf %1088, %1129 : vector<8x128xf32>
    %1131 = arith.subf %1087, %1085 : vector<8x128xf32>
    %1132 = arith.mulf %1130, %1131 : vector<8x128xf32>
    %1133 = arith.addf %1085, %1132 : vector<8x128xf32>
    %1134 = arith.select %1122, %1133, %1087 : vector<8x128xi1>, vector<8x128xf32>
    %1135 = arith.select %1123, %1086, %94 : vector<8x128xi1>, vector<8x128xf32>
    %1136 = arith.select %1125, %1133, %1087 : vector<8x128xi1>, vector<8x128xf32>
    %1137 = arith.select %1121, %1086, %94 : vector<8x128xi1>, vector<8x128xf32>
    %1138 = arith.mulf %1108, %1134 : vector<8x128xf32>
    %1139 = arith.mulf %1135, %1107 : vector<8x128xf32>
    %1140 = arith.subf %1138, %1139 : vector<8x128xf32>
    %1141 = arith.addf %1062, %1140 : vector<8x128xf32>
    %1142 = arith.mulf %1135, %1136 : vector<8x128xf32>
    %1143 = arith.mulf %1137, %1134 : vector<8x128xf32>
    %1144 = arith.subf %1142, %1143 : vector<8x128xf32>
    %1145 = arith.addf %1066, %1144 : vector<8x128xf32>
    %1146 = arith.subf %965, %100 : vector<8x128xf32>
    %cst_208 = arith.constant 0.000000e+00 : f32
    %1147 = vector.broadcast %cst_208 : f32 to vector<8x128xf32>
    %1148 = arith.cmpf oge, %967, %1147 : vector<8x128xf32>
    %cst_209 = arith.constant 0.000000e+00 : f32
    %1149 = vector.broadcast %cst_209 : f32 to vector<8x128xf32>
    %1150 = arith.cmpf oge, %1146, %1149 : vector<8x128xf32>
    %1151 = arith.xori %1148, %1150 : vector<8x128xi1>
    %1152 = arith.andi %1148, %1150 : vector<8x128xi1>
    %cst_210 = arith.constant dense<true> : vector<8x128xi1>
    %1153 = arith.xori %1150, %cst_210 : vector<8x128xi1>
    %1154 = arith.andi %1148, %1153 : vector<8x128xi1>
    %1155 = arith.subf %967, %1146 : vector<8x128xf32>
    %cst_211 = arith.constant 1.000000e+00 : f32
    %1156 = vector.broadcast %cst_211 : f32 to vector<8x128xf32>
    %1157 = arith.select %1151, %1155, %1156 : vector<8x128xi1>, vector<8x128xf32>
    %1158 = tpu.reciprocal %1157 {approx = true} : vector<8x128xf32> -> vector<8x128xf32>
    %1159 = arith.mulf %967, %1158 : vector<8x128xf32>
    %1160 = arith.subf %966, %964 : vector<8x128xf32>
    %1161 = arith.mulf %1159, %1160 : vector<8x128xf32>
    %1162 = arith.addf %964, %1161 : vector<8x128xf32>
    %1163 = arith.select %1151, %1162, %966 : vector<8x128xi1>, vector<8x128xf32>
    %1164 = arith.select %1152, %965, %100 : vector<8x128xi1>, vector<8x128xf32>
    %1165 = arith.select %1154, %1162, %966 : vector<8x128xi1>, vector<8x128xf32>
    %1166 = arith.select %1150, %965, %100 : vector<8x128xi1>, vector<8x128xf32>
    %1167 = arith.subf %1163, %98 : vector<8x128xf32>
    %cst_212 = arith.constant 0.000000e+00 : f32
    %1168 = vector.broadcast %cst_212 : f32 to vector<8x128xf32>
    %1169 = arith.cmpf oge, %1067, %1168 : vector<8x128xf32>
    %cst_213 = arith.constant 0.000000e+00 : f32
    %1170 = vector.broadcast %cst_213 : f32 to vector<8x128xf32>
    %1171 = arith.cmpf oge, %1167, %1170 : vector<8x128xf32>
    %1172 = arith.xori %1169, %1171 : vector<8x128xi1>
    %1173 = arith.andi %1169, %1171 : vector<8x128xi1>
    %cst_214 = arith.constant dense<true> : vector<8x128xi1>
    %1174 = arith.xori %1171, %cst_214 : vector<8x128xi1>
    %1175 = arith.andi %1169, %1174 : vector<8x128xi1>
    %1176 = arith.subf %1067, %1167 : vector<8x128xf32>
    %cst_215 = arith.constant 1.000000e+00 : f32
    %1177 = vector.broadcast %cst_215 : f32 to vector<8x128xf32>
    %1178 = arith.select %1172, %1176, %1177 : vector<8x128xi1>, vector<8x128xf32>
    %1179 = tpu.reciprocal %1178 {approx = true} : vector<8x128xf32> -> vector<8x128xf32>
    %1180 = arith.mulf %1067, %1179 : vector<8x128xf32>
    %1181 = arith.subf %1164, %987 : vector<8x128xf32>
    %1182 = arith.mulf %1180, %1181 : vector<8x128xf32>
    %1183 = arith.addf %987, %1182 : vector<8x128xf32>
    %1184 = arith.select %1172, %1183, %1164 : vector<8x128xi1>, vector<8x128xf32>
    %1185 = arith.select %1173, %1163, %98 : vector<8x128xi1>, vector<8x128xf32>
    %1186 = arith.select %1175, %1183, %1164 : vector<8x128xi1>, vector<8x128xf32>
    %1187 = arith.select %1171, %1163, %98 : vector<8x128xi1>, vector<8x128xf32>
    %1188 = arith.subf %94, %1184 : vector<8x128xf32>
    %cst_216 = arith.constant 0.000000e+00 : f32
    %1189 = vector.broadcast %cst_216 : f32 to vector<8x128xf32>
    %1190 = arith.cmpf oge, %1117, %1189 : vector<8x128xf32>
    %cst_217 = arith.constant 0.000000e+00 : f32
    %1191 = vector.broadcast %cst_217 : f32 to vector<8x128xf32>
    %1192 = arith.cmpf oge, %1188, %1191 : vector<8x128xf32>
    %1193 = arith.xori %1190, %1192 : vector<8x128xi1>
    %1194 = arith.andi %1190, %1192 : vector<8x128xi1>
    %cst_218 = arith.constant dense<true> : vector<8x128xi1>
    %1195 = arith.xori %1192, %cst_218 : vector<8x128xi1>
    %1196 = arith.andi %1190, %1195 : vector<8x128xi1>
    %1197 = arith.subf %1117, %1188 : vector<8x128xf32>
    %cst_219 = arith.constant 1.000000e+00 : f32
    %1198 = vector.broadcast %cst_219 : f32 to vector<8x128xf32>
    %1199 = arith.select %1193, %1197, %1198 : vector<8x128xi1>, vector<8x128xf32>
    %1200 = tpu.reciprocal %1199 {approx = true} : vector<8x128xf32> -> vector<8x128xf32>
    %1201 = arith.mulf %1117, %1200 : vector<8x128xf32>
    %1202 = arith.subf %1185, %1087 : vector<8x128xf32>
    %1203 = arith.mulf %1201, %1202 : vector<8x128xf32>
    %1204 = arith.addf %1087, %1203 : vector<8x128xf32>
    %1205 = arith.select %1193, %1204, %1185 : vector<8x128xi1>, vector<8x128xf32>
    %1206 = arith.select %1194, %1184, %94 : vector<8x128xi1>, vector<8x128xf32>
    %1207 = arith.select %1196, %1204, %1185 : vector<8x128xi1>, vector<8x128xf32>
    %1208 = arith.select %1192, %1184, %94 : vector<8x128xi1>, vector<8x128xf32>
    %1209 = arith.mulf %1137, %1205 : vector<8x128xf32>
    %1210 = arith.mulf %1206, %1136 : vector<8x128xf32>
    %1211 = arith.subf %1209, %1210 : vector<8x128xf32>
    %1212 = arith.addf %1112, %1211 : vector<8x128xf32>
    %1213 = arith.mulf %1206, %1207 : vector<8x128xf32>
    %1214 = arith.mulf %1208, %1205 : vector<8x128xf32>
    %1215 = arith.subf %1213, %1214 : vector<8x128xf32>
    %1216 = arith.addf %1116, %1215 : vector<8x128xf32>
    %1217 = arith.subf %94, %1186 : vector<8x128xf32>
    %cst_220 = arith.constant 0.000000e+00 : f32
    %1218 = vector.broadcast %cst_220 : f32 to vector<8x128xf32>
    %1219 = arith.cmpf oge, %1188, %1218 : vector<8x128xf32>
    %cst_221 = arith.constant 0.000000e+00 : f32
    %1220 = vector.broadcast %cst_221 : f32 to vector<8x128xf32>
    %1221 = arith.cmpf oge, %1217, %1220 : vector<8x128xf32>
    %1222 = arith.xori %1219, %1221 : vector<8x128xi1>
    %1223 = arith.andi %1219, %1221 : vector<8x128xi1>
    %cst_222 = arith.constant dense<true> : vector<8x128xi1>
    %1224 = arith.xori %1221, %cst_222 : vector<8x128xi1>
    %1225 = arith.andi %1219, %1224 : vector<8x128xi1>
    %1226 = arith.subf %1188, %1217 : vector<8x128xf32>
    %cst_223 = arith.constant 1.000000e+00 : f32
    %1227 = vector.broadcast %cst_223 : f32 to vector<8x128xf32>
    %1228 = arith.select %1222, %1226, %1227 : vector<8x128xi1>, vector<8x128xf32>
    %1229 = tpu.reciprocal %1228 {approx = true} : vector<8x128xf32> -> vector<8x128xf32>
    %1230 = arith.mulf %1188, %1229 : vector<8x128xf32>
    %1231 = arith.subf %1187, %1185 : vector<8x128xf32>
    %1232 = arith.mulf %1230, %1231 : vector<8x128xf32>
    %1233 = arith.addf %1185, %1232 : vector<8x128xf32>
    %1234 = arith.select %1222, %1233, %1187 : vector<8x128xi1>, vector<8x128xf32>
    %1235 = arith.select %1223, %1186, %94 : vector<8x128xi1>, vector<8x128xf32>
    %1236 = arith.select %1225, %1233, %1187 : vector<8x128xi1>, vector<8x128xf32>
    %1237 = arith.select %1221, %1186, %94 : vector<8x128xi1>, vector<8x128xf32>
    %1238 = arith.mulf %1208, %1234 : vector<8x128xf32>
    %1239 = arith.mulf %1235, %1207 : vector<8x128xf32>
    %1240 = arith.subf %1238, %1239 : vector<8x128xf32>
    %1241 = arith.addf %1141, %1240 : vector<8x128xf32>
    %1242 = arith.mulf %1235, %1236 : vector<8x128xf32>
    %1243 = arith.mulf %1237, %1234 : vector<8x128xf32>
    %1244 = arith.subf %1242, %1243 : vector<8x128xf32>
    %1245 = arith.addf %1145, %1244 : vector<8x128xf32>
    %1246 = arith.subf %1165, %98 : vector<8x128xf32>
    %cst_224 = arith.constant 0.000000e+00 : f32
    %1247 = vector.broadcast %cst_224 : f32 to vector<8x128xf32>
    %1248 = arith.cmpf oge, %1167, %1247 : vector<8x128xf32>
    %cst_225 = arith.constant 0.000000e+00 : f32
    %1249 = vector.broadcast %cst_225 : f32 to vector<8x128xf32>
    %1250 = arith.cmpf oge, %1246, %1249 : vector<8x128xf32>
    %1251 = arith.xori %1248, %1250 : vector<8x128xi1>
    %1252 = arith.andi %1248, %1250 : vector<8x128xi1>
    %cst_226 = arith.constant dense<true> : vector<8x128xi1>
    %1253 = arith.xori %1250, %cst_226 : vector<8x128xi1>
    %1254 = arith.andi %1248, %1253 : vector<8x128xi1>
    %1255 = arith.subf %1167, %1246 : vector<8x128xf32>
    %cst_227 = arith.constant 1.000000e+00 : f32
    %1256 = vector.broadcast %cst_227 : f32 to vector<8x128xf32>
    %1257 = arith.select %1251, %1255, %1256 : vector<8x128xi1>, vector<8x128xf32>
    %1258 = tpu.reciprocal %1257 {approx = true} : vector<8x128xf32> -> vector<8x128xf32>
    %1259 = arith.mulf %1167, %1258 : vector<8x128xf32>
    %1260 = arith.subf %1166, %1164 : vector<8x128xf32>
    %1261 = arith.mulf %1259, %1260 : vector<8x128xf32>
    %1262 = arith.addf %1164, %1261 : vector<8x128xf32>
    %1263 = arith.select %1251, %1262, %1166 : vector<8x128xi1>, vector<8x128xf32>
    %1264 = arith.select %1252, %1165, %98 : vector<8x128xi1>, vector<8x128xf32>
    %1265 = arith.select %1254, %1262, %1166 : vector<8x128xi1>, vector<8x128xf32>
    %1266 = arith.select %1250, %1165, %98 : vector<8x128xi1>, vector<8x128xf32>
    %1267 = arith.subf %94, %1263 : vector<8x128xf32>
    %cst_228 = arith.constant 0.000000e+00 : f32
    %1268 = vector.broadcast %cst_228 : f32 to vector<8x128xf32>
    %1269 = arith.cmpf oge, %1217, %1268 : vector<8x128xf32>
    %cst_229 = arith.constant 0.000000e+00 : f32
    %1270 = vector.broadcast %cst_229 : f32 to vector<8x128xf32>
    %1271 = arith.cmpf oge, %1267, %1270 : vector<8x128xf32>
    %1272 = arith.xori %1269, %1271 : vector<8x128xi1>
    %1273 = arith.andi %1269, %1271 : vector<8x128xi1>
    %cst_230 = arith.constant dense<true> : vector<8x128xi1>
    %1274 = arith.xori %1271, %cst_230 : vector<8x128xi1>
    %1275 = arith.andi %1269, %1274 : vector<8x128xi1>
    %1276 = arith.subf %1217, %1267 : vector<8x128xf32>
    %cst_231 = arith.constant 1.000000e+00 : f32
    %1277 = vector.broadcast %cst_231 : f32 to vector<8x128xf32>
    %1278 = arith.select %1272, %1276, %1277 : vector<8x128xi1>, vector<8x128xf32>
    %1279 = tpu.reciprocal %1278 {approx = true} : vector<8x128xf32> -> vector<8x128xf32>
    %1280 = arith.mulf %1217, %1279 : vector<8x128xf32>
    %1281 = arith.subf %1264, %1187 : vector<8x128xf32>
    %1282 = arith.mulf %1280, %1281 : vector<8x128xf32>
    %1283 = arith.addf %1187, %1282 : vector<8x128xf32>
    %1284 = arith.select %1272, %1283, %1264 : vector<8x128xi1>, vector<8x128xf32>
    %1285 = arith.select %1273, %1263, %94 : vector<8x128xi1>, vector<8x128xf32>
    %1286 = arith.select %1275, %1283, %1264 : vector<8x128xi1>, vector<8x128xf32>
    %1287 = arith.select %1271, %1263, %94 : vector<8x128xi1>, vector<8x128xf32>
    %1288 = arith.mulf %1237, %1284 : vector<8x128xf32>
    %1289 = arith.mulf %1285, %1236 : vector<8x128xf32>
    %1290 = arith.subf %1288, %1289 : vector<8x128xf32>
    %1291 = arith.addf %1212, %1290 : vector<8x128xf32>
    %1292 = arith.mulf %1285, %1286 : vector<8x128xf32>
    %1293 = arith.mulf %1287, %1284 : vector<8x128xf32>
    %1294 = arith.subf %1292, %1293 : vector<8x128xf32>
    %1295 = arith.addf %1216, %1294 : vector<8x128xf32>
    %1296 = arith.subf %94, %1265 : vector<8x128xf32>
    %cst_232 = arith.constant 0.000000e+00 : f32
    %1297 = vector.broadcast %cst_232 : f32 to vector<8x128xf32>
    %1298 = arith.cmpf oge, %1267, %1297 : vector<8x128xf32>
    %cst_233 = arith.constant 0.000000e+00 : f32
    %1299 = vector.broadcast %cst_233 : f32 to vector<8x128xf32>
    %1300 = arith.cmpf oge, %1296, %1299 : vector<8x128xf32>
    %1301 = arith.xori %1298, %1300 : vector<8x128xi1>
    %1302 = arith.andi %1298, %1300 : vector<8x128xi1>
    %cst_234 = arith.constant dense<true> : vector<8x128xi1>
    %1303 = arith.xori %1300, %cst_234 : vector<8x128xi1>
    %1304 = arith.andi %1298, %1303 : vector<8x128xi1>
    %1305 = arith.subf %1267, %1296 : vector<8x128xf32>
    %cst_235 = arith.constant 1.000000e+00 : f32
    %1306 = vector.broadcast %cst_235 : f32 to vector<8x128xf32>
    %1307 = arith.select %1301, %1305, %1306 : vector<8x128xi1>, vector<8x128xf32>
    %1308 = tpu.reciprocal %1307 {approx = true} : vector<8x128xf32> -> vector<8x128xf32>
    %1309 = arith.mulf %1267, %1308 : vector<8x128xf32>
    %1310 = arith.subf %1266, %1264 : vector<8x128xf32>
    %1311 = arith.mulf %1309, %1310 : vector<8x128xf32>
    %1312 = arith.addf %1264, %1311 : vector<8x128xf32>
    %1313 = arith.select %1301, %1312, %1266 : vector<8x128xi1>, vector<8x128xf32>
    %1314 = arith.select %1302, %1265, %94 : vector<8x128xi1>, vector<8x128xf32>
    %1315 = arith.select %1304, %1312, %1266 : vector<8x128xi1>, vector<8x128xf32>
    %1316 = arith.select %1300, %1265, %94 : vector<8x128xi1>, vector<8x128xf32>
    %1317 = arith.mulf %1287, %1313 : vector<8x128xf32>
    %1318 = arith.mulf %1314, %1286 : vector<8x128xf32>
    %1319 = arith.subf %1317, %1318 : vector<8x128xf32>
    %1320 = arith.addf %1241, %1319 : vector<8x128xf32>
    %1321 = arith.mulf %1314, %1315 : vector<8x128xf32>
    %1322 = arith.mulf %1316, %1313 : vector<8x128xf32>
    %1323 = arith.subf %1321, %1322 : vector<8x128xf32>
    %1324 = arith.addf %1245, %1323 : vector<8x128xf32>
    %cst_236 = arith.constant 0.000000e+00 : f32
    %1325 = vector.broadcast %cst_236 : f32 to vector<8x128xf32>
    %1326 = arith.cmpf oge, %1146, %1325 : vector<8x128xf32>
    %cst_237 = arith.constant 0.000000e+00 : f32
    %1327 = vector.broadcast %cst_237 : f32 to vector<8x128xf32>
    %1328 = arith.cmpf oge, %123, %1327 : vector<8x128xf32>
    %1329 = arith.xori %1326, %1328 : vector<8x128xi1>
    %1330 = arith.andi %1326, %1328 : vector<8x128xi1>
    %cst_238 = arith.constant dense<true> : vector<8x128xi1>
    %1331 = arith.xori %1328, %cst_238 : vector<8x128xi1>
    %1332 = arith.andi %1326, %1331 : vector<8x128xi1>
    %1333 = arith.subf %1146, %123 : vector<8x128xf32>
    %cst_239 = arith.constant 1.000000e+00 : f32
    %1334 = vector.broadcast %cst_239 : f32 to vector<8x128xf32>
    %1335 = arith.select %1329, %1333, %1334 : vector<8x128xi1>, vector<8x128xf32>
    %1336 = tpu.reciprocal %1335 {approx = true} : vector<8x128xf32> -> vector<8x128xf32>
    %1337 = arith.mulf %1146, %1336 : vector<8x128xf32>
    %1338 = arith.subf %120, %966 : vector<8x128xf32>
    %1339 = arith.mulf %1337, %1338 : vector<8x128xf32>
    %1340 = arith.addf %966, %1339 : vector<8x128xf32>
    %1341 = arith.select %1329, %1340, %120 : vector<8x128xi1>, vector<8x128xf32>
    %1342 = arith.select %1330, %119, %100 : vector<8x128xi1>, vector<8x128xf32>
    %1343 = arith.select %1332, %1340, %120 : vector<8x128xi1>, vector<8x128xf32>
    %1344 = arith.select %1328, %119, %100 : vector<8x128xi1>, vector<8x128xf32>
    %1345 = arith.subf %1341, %98 : vector<8x128xf32>
    %cst_240 = arith.constant 0.000000e+00 : f32
    %1346 = vector.broadcast %cst_240 : f32 to vector<8x128xf32>
    %1347 = arith.cmpf oge, %1246, %1346 : vector<8x128xf32>
    %cst_241 = arith.constant 0.000000e+00 : f32
    %1348 = vector.broadcast %cst_241 : f32 to vector<8x128xf32>
    %1349 = arith.cmpf oge, %1345, %1348 : vector<8x128xf32>
    %1350 = arith.xori %1347, %1349 : vector<8x128xi1>
    %1351 = arith.andi %1347, %1349 : vector<8x128xi1>
    %cst_242 = arith.constant dense<true> : vector<8x128xi1>
    %1352 = arith.xori %1349, %cst_242 : vector<8x128xi1>
    %1353 = arith.andi %1347, %1352 : vector<8x128xi1>
    %1354 = arith.subf %1246, %1345 : vector<8x128xf32>
    %cst_243 = arith.constant 1.000000e+00 : f32
    %1355 = vector.broadcast %cst_243 : f32 to vector<8x128xf32>
    %1356 = arith.select %1350, %1354, %1355 : vector<8x128xi1>, vector<8x128xf32>
    %1357 = tpu.reciprocal %1356 {approx = true} : vector<8x128xf32> -> vector<8x128xf32>
    %1358 = arith.mulf %1246, %1357 : vector<8x128xf32>
    %1359 = arith.subf %1342, %1166 : vector<8x128xf32>
    %1360 = arith.mulf %1358, %1359 : vector<8x128xf32>
    %1361 = arith.addf %1166, %1360 : vector<8x128xf32>
    %1362 = arith.select %1350, %1361, %1342 : vector<8x128xi1>, vector<8x128xf32>
    %1363 = arith.select %1351, %1341, %98 : vector<8x128xi1>, vector<8x128xf32>
    %1364 = arith.select %1353, %1361, %1342 : vector<8x128xi1>, vector<8x128xf32>
    %1365 = arith.select %1349, %1341, %98 : vector<8x128xi1>, vector<8x128xf32>
    %1366 = arith.subf %94, %1362 : vector<8x128xf32>
    %cst_244 = arith.constant 0.000000e+00 : f32
    %1367 = vector.broadcast %cst_244 : f32 to vector<8x128xf32>
    %1368 = arith.cmpf oge, %1296, %1367 : vector<8x128xf32>
    %cst_245 = arith.constant 0.000000e+00 : f32
    %1369 = vector.broadcast %cst_245 : f32 to vector<8x128xf32>
    %1370 = arith.cmpf oge, %1366, %1369 : vector<8x128xf32>
    %1371 = arith.xori %1368, %1370 : vector<8x128xi1>
    %1372 = arith.andi %1368, %1370 : vector<8x128xi1>
    %cst_246 = arith.constant dense<true> : vector<8x128xi1>
    %1373 = arith.xori %1370, %cst_246 : vector<8x128xi1>
    %1374 = arith.andi %1368, %1373 : vector<8x128xi1>
    %1375 = arith.subf %1296, %1366 : vector<8x128xf32>
    %cst_247 = arith.constant 1.000000e+00 : f32
    %1376 = vector.broadcast %cst_247 : f32 to vector<8x128xf32>
    %1377 = arith.select %1371, %1375, %1376 : vector<8x128xi1>, vector<8x128xf32>
    %1378 = tpu.reciprocal %1377 {approx = true} : vector<8x128xf32> -> vector<8x128xf32>
    %1379 = arith.mulf %1296, %1378 : vector<8x128xf32>
    %1380 = arith.subf %1363, %1266 : vector<8x128xf32>
    %1381 = arith.mulf %1379, %1380 : vector<8x128xf32>
    %1382 = arith.addf %1266, %1381 : vector<8x128xf32>
    %1383 = arith.select %1371, %1382, %1363 : vector<8x128xi1>, vector<8x128xf32>
    %1384 = arith.select %1372, %1362, %94 : vector<8x128xi1>, vector<8x128xf32>
    %1385 = arith.select %1374, %1382, %1363 : vector<8x128xi1>, vector<8x128xf32>
    %1386 = arith.select %1370, %1362, %94 : vector<8x128xi1>, vector<8x128xf32>
    %1387 = arith.mulf %1316, %1383 : vector<8x128xf32>
    %1388 = arith.mulf %1384, %1315 : vector<8x128xf32>
    %1389 = arith.subf %1387, %1388 : vector<8x128xf32>
    %1390 = arith.addf %1291, %1389 : vector<8x128xf32>
    %1391 = arith.mulf %1384, %1385 : vector<8x128xf32>
    %1392 = arith.mulf %1386, %1383 : vector<8x128xf32>
    %1393 = arith.subf %1391, %1392 : vector<8x128xf32>
    %1394 = arith.addf %1295, %1393 : vector<8x128xf32>
    %1395 = arith.subf %94, %1364 : vector<8x128xf32>
    %cst_248 = arith.constant 0.000000e+00 : f32
    %1396 = vector.broadcast %cst_248 : f32 to vector<8x128xf32>
    %1397 = arith.cmpf oge, %1366, %1396 : vector<8x128xf32>
    %cst_249 = arith.constant 0.000000e+00 : f32
    %1398 = vector.broadcast %cst_249 : f32 to vector<8x128xf32>
    %1399 = arith.cmpf oge, %1395, %1398 : vector<8x128xf32>
    %1400 = arith.xori %1397, %1399 : vector<8x128xi1>
    %1401 = arith.andi %1397, %1399 : vector<8x128xi1>
    %cst_250 = arith.constant dense<true> : vector<8x128xi1>
    %1402 = arith.xori %1399, %cst_250 : vector<8x128xi1>
    %1403 = arith.andi %1397, %1402 : vector<8x128xi1>
    %1404 = arith.subf %1366, %1395 : vector<8x128xf32>
    %cst_251 = arith.constant 1.000000e+00 : f32
    %1405 = vector.broadcast %cst_251 : f32 to vector<8x128xf32>
    %1406 = arith.select %1400, %1404, %1405 : vector<8x128xi1>, vector<8x128xf32>
    %1407 = tpu.reciprocal %1406 {approx = true} : vector<8x128xf32> -> vector<8x128xf32>
    %1408 = arith.mulf %1366, %1407 : vector<8x128xf32>
    %1409 = arith.subf %1365, %1363 : vector<8x128xf32>
    %1410 = arith.mulf %1408, %1409 : vector<8x128xf32>
    %1411 = arith.addf %1363, %1410 : vector<8x128xf32>
    %1412 = arith.select %1400, %1411, %1365 : vector<8x128xi1>, vector<8x128xf32>
    %1413 = arith.select %1401, %1364, %94 : vector<8x128xi1>, vector<8x128xf32>
    %1414 = arith.select %1403, %1411, %1365 : vector<8x128xi1>, vector<8x128xf32>
    %1415 = arith.select %1399, %1364, %94 : vector<8x128xi1>, vector<8x128xf32>
    %1416 = arith.mulf %1386, %1412 : vector<8x128xf32>
    %1417 = arith.mulf %1413, %1385 : vector<8x128xf32>
    %1418 = arith.subf %1416, %1417 : vector<8x128xf32>
    %1419 = arith.addf %1320, %1418 : vector<8x128xf32>
    %1420 = arith.mulf %1413, %1414 : vector<8x128xf32>
    %1421 = arith.mulf %1415, %1412 : vector<8x128xf32>
    %1422 = arith.subf %1420, %1421 : vector<8x128xf32>
    %1423 = arith.addf %1324, %1422 : vector<8x128xf32>
    %1424 = arith.subf %1343, %98 : vector<8x128xf32>
    %cst_252 = arith.constant 0.000000e+00 : f32
    %1425 = vector.broadcast %cst_252 : f32 to vector<8x128xf32>
    %1426 = arith.cmpf oge, %1345, %1425 : vector<8x128xf32>
    %cst_253 = arith.constant 0.000000e+00 : f32
    %1427 = vector.broadcast %cst_253 : f32 to vector<8x128xf32>
    %1428 = arith.cmpf oge, %1424, %1427 : vector<8x128xf32>
    %1429 = arith.xori %1426, %1428 : vector<8x128xi1>
    %1430 = arith.andi %1426, %1428 : vector<8x128xi1>
    %cst_254 = arith.constant dense<true> : vector<8x128xi1>
    %1431 = arith.xori %1428, %cst_254 : vector<8x128xi1>
    %1432 = arith.andi %1426, %1431 : vector<8x128xi1>
    %1433 = arith.subf %1345, %1424 : vector<8x128xf32>
    %cst_255 = arith.constant 1.000000e+00 : f32
    %1434 = vector.broadcast %cst_255 : f32 to vector<8x128xf32>
    %1435 = arith.select %1429, %1433, %1434 : vector<8x128xi1>, vector<8x128xf32>
    %1436 = tpu.reciprocal %1435 {approx = true} : vector<8x128xf32> -> vector<8x128xf32>
    %1437 = arith.mulf %1345, %1436 : vector<8x128xf32>
    %1438 = arith.subf %1344, %1342 : vector<8x128xf32>
    %1439 = arith.mulf %1437, %1438 : vector<8x128xf32>
    %1440 = arith.addf %1342, %1439 : vector<8x128xf32>
    %1441 = arith.select %1429, %1440, %1344 : vector<8x128xi1>, vector<8x128xf32>
    %1442 = arith.select %1430, %1343, %98 : vector<8x128xi1>, vector<8x128xf32>
    %1443 = arith.select %1432, %1440, %1344 : vector<8x128xi1>, vector<8x128xf32>
    %1444 = arith.select %1428, %1343, %98 : vector<8x128xi1>, vector<8x128xf32>
    %1445 = arith.subf %94, %1441 : vector<8x128xf32>
    %cst_256 = arith.constant 0.000000e+00 : f32
    %1446 = vector.broadcast %cst_256 : f32 to vector<8x128xf32>
    %1447 = arith.cmpf oge, %1395, %1446 : vector<8x128xf32>
    %cst_257 = arith.constant 0.000000e+00 : f32
    %1448 = vector.broadcast %cst_257 : f32 to vector<8x128xf32>
    %1449 = arith.cmpf oge, %1445, %1448 : vector<8x128xf32>
    %1450 = arith.xori %1447, %1449 : vector<8x128xi1>
    %1451 = arith.andi %1447, %1449 : vector<8x128xi1>
    %cst_258 = arith.constant dense<true> : vector<8x128xi1>
    %1452 = arith.xori %1449, %cst_258 : vector<8x128xi1>
    %1453 = arith.andi %1447, %1452 : vector<8x128xi1>
    %1454 = arith.subf %1395, %1445 : vector<8x128xf32>
    %cst_259 = arith.constant 1.000000e+00 : f32
    %1455 = vector.broadcast %cst_259 : f32 to vector<8x128xf32>
    %1456 = arith.select %1450, %1454, %1455 : vector<8x128xi1>, vector<8x128xf32>
    %1457 = tpu.reciprocal %1456 {approx = true} : vector<8x128xf32> -> vector<8x128xf32>
    %1458 = arith.mulf %1395, %1457 : vector<8x128xf32>
    %1459 = arith.subf %1442, %1365 : vector<8x128xf32>
    %1460 = arith.mulf %1458, %1459 : vector<8x128xf32>
    %1461 = arith.addf %1365, %1460 : vector<8x128xf32>
    %1462 = arith.select %1450, %1461, %1442 : vector<8x128xi1>, vector<8x128xf32>
    %1463 = arith.select %1451, %1441, %94 : vector<8x128xi1>, vector<8x128xf32>
    %1464 = arith.select %1453, %1461, %1442 : vector<8x128xi1>, vector<8x128xf32>
    %1465 = arith.select %1449, %1441, %94 : vector<8x128xi1>, vector<8x128xf32>
    %1466 = arith.mulf %1415, %1462 : vector<8x128xf32>
    %1467 = arith.mulf %1463, %1414 : vector<8x128xf32>
    %1468 = arith.subf %1466, %1467 : vector<8x128xf32>
    %1469 = arith.addf %1390, %1468 : vector<8x128xf32>
    %1470 = arith.mulf %1463, %1464 : vector<8x128xf32>
    %1471 = arith.mulf %1465, %1462 : vector<8x128xf32>
    %1472 = arith.subf %1470, %1471 : vector<8x128xf32>
    %1473 = arith.addf %1394, %1472 : vector<8x128xf32>
    %1474 = arith.subf %94, %1443 : vector<8x128xf32>
    %cst_260 = arith.constant 0.000000e+00 : f32
    %1475 = vector.broadcast %cst_260 : f32 to vector<8x128xf32>
    %1476 = arith.cmpf oge, %1445, %1475 : vector<8x128xf32>
    %cst_261 = arith.constant 0.000000e+00 : f32
    %1477 = vector.broadcast %cst_261 : f32 to vector<8x128xf32>
    %1478 = arith.cmpf oge, %1474, %1477 : vector<8x128xf32>
    %1479 = arith.xori %1476, %1478 : vector<8x128xi1>
    %1480 = arith.andi %1476, %1478 : vector<8x128xi1>
    %cst_262 = arith.constant dense<true> : vector<8x128xi1>
    %1481 = arith.xori %1478, %cst_262 : vector<8x128xi1>
    %1482 = arith.andi %1476, %1481 : vector<8x128xi1>
    %1483 = arith.subf %1445, %1474 : vector<8x128xf32>
    %cst_263 = arith.constant 1.000000e+00 : f32
    %1484 = vector.broadcast %cst_263 : f32 to vector<8x128xf32>
    %1485 = arith.select %1479, %1483, %1484 : vector<8x128xi1>, vector<8x128xf32>
    %1486 = tpu.reciprocal %1485 {approx = true} : vector<8x128xf32> -> vector<8x128xf32>
    %1487 = arith.mulf %1445, %1486 : vector<8x128xf32>
    %1488 = arith.subf %1444, %1442 : vector<8x128xf32>
    %1489 = arith.mulf %1487, %1488 : vector<8x128xf32>
    %1490 = arith.addf %1442, %1489 : vector<8x128xf32>
    %1491 = arith.select %1479, %1490, %1444 : vector<8x128xi1>, vector<8x128xf32>
    %1492 = arith.select %1480, %1443, %94 : vector<8x128xi1>, vector<8x128xf32>
    %1493 = arith.select %1482, %1490, %1444 : vector<8x128xi1>, vector<8x128xf32>
    %1494 = arith.select %1478, %1443, %94 : vector<8x128xi1>, vector<8x128xf32>
    %1495 = arith.mulf %1465, %1491 : vector<8x128xf32>
    %1496 = arith.mulf %1492, %1464 : vector<8x128xf32>
    %1497 = arith.subf %1495, %1496 : vector<8x128xf32>
    %1498 = arith.addf %1419, %1497 : vector<8x128xf32>
    %1499 = arith.mulf %1492, %1493 : vector<8x128xf32>
    %1500 = arith.mulf %1494, %1491 : vector<8x128xf32>
    %1501 = arith.subf %1499, %1500 : vector<8x128xf32>
    %1502 = arith.addf %1423, %1501 : vector<8x128xf32>
    %cst_264 = arith.constant 0.000000e+00 : f32
    %1503 = vector.broadcast %cst_264 : f32 to vector<8x128xf32>
    %1504 = arith.cmpf oge, %1424, %1503 : vector<8x128xf32>
    %cst_265 = arith.constant 0.000000e+00 : f32
    %1505 = vector.broadcast %cst_265 : f32 to vector<8x128xf32>
    %1506 = arith.cmpf oge, %145, %1505 : vector<8x128xf32>
    %1507 = arith.xori %1504, %1506 : vector<8x128xi1>
    %1508 = arith.andi %1504, %1506 : vector<8x128xi1>
    %cst_266 = arith.constant dense<true> : vector<8x128xi1>
    %1509 = arith.xori %1506, %cst_266 : vector<8x128xi1>
    %1510 = arith.andi %1504, %1509 : vector<8x128xi1>
    %1511 = arith.subf %1424, %145 : vector<8x128xf32>
    %cst_267 = arith.constant 1.000000e+00 : f32
    %1512 = vector.broadcast %cst_267 : f32 to vector<8x128xf32>
    %1513 = arith.select %1507, %1511, %1512 : vector<8x128xi1>, vector<8x128xf32>
    %1514 = tpu.reciprocal %1513 {approx = true} : vector<8x128xf32> -> vector<8x128xf32>
    %1515 = arith.mulf %1424, %1514 : vector<8x128xf32>
    %1516 = arith.subf %142, %1344 : vector<8x128xf32>
    %1517 = arith.mulf %1515, %1516 : vector<8x128xf32>
    %1518 = arith.addf %1344, %1517 : vector<8x128xf32>
    %1519 = arith.select %1507, %1518, %142 : vector<8x128xi1>, vector<8x128xf32>
    %1520 = arith.select %1508, %141, %98 : vector<8x128xi1>, vector<8x128xf32>
    %1521 = arith.select %1510, %1518, %142 : vector<8x128xi1>, vector<8x128xf32>
    %1522 = arith.select %1506, %141, %98 : vector<8x128xi1>, vector<8x128xf32>
    %1523 = arith.subf %94, %1519 : vector<8x128xf32>
    %cst_268 = arith.constant 0.000000e+00 : f32
    %1524 = vector.broadcast %cst_268 : f32 to vector<8x128xf32>
    %1525 = arith.cmpf oge, %1474, %1524 : vector<8x128xf32>
    %cst_269 = arith.constant 0.000000e+00 : f32
    %1526 = vector.broadcast %cst_269 : f32 to vector<8x128xf32>
    %1527 = arith.cmpf oge, %1523, %1526 : vector<8x128xf32>
    %1528 = arith.xori %1525, %1527 : vector<8x128xi1>
    %1529 = arith.andi %1525, %1527 : vector<8x128xi1>
    %cst_270 = arith.constant dense<true> : vector<8x128xi1>
    %1530 = arith.xori %1527, %cst_270 : vector<8x128xi1>
    %1531 = arith.andi %1525, %1530 : vector<8x128xi1>
    %1532 = arith.subf %1474, %1523 : vector<8x128xf32>
    %cst_271 = arith.constant 1.000000e+00 : f32
    %1533 = vector.broadcast %cst_271 : f32 to vector<8x128xf32>
    %1534 = arith.select %1528, %1532, %1533 : vector<8x128xi1>, vector<8x128xf32>
    %1535 = tpu.reciprocal %1534 {approx = true} : vector<8x128xf32> -> vector<8x128xf32>
    %1536 = arith.mulf %1474, %1535 : vector<8x128xf32>
    %1537 = arith.subf %1520, %1444 : vector<8x128xf32>
    %1538 = arith.mulf %1536, %1537 : vector<8x128xf32>
    %1539 = arith.addf %1444, %1538 : vector<8x128xf32>
    %1540 = arith.select %1528, %1539, %1520 : vector<8x128xi1>, vector<8x128xf32>
    %1541 = arith.select %1529, %1519, %94 : vector<8x128xi1>, vector<8x128xf32>
    %1542 = arith.select %1531, %1539, %1520 : vector<8x128xi1>, vector<8x128xf32>
    %1543 = arith.select %1527, %1519, %94 : vector<8x128xi1>, vector<8x128xf32>
    %1544 = arith.mulf %1494, %1540 : vector<8x128xf32>
    %1545 = arith.mulf %1541, %1493 : vector<8x128xf32>
    %1546 = arith.subf %1544, %1545 : vector<8x128xf32>
    %1547 = arith.addf %1469, %1546 : vector<8x128xf32>
    %1548 = arith.mulf %1541, %1542 : vector<8x128xf32>
    %1549 = arith.mulf %1543, %1540 : vector<8x128xf32>
    %1550 = arith.subf %1548, %1549 : vector<8x128xf32>
    %1551 = arith.addf %1473, %1550 : vector<8x128xf32>
    %1552 = arith.subf %94, %1521 : vector<8x128xf32>
    %cst_272 = arith.constant 0.000000e+00 : f32
    %1553 = vector.broadcast %cst_272 : f32 to vector<8x128xf32>
    %1554 = arith.cmpf oge, %1523, %1553 : vector<8x128xf32>
    %cst_273 = arith.constant 0.000000e+00 : f32
    %1555 = vector.broadcast %cst_273 : f32 to vector<8x128xf32>
    %1556 = arith.cmpf oge, %1552, %1555 : vector<8x128xf32>
    %1557 = arith.xori %1554, %1556 : vector<8x128xi1>
    %1558 = arith.andi %1554, %1556 : vector<8x128xi1>
    %cst_274 = arith.constant dense<true> : vector<8x128xi1>
    %1559 = arith.xori %1556, %cst_274 : vector<8x128xi1>
    %1560 = arith.andi %1554, %1559 : vector<8x128xi1>
    %1561 = arith.subf %1523, %1552 : vector<8x128xf32>
    %cst_275 = arith.constant 1.000000e+00 : f32
    %1562 = vector.broadcast %cst_275 : f32 to vector<8x128xf32>
    %1563 = arith.select %1557, %1561, %1562 : vector<8x128xi1>, vector<8x128xf32>
    %1564 = tpu.reciprocal %1563 {approx = true} : vector<8x128xf32> -> vector<8x128xf32>
    %1565 = arith.mulf %1523, %1564 : vector<8x128xf32>
    %1566 = arith.subf %1522, %1520 : vector<8x128xf32>
    %1567 = arith.mulf %1565, %1566 : vector<8x128xf32>
    %1568 = arith.addf %1520, %1567 : vector<8x128xf32>
    %1569 = arith.select %1557, %1568, %1522 : vector<8x128xi1>, vector<8x128xf32>
    %1570 = arith.select %1558, %1521, %94 : vector<8x128xi1>, vector<8x128xf32>
    %1571 = arith.select %1560, %1568, %1522 : vector<8x128xi1>, vector<8x128xf32>
    %1572 = arith.select %1556, %1521, %94 : vector<8x128xi1>, vector<8x128xf32>
    %1573 = arith.mulf %1543, %1569 : vector<8x128xf32>
    %1574 = arith.mulf %1570, %1542 : vector<8x128xf32>
    %1575 = arith.subf %1573, %1574 : vector<8x128xf32>
    %1576 = arith.addf %1498, %1575 : vector<8x128xf32>
    %1577 = arith.mulf %1570, %1571 : vector<8x128xf32>
    %1578 = arith.mulf %1572, %1569 : vector<8x128xf32>
    %1579 = arith.subf %1577, %1578 : vector<8x128xf32>
    %1580 = arith.addf %1502, %1579 : vector<8x128xf32>
    %cst_276 = arith.constant 0.000000e+00 : f32
    %1581 = vector.broadcast %cst_276 : f32 to vector<8x128xf32>
    %1582 = arith.cmpf oge, %1552, %1581 : vector<8x128xf32>
    %cst_277 = arith.constant 0.000000e+00 : f32
    %1583 = vector.broadcast %cst_277 : f32 to vector<8x128xf32>
    %1584 = arith.cmpf oge, %167, %1583 : vector<8x128xf32>
    %1585 = arith.xori %1582, %1584 : vector<8x128xi1>
    %1586 = arith.andi %1582, %1584 : vector<8x128xi1>
    %cst_278 = arith.constant dense<true> : vector<8x128xi1>
    %1587 = arith.xori %1584, %cst_278 : vector<8x128xi1>
    %1588 = arith.andi %1582, %1587 : vector<8x128xi1>
    %1589 = arith.subf %1552, %167 : vector<8x128xf32>
    %cst_279 = arith.constant 1.000000e+00 : f32
    %1590 = vector.broadcast %cst_279 : f32 to vector<8x128xf32>
    %1591 = arith.select %1585, %1589, %1590 : vector<8x128xi1>, vector<8x128xf32>
    %1592 = tpu.reciprocal %1591 {approx = true} : vector<8x128xf32> -> vector<8x128xf32>
    %1593 = arith.mulf %1552, %1592 : vector<8x128xf32>
    %1594 = arith.subf %164, %1522 : vector<8x128xf32>
    %1595 = arith.mulf %1593, %1594 : vector<8x128xf32>
    %1596 = arith.addf %1522, %1595 : vector<8x128xf32>
    %1597 = arith.select %1585, %1596, %164 : vector<8x128xi1>, vector<8x128xf32>
    %1598 = arith.select %1586, %163, %94 : vector<8x128xi1>, vector<8x128xf32>
    %1599 = arith.select %1588, %1596, %164 : vector<8x128xi1>, vector<8x128xf32>
    %1600 = arith.select %1584, %163, %94 : vector<8x128xi1>, vector<8x128xf32>
    %1601 = arith.mulf %1572, %1597 : vector<8x128xf32>
    %1602 = arith.mulf %1598, %1571 : vector<8x128xf32>
    %1603 = arith.subf %1601, %1602 : vector<8x128xf32>
    %1604 = arith.addf %1547, %1603 : vector<8x128xf32>
    %1605 = arith.mulf %1598, %1599 : vector<8x128xf32>
    %1606 = arith.mulf %1600, %1597 : vector<8x128xf32>
    %1607 = arith.subf %1605, %1606 : vector<8x128xf32>
    %1608 = arith.addf %1551, %1607 : vector<8x128xf32>
    %1609 = arith.mulf %1600, %185 : vector<8x128xf32>
    %1610 = arith.mulf %186, %1599 : vector<8x128xf32>
    %1611 = arith.subf %1609, %1610 : vector<8x128xf32>
    %1612 = arith.addf %1576, %1611 : vector<8x128xf32>
    %1613 = arith.addf %1580, %1604 : vector<8x128xf32>
    %1614 = arith.addf %1608, %1612 : vector<8x128xf32>
    %1615 = arith.addf %1613, %1614 : vector<8x128xf32>
    %1616 = math.absf %1615 : vector<8x128xf32>
    %cst_280 = arith.constant 5.000000e-01 : f32
    %1617 = vector.broadcast %cst_280 : f32 to vector<8x128xf32>
    %1618 = arith.mulf %1617, %1616 : vector<8x128xf32>
    %1619 = arith.mulf %11, %14 : vector<8x128xf32>
    %1620 = arith.mulf %49, %51 : vector<8x128xf32>
    %1621 = arith.minimumf %1619, %1620 : vector<8x128xf32>
    %cst_281 = arith.constant 0.000000e+00 : f32
    %1622 = vector.broadcast %cst_281 : f32 to vector<8x128xf32>
    %1623 = arith.maximumf %1621, %1622 : vector<8x128xf32>
    %cst_282 = arith.constant 0.000000e+00 : f32
    %1624 = vector.broadcast %cst_282 : f32 to vector<8x128xf32>
    %1625 = arith.maximumf %1624, %1618 : vector<8x128xf32>
    %1626 = arith.minimumf %1623, %1625 : vector<8x128xf32>
    %cst_283 = arith.constant 5.000000e-01 : f32
    %1627 = vector.broadcast %cst_283 : f32 to vector<8x128xf32>
    %1628 = arith.mulf %1627, %17 : vector<8x128xf32>
    %1629 = arith.addf %8, %1628 : vector<8x128xf32>
    %cst_284 = arith.constant 5.000000e-01 : f32
    %1630 = vector.broadcast %cst_284 : f32 to vector<8x128xf32>
    %1631 = arith.mulf %1630, %53 : vector<8x128xf32>
    %1632 = arith.addf %47, %1631 : vector<8x128xf32>
    %1633 = arith.minimumf %1629, %1632 : vector<8x128xf32>
    %cst_285 = arith.constant 5.000000e-01 : f32
    %1634 = vector.broadcast %cst_285 : f32 to vector<8x128xf32>
    %1635 = arith.mulf %1634, %17 : vector<8x128xf32>
    %1636 = arith.subf %8, %1635 : vector<8x128xf32>
    %cst_286 = arith.constant 5.000000e-01 : f32
    %1637 = vector.broadcast %cst_286 : f32 to vector<8x128xf32>
    %1638 = arith.mulf %1637, %53 : vector<8x128xf32>
    %1639 = arith.subf %47, %1638 : vector<8x128xf32>
    %1640 = arith.maximumf %1636, %1639 : vector<8x128xf32>
    %1641 = arith.subf %1633, %1640 : vector<8x128xf32>
    %cst_287 = arith.constant 0.000000e+00 : f32
    %1642 = vector.broadcast %cst_287 : f32 to vector<8x128xf32>
    %1643 = arith.maximumf %1641, %1642 : vector<8x128xf32>
    %1644 = arith.mulf %1626, %1643 : vector<8x128xf32>
    %1645 = arith.mulf %1619, %17 : vector<8x128xf32>
    %1646 = arith.mulf %1620, %53 : vector<8x128xf32>
    %1647 = arith.addf %1645, %1646 : vector<8x128xf32>
    %1648 = arith.subf %1647, %1644 : vector<8x128xf32>
    %cst_288 = arith.constant 9.99999997E-7 : f32
    %1649 = vector.broadcast %cst_288 : f32 to vector<8x128xf32>
    %1650 = arith.maximumf %1648, %1649 : vector<8x128xf32>
    %1651 = arith.divf %1644, %1650 : vector<8x128xf32>
    %cst_289 = arith.constant 1.000000e+00 : f32
    %1652 = vector.broadcast %cst_289 : f32 to vector<8x128xf32>
    %1653 = arith.subf %1652, %1651 : vector<8x128xf32>
    %1654 = arith.index_cast %c0_i32 : i32 to index
    %c0_290 = arith.constant 0 : index
    %c0_291 = arith.constant 0 : index
    %1655 = vector.load %arg3[%1654, %c0_290, %c0_291] : memref<1x8x128xf32, #tpu.memory_space<vmem>>, vector<1x8x128xf32>
    %1656 = vector.shape_cast %1655 : vector<1x8x128xf32> to vector<8x128xf32>
    %1657 = arith.mulf %1653, %1656 : vector<8x128xf32>
    %1658 = arith.index_cast %c0_i32 : i32 to index
    %c0_292 = arith.constant 0 : index
    %c0_293 = arith.constant 0 : index
    %1659 = vector.load %arg4[%1658, %c0_292, %c0_293] : memref<1x8x128xf32, #tpu.memory_space<vmem>>, vector<1x8x128xf32>
    %1660 = vector.shape_cast %1659 : vector<1x8x128xf32> to vector<8x128xf32>
    %1661 = vector.shape_cast %1657 : vector<8x128xf32> to vector<1x8x128xf32>
    tpu.vector_store %arg4[%1658, %c0_292, %c0_293], %1661 {strides = array<i32>} : memref<1x8x128xf32, #tpu.memory_space<vmem>>, vector<1x8x128xf32>,
    %c1_i32 = arith.constant 1 : i32
    return
  }
  func.func @transform_0(%arg0: i32) -> (i32, i32, i32, i32) {
    %c0_i32 = arith.constant 0 : i32
    %c0_i32_0 = arith.constant 0 : i32
    %c0_i32_1 = arith.constant 0 : i32
    %c0_i32_2 = arith.constant 0 : i32
    return %c0_i32, %arg0, %c0_i32_0, %c0_i32_1 : i32, i32, i32, i32
  }
  func.func @transform_1(%arg0: i32) -> (i32, i32, i32, i32) {
    %c0_i32 = arith.constant 0 : i32
    %c0_i32_0 = arith.constant 0 : i32
    %c0_i32_1 = arith.constant 0 : i32
    %c0_i32_2 = arith.constant 0 : i32
    return %c0_i32, %arg0, %c0_i32_0, %c0_i32_1 : i32, i32, i32, i32
  }
  func.func @transform_2(%arg0: i32) -> (i32, i32, i32) {
    %c0_i32 = arith.constant 0 : i32
    %c0_i32_0 = arith.constant 0 : i32
    %c0_i32_1 = arith.constant 0 : i32
    return %arg0, %c0_i32, %c0_i32_0 : i32, i32, i32
  }
  func.func @transform_3(%arg0: i32) -> (i32, i32, i32) {
    %c0_i32 = arith.constant 0 : i32
    %c0_i32_0 = arith.constant 0 : i32
    %c0_i32_1 = arith.constant 0 : i32
    return %arg0, %c0_i32, %c0_i32_0 : i32, i32, i32
  }
}

</mosaic_0001>

<llo_original>
// kernel: tpu_custom_call.1
$region0: #{tpu_custom_call.1}
  #allocation0 [shape = 'u32[]', space=smem, size = 0x4, offset = 0x4, fixed_abs, tag = 'smem constant byte address 0x4 - core index']
  #allocation1 [shape = 'u32[144,128]{1,0:T(1,128)}', space=vmem, size = 0x12000, scoped, tag = 'internal scratch']
  %s0 = inlined_call_operand.hbm [shape: f32[8,1,8,128], index: 0, kind: input, shape index: {}]
  %s1 = inlined_call_operand.hbm [shape: f32[8,1,8,128], index: 1, kind: input, shape index: {}]
  %s2 = inlined_call_operand.hbm [shape: f32[1,8,128], index: 2, kind: input, shape index: {}]
  %s3 = inlined_call_operand.hbm [shape: f32[1,8,128], index: 3, kind: output, shape index: {}]
  %s4 = sld [smem:[#allocation0]]
  $region34: #{tpu_custom_call.1} parent=0
    _
  %s6 = ssub.s32 1, %s4
  %s7 = scalar_select 0, %s6, %s4
  $region1: #{tpu_custom_call.1} parent=0
    #allocation2 [shape = 'u8[32768]{0}', space=vmem, size = 0x8000, scoped, tag = 'input window, operand 0, single buffered']
    #allocation3 [shape = 's32[1]{0}', space=sflag, size = 0x4, scoped, tag = 'scoped memory for tpu_custom_call.1']
    #allocation4 [shape = 's32[1]{0}', space=sflag, size = 0x4, scoped, tag = 'scoped memory for tpu_custom_call.1']
    #allocation5 [shape = 'u8[32768]{0}', space=vmem, size = 0x8000, scoped, tag = 'input window, operand 1, single buffered']
    #allocation6 [shape = 's32[1]{0}', space=sflag, size = 0x4, scoped, tag = 'scoped memory for tpu_custom_call.1']
    #allocation7 [shape = 'u8[4096]{0}', space=vmem, size = 0x1000, scoped, tag = 'input window, operand 2, single buffered']
    #allocation8 [shape = 'u8[4096]{0}', space=vmem, size = 0x1000, scoped, tag = 'output window, operand 0, single buffered']
    %8 = vsyncpa [#allocation3], 0
    %9 = vsyncpa [#allocation6], 0
    %10 = vsyncpa [#allocation4], 0
    // Predicated region
    $region2: #{tpu_custom_call.1} parent=1 // pred_check
      _
    $region3: #{tpu_custom_call.1} parent=1 // pred_check_branch
      %12 = sbr.rel (0) target = $region5
    $region4: #{tpu_custom_call.1} parent=1 // pred_region
      %s14 = ssub.s32 1024, 1024
      %15 = vsyncadd [#allocation3], %s14
      %s16 = sshll.u32 [#allocation2], 4
      %s17 = int_to_ptr.vmem [resolvable:$true] %s16
      %22 = dma.hbm_to_vmem [thread:$0]  %s0, 1024, %s17, [#allocation3], 128, 128, 8
    $region5: #{tpu_custom_call.1} parent=1 // pred_fallthru
      _
    // Predicated region
    $region6: #{tpu_custom_call.1} parent=1 // pred_check
      _
    $region7: #{tpu_custom_call.1} parent=1 // pred_check_branch
      %24 = sbr.rel (0) target = $region9
    $region8: #{tpu_custom_call.1} parent=1 // pred_region
      %s26 = ssub.s32 1024, 1024
      %27 = vsyncadd [#allocation6], %s26
      %s28 = sshll.u32 [#allocation5], 4
      %s29 = int_to_ptr.vmem [resolvable:$true] %s28
      %34 = dma.hbm_to_vmem [thread:$0]  %s1, 1024, %s29, [#allocation6], 128, 128, 8
    $region9: #{tpu_custom_call.1} parent=1 // pred_fallthru
      _
    // Predicated region
    $region10: #{tpu_custom_call.1} parent=1 // pred_check
      _
    $region11: #{tpu_custom_call.1} parent=1 // pred_check_branch
      %36 = sbr.rel (0) target = $region13
    $region12: #{tpu_custom_call.1} parent=1 // pred_region
      %s38 = ssub.s32 128, 128
      %39 = vsyncadd [#allocation6], %s38
      %s41 = sshll.u32 [#allocation7], 4
      %s42 = int_to_ptr.vmem [resolvable:$true] %s41
      %44 = dma.hbm_to_vmem [thread:$0]  %s2, 128, %s42, [#allocation6]
    $region13: #{tpu_custom_call.1} parent=1 // pred_fallthru
      _
    // Predicated region
    $region14: #{tpu_custom_call.1} parent=1 // pred_check
      _
    $region15: #{tpu_custom_call.1} parent=1 // pred_check_branch
      %46 = sbr.rel (0) target = $region17
    $region16: #{tpu_custom_call.1} parent=1 // pred_region
      %47 = dma.done [#allocation3], 1024
    $region17: #{tpu_custom_call.1} parent=1 // pred_fallthru
      _
    // Predicated region
    $region18: #{tpu_custom_call.1} parent=1 // pred_check
      _
    $region19: #{tpu_custom_call.1} parent=1 // pred_check_branch
      %49 = sbr.rel (0) target = $region21
    $region20: #{tpu_custom_call.1} parent=1 // pred_region
      %50 = dma.done [#allocation6], 1024
    $region21: #{tpu_custom_call.1} parent=1 // pred_fallthru
      _
    // Predicated region
    $region22: #{tpu_custom_call.1} parent=1 // pred_check
      _
    $region23: #{tpu_custom_call.1} parent=1 // pred_check_branch
      %52 = sbr.rel (0) target = $region25
    $region24: #{tpu_custom_call.1} parent=1 // pred_region
      %53 = dma.done [#allocation6], 128
    $region25: #{tpu_custom_call.1} parent=1 // pred_fallthru
      _
    %v54 = vld [vmem:[#allocation2] sm:$0xff]
    %s55 = scalar_lea.vmem [#allocation2], 8
    %v56 = vld [vmem:[%s55] sm:$0xff]
    %s57 = scalar_lea.vmem [#allocation2], 16
    %v58 = vld [vmem:[%s57] sm:$0xff]
    %s59 = scalar_lea.vmem [#allocation2], 24
    %v60 = vld [vmem:[%s59] sm:$0xff]
    %s61 = scalar_lea.vmem [#allocation2], 32
    %v62 = vld [vmem:[%s61] sm:$0xff]
    %s63 = scalar_lea.vmem [#allocation2], 40
    %v64 = vld [vmem:[%s63] sm:$0xff]
    %s65 = scalar_lea.vmem [#allocation2], 48
    %v66 = vld [vmem:[%s65] sm:$0xff]
    %v67 = vld [vmem:[#allocation5] sm:$0xff]
    %s68 = scalar_lea.vmem [#allocation5], 8
    %v69 = vld [vmem:[%s68] sm:$0xff]
    %s70 = scalar_lea.vmem [#allocation5], 16
    %v71 = vld [vmem:[%s70] sm:$0xff]
    %s72 = scalar_lea.vmem [#allocation5], 24
    %v73 = vld [vmem:[%s72] sm:$0xff]
    %s74 = scalar_lea.vmem [#allocation5], 32
    %v75 = vld [vmem:[%s74] sm:$0xff]
    %s76 = scalar_lea.vmem [#allocation5], 40
    %v77 = vld [vmem:[%s76] sm:$0xff]
    %s78 = scalar_lea.vmem [#allocation5], 48
    %v79 = vld [vmem:[%s78] sm:$0xff]
    %vm80 = vcmp.ne.f32.partialorder %v67, %v67
    %v81 = vsel %vm80, %v54, %v67
    %vm82 = vcmp.ne.f32.partialorder %v69, %v69
    %v83 = vsel %vm82, %v56, %v69
    %vm84 = vcmp.ne.f32.partialorder %v71, %v71
    %v85 = vsel %vm84, %v58, %v71
    %vm86 = vcmp.ne.f32.partialorder %v73, %v73
    %v87 = vsel %vm86, %v60, %v73
    %vm88 = vcmp.ne.f32.partialorder %v75, %v75
    %v89 = vsel %vm88, %v62, %v75
    %vm90 = vcmp.ne.f32.partialorder %v77, %v77
    %v91 = vsel %vm90, %v64, %v77
    %vm92 = vcmp.ne.f32.partialorder %v79, %v79
    %v93 = vsel %vm92, %v66, %v79
    %v94 = vand.u32 2147483647, %v93
    %vm95 = vcmp.le.f32.partialorder %v94, 0.7853982
    %vm96 = vcmp.lt.s32.totalorder %v93, 0
    %v97 = vand.u32 %v93, 2139095040
    %v98 = vshrl.u32 %v97, 23
    %v99 = vsub.s32 %v98, 127
    %v100 = vand.u32 2147483647, %v93
    %v101 = vand.u32 %v100, 8388607
    %v102 = vor.u32 %v101, 8388608
    %v103 = vsub.s32 0, %v102
    %v104 = vadd.s32 %v99, 1
    %vm105 = vcmp.gt.s32.totalorder %v104, 0
    %v106 = vsel %vm105, %v104, 0
    %v107 = vshrl.u32 %v106, 5
    %v108 = vand.u32 %v106, 31
    %v109 = vsub.s32 32, %v108
    %v110 = vshrl.u32 683565275, %v109
    %v111 = vshll.u32 683565275, %v108
    %v112 = vshrl.u32 2475754826, %v109
    %v113 = vor.u32 %v111, %v112
    %v114 = vshll.u32 2475754826, %v108
    %v115 = vshrl.u32 2131351028, %v109
    %v116 = vor.u32 %v114, %v115
    %v117 = vshll.u32 2131351028, %v108
    %v118 = vshrl.u32 2102212464, %v109
    %v119 = vor.u32 %v117, %v118
    %v120 = vshll.u32 2102212464, %v108
    %v121 = vshrl.u32 920167782, %v109
    %v122 = vor.u32 %v120, %v121
    %v123 = vshll.u32 920167782, %v108
    %v124 = vshrl.u32 1326507024, %v109
    %v125 = vor.u32 %v123, %v124
    %vm126 = vcmp.lt.s32.totalorder %v107, 1
    %vm127 = vcmp.lt.s32.totalorder %v107, 2
    %vm128 = vcmp.lt.s32.totalorder %v107, 3
    %vm129 = vcmp.lt.s32.totalorder %v107, 4
    %v130 = vsel %vm126, %v110, %v113
    %v131 = vsel %vm129, %v119, 2102212464
    %v132 = vsel %vm128, %v116, %v131
    %v133 = vsel %vm127, %v130, %v132
    %v134 = vsel %vm126, %v113, %v116
    %v135 = vsel %vm129, %v122, 920167782
    %v136 = vsel %vm128, %v119, %v135
    %v137 = vsel %vm127, %v134, %v136
    %v138 = vsel %vm126, %v116, %v119
    %v139 = vsel %vm129, %v125, 1326507024
    %v140 = vsel %vm128, %v122, %v139
    %v141 = vsel %vm127, %v138, %v140
    %v142 = vshll.u32 %v102, 8
    %v143 = vmul.u32.u64.compose %v142, %v141
    %v144 = vextract.low.u32 %v143
    %v145 = vextract.high.u32 %v143
    %v146 = vmul.u32.u64.compose %v142, %v137
    %v147 = vextract.low.u32 %v146
    %v148 = vextract.high.u32 %v146
    %v149 = vmul.u32 %v142, %v133
    %v150 = vadd.s32 %v145, %v147
    %vm151 = vc.u32 %v145, %v147
    %v152 = vadd.s32 %v148, 1
    %v153 = vsel %vm151, %v152, %v148
    %v154 = vadd.s32 %v149, %v153
    %v155 = vadd.s32 %v154, 536870912
    %v156 = vshrl.u32 %v155, 30
    %v157 = vshll.u32 %v156, 30
    %v158 = vsub.s32 %v154, %v157
    %vm159 = vcmp.lt.s32.totalorder %v158, 0
    %v160 = vsub.s32 0, %v158
    %v161 = vsel %vm159, %v160, %v158
    %v162 = vclz %v161
    %v163 = vsub.s32 %v162, 2
    %vm164 = vcmp.gt.s32.totalorder 0, %v163
    %v165 = vsel %vm164, 0, %v163
    %v166 = vsub.s32 32, %v165
    %v167 = vshll.u32 %v158, %v165
    %v168 = vshrl.u32 %v150, %v166
    %v169 = vor.u32 %v167, %v168
    %v170 = vsub.s32 4294967266, %v165
    %v171 = vadd.s32 %v170, 127
    %v172 = vshll.u32 %v171, 23
    %v173 = vor.u32 4788187, %v172
    %v174 = vand.u32 2147483647, %v173
    %v176 = vcvt.s32.f32 %v169
    %v177 = vmul.f32 %v176, %v174
    %v178 = vxor.u32 %v177, 2147483648
    %v179 = vsel %vm96, %v178, %v177
    %v180 = vsub.s32 4, %v156
    %v181 = vsel %vm96, %v180, %v156
    %v182 = vsel %vm95, %v93, %v179
    %v183 = vsel %vm95, 0, %v181
    %v184 = vcosq.f32.pop %v182
    %v185 = vsinq.f32.pop %v182
    %vm186 = vweird.f32 %v93
    %v187 = vand.u32 %v183, 3
    %vm188 = vcmp.lt.s32.totalorder %v187, 2
    %vm189 = vcmp.eq.s32.totalorder %v187, 0
    %v190 = vxor.u32 %v185, 2147483648
    %v191 = vsel %vm189, %v184, %v190
    %vm192 = vcmp.eq.s32.totalorder %v187, 2
    %v193 = vxor.u32 %v184, 2147483648
    %v194 = vsel %vm192, %v193, %v185
    %v195 = vsel %vm188, %v191, %v194
    %v196 = vsel %vm186, nan, %v195
    %v197 = vand.u32 2147483647, %v93
    %vm198 = vcmp.le.f32.partialorder %v197, 0.7853982
    %vm199 = vcmp.lt.s32.totalorder %v93, 0
    %v200 = vand.u32 %v93, 2139095040
    %v201 = vshrl.u32 %v200, 23
    %v202 = vsub.s32 %v201, 127
    %v203 = vand.u32 2147483647, %v93
    %v204 = vand.u32 %v203, 8388607
    %v205 = vor.u32 %v204, 8388608
    %v206 = vsub.s32 0, %v205
    %v207 = vadd.s32 %v202, 1
    %vm208 = vcmp.gt.s32.totalorder %v207, 0
    %v209 = vsel %vm208, %v207, 0
    %v210 = vshrl.u32 %v209, 5
    %v211 = vand.u32 %v209, 31
    %v212 = vsub.s32 32, %v211
    %v213 = vshrl.u32 683565275, %v212
    %v214 = vshll.u32 683565275, %v211
    %v215 = vshrl.u32 2475754826, %v212
    %v216 = vor.u32 %v214, %v215
    %v217 = vshll.u32 2475754826, %v211
    %v218 = vshrl.u32 2131351028, %v212
    %v219 = vor.u32 %v217, %v218
    %v220 = vshll.u32 2131351028, %v211
    %v221 = vshrl.u32 2102212464, %v212
    %v222 = vor.u32 %v220, %v221
    %v223 = vshll.u32 2102212464, %v211
    %v224 = vshrl.u32 920167782, %v212
    %v225 = vor.u32 %v223, %v224
    %v226 = vshll.u32 920167782, %v211
    %v227 = vshrl.u32 1326507024, %v212
    %v228 = vor.u32 %v226, %v227
    %vm229 = vcmp.lt.s32.totalorder %v210, 1
    %vm230 = vcmp.lt.s32.totalorder %v210, 2
    %vm231 = vcmp.lt.s32.totalorder %v210, 3
    %vm232 = vcmp.lt.s32.totalorder %v210, 4
    %v233 = vsel %vm229, %v213, %v216
    %v234 = vsel %vm232, %v222, 2102212464
    %v235 = vsel %vm231, %v219, %v234
    %v236 = vsel %vm230, %v233, %v235
    %v237 = vsel %vm229, %v216, %v219
    %v238 = vsel %vm232, %v225, 920167782
    %v239 = vsel %vm231, %v222, %v238
    %v240 = vsel %vm230, %v237, %v239
    %v241 = vsel %vm229, %v219, %v222
    %v242 = vsel %vm232, %v228, 1326507024
    %v243 = vsel %vm231, %v225, %v242
    %v244 = vsel %vm230, %v241, %v243
    %v245 = vshll.u32 %v205, 8
    %v246 = vmul.u32.u64.compose %v245, %v244
    %v247 = vextract.low.u32 %v246
    %v248 = vextract.high.u32 %v246
    %v249 = vmul.u32.u64.compose %v245, %v240
    %v250 = vextract.low.u32 %v249
    %v251 = vextract.high.u32 %v249
    %v252 = vmul.u32 %v245, %v236
    %v253 = vadd.s32 %v248, %v250
    %vm254 = vc.u32 %v248, %v250
    %v255 = vadd.s32 %v251, 1
    %v256 = vsel %vm254, %v255, %v251
    %v257 = vadd.s32 %v252, %v256
    %v258 = vadd.s32 %v257, 536870912
    %v259 = vshrl.u32 %v258, 30
    %v260 = vshll.u32 %v259, 30
    %v261 = vsub.s32 %v257, %v260
    %vm262 = vcmp.lt.s32.totalorder %v261, 0
    %v263 = vsub.s32 0, %v261
    %v264 = vsel %vm262, %v263, %v261
    %v265 = vclz %v264
    %v266 = vsub.s32 %v265, 2
    %vm267 = vcmp.gt.s32.totalorder 0, %v266
    %v268 = vsel %vm267, 0, %v266
    %v269 = vsub.s32 32, %v268
    %v270 = vshll.u32 %v261, %v268
    %v271 = vshrl.u32 %v253, %v269
    %v272 = vor.u32 %v270, %v271
    %v273 = vsub.s32 4294967266, %v268
    %v274 = vadd.s32 %v273, 127
    %v275 = vshll.u32 %v274, 23
    %v276 = vor.u32 4788187, %v275
    %v277 = vand.u32 2147483647, %v276
    %v279 = vcvt.s32.f32 %v272
    %v280 = vmul.f32 %v279, %v277
    %v281 = vxor.u32 %v280, 2147483648
    %v282 = vsel %vm199, %v281, %v280
    %v283 = vsub.s32 4, %v259
    %v284 = vsel %vm199, %v283, %v259
    %v285 = vsel %vm198, %v93, %v282
    %v286 = vsel %vm198, 0, %v284
    %v287 = vcosq.f32.pop %v285
    %v288 = vsinq.f32.pop %v285
    %vm289 = vweird.f32 %v93
    %v290 = vadd.s32 %v286, 3
    %v291 = vand.u32 %v290, 3
    %vm292 = vcmp.lt.s32.totalorder %v291, 2
    %vm293 = vcmp.eq.s32.totalorder %v291, 0
    %v294 = vxor.u32 %v288, 2147483648
    %v295 = vsel %vm293, %v287, %v294
    %vm296 = vcmp.eq.s32.totalorder %v291, 2
    %v297 = vxor.u32 %v287, 2147483648
    %v298 = vsel %vm296, %v297, %v288
    %v299 = vsel %vm292, %v295, %v298
    %v300 = vsel %vm289, nan, %v299
    %v301 = vsub.f32 %v54, %v81
    %v302 = vsub.f32 %v56, %v83
    %v303 = vmul.f32 %v196, %v301
    %v304 = vmul.f32 %v300, %v302
    %v305 = vadd.f32 %v303, %v304
    %v306 = vmul.f32 %v196, %v302
    %v307 = vmul.f32 %v300, %v301
    %v308 = vsub.f32 %v306, %v307
    %v309 = vsub.f32 %v66, %v93
    %v310 = vand.u32 2147483647, %v309
    %vm311 = vcmp.le.f32.partialorder %v310, 0.7853982
    %vm312 = vcmp.lt.s32.totalorder %v309, 0
    %v313 = vand.u32 %v309, 2139095040
    %v314 = vshrl.u32 %v313, 23
    %v315 = vsub.s32 %v314, 127
    %v316 = vand.u32 2147483647, %v309
    %v317 = vand.u32 %v316, 8388607
    %v318 = vor.u32 %v317, 8388608
    %v319 = vsub.s32 0, %v318
    %v320 = vadd.s32 %v315, 1
    %vm321 = vcmp.gt.s32.totalorder %v320, 0
    %v322 = vsel %vm321, %v320, 0
    %v323 = vshrl.u32 %v322, 5
    %v324 = vand.u32 %v322, 31
    %v325 = vsub.s32 32, %v324
    %v326 = vshrl.u32 683565275, %v325
    %v327 = vshll.u32 683565275, %v324
    %v328 = vshrl.u32 2475754826, %v325
    %v329 = vor.u32 %v327, %v328
    %v330 = vshll.u32 2475754826, %v324
    %v331 = vshrl.u32 2131351028, %v325
    %v332 = vor.u32 %v330, %v331
    %v333 = vshll.u32 2131351028, %v324
    %v334 = vshrl.u32 2102212464, %v325
    %v335 = vor.u32 %v333, %v334
    %v336 = vshll.u32 2102212464, %v324
    %v337 = vshrl.u32 920167782, %v325
    %v338 = vor.u32 %v336, %v337
    %v339 = vshll.u32 920167782, %v324
    %v340 = vshrl.u32 1326507024, %v325
    %v341 = vor.u32 %v339, %v340
    %vm342 = vcmp.lt.s32.totalorder %v323, 1
    %vm343 = vcmp.lt.s32.totalorder %v323, 2
    %vm344 = vcmp.lt.s32.totalorder %v323, 3
    %vm345 = vcmp.lt.s32.totalorder %v323, 4
    %v346 = vsel %vm342, %v326, %v329
    %v347 = vsel %vm345, %v335, 2102212464
    %v348 = vsel %vm344, %v332, %v347
    %v349 = vsel %vm343, %v346, %v348
    %v350 = vsel %vm342, %v329, %v332
    %v351 = vsel %vm345, %v338, 920167782
    %v352 = vsel %vm344, %v335, %v351
    %v353 = vsel %vm343, %v350, %v352
    %v354 = vsel %vm342, %v332, %v335
    %v355 = vsel %vm345, %v341, 1326507024
    %v356 = vsel %vm344, %v338, %v355
    %v357 = vsel %vm343, %v354, %v356
    %v358 = vshll.u32 %v318, 8
    %v359 = vmul.u32.u64.compose %v358, %v357
    %v360 = vextract.low.u32 %v359
    %v361 = vextract.high.u32 %v359
    %v362 = vmul.u32.u64.compose %v358, %v353
    %v363 = vextract.low.u32 %v362
    %v364 = vextract.high.u32 %v362
    %v365 = vmul.u32 %v358, %v349
    %v366 = vadd.s32 %v361, %v363
    %vm367 = vc.u32 %v361, %v363
    %v368 = vadd.s32 %v364, 1
    %v369 = vsel %vm367, %v368, %v364
    %v370 = vadd.s32 %v365, %v369
    %v371 = vadd.s32 %v370, 536870912
    %v372 = vshrl.u32 %v371, 30
    %v373 = vshll.u32 %v372, 30
    %v374 = vsub.s32 %v370, %v373
    %vm375 = vcmp.lt.s32.totalorder %v374, 0
    %v376 = vsub.s32 0, %v374
    %v377 = vsel %vm375, %v376, %v374
    %v378 = vclz %v377
    %v379 = vsub.s32 %v378, 2
    %vm380 = vcmp.gt.s32.totalorder 0, %v379
    %v381 = vsel %vm380, 0, %v379
    %v382 = vsub.s32 32, %v381
    %v383 = vshll.u32 %v374, %v381
    %v384 = vshrl.u32 %v366, %v382
    %v385 = vor.u32 %v383, %v384
    %v386 = vsub.s32 4294967266, %v381
    %v387 = vadd.s32 %v386, 127
    %v388 = vshll.u32 %v387, 23
    %v389 = vor.u32 4788187, %v388
    %v390 = vand.u32 2147483647, %v389
    %v392 = vcvt.s32.f32 %v385
    %v393 = vmul.f32 %v392, %v390
    %v394 = vxor.u32 %v393, 2147483648
    %v395 = vsel %vm312, %v394, %v393
    %v396 = vsub.s32 4, %v372
    %v397 = vsel %vm312, %v396, %v372
    %v398 = vsel %vm311, %v309, %v395
    %v399 = vsel %vm311, 0, %v397
    %v400 = vcosq.f32.pop %v398
    %v401 = vsinq.f32.pop %v398
    %vm402 = vweird.f32 %v309
    %v403 = vand.u32 %v399, 3
    %vm404 = vcmp.lt.s32.totalorder %v403, 2
    %vm405 = vcmp.eq.s32.totalorder %v403, 0
    %v406 = vxor.u32 %v401, 2147483648
    %v407 = vsel %vm405, %v400, %v406
    %vm408 = vcmp.eq.s32.totalorder %v403, 2
    %v409 = vxor.u32 %v400, 2147483648
    %v410 = vsel %vm408, %v409, %v401
    %v411 = vsel %vm404, %v407, %v410
    %v412 = vsel %vm402, nan, %v411
    %v413 = vand.u32 2147483647, %v309
    %vm414 = vcmp.le.f32.partialorder %v413, 0.7853982
    %vm415 = vcmp.lt.s32.totalorder %v309, 0
    %v416 = vand.u32 %v309, 2139095040
    %v417 = vshrl.u32 %v416, 23
    %v418 = vsub.s32 %v417, 127
    %v419 = vand.u32 2147483647, %v309
    %v420 = vand.u32 %v419, 8388607
    %v421 = vor.u32 %v420, 8388608
    %v422 = vsub.s32 0, %v421
    %v423 = vadd.s32 %v418, 1
    %vm424 = vcmp.gt.s32.totalorder %v423, 0
    %v425 = vsel %vm424, %v423, 0
    %v426 = vshrl.u32 %v425, 5
    %v427 = vand.u32 %v425, 31
    %v428 = vsub.s32 32, %v427
    %v429 = vshrl.u32 683565275, %v428
    %v430 = vshll.u32 683565275, %v427
    %v431 = vshrl.u32 2475754826, %v428
    %v432 = vor.u32 %v430, %v431
    %v433 = vshll.u32 2475754826, %v427
    %v434 = vshrl.u32 2131351028, %v428
    %v435 = vor.u32 %v433, %v434
    %v436 = vshll.u32 2131351028, %v427
    %v437 = vshrl.u32 2102212464, %v428
    %v438 = vor.u32 %v436, %v437
    %v439 = vshll.u32 2102212464, %v427
    %v440 = vshrl.u32 920167782, %v428
    %v441 = vor.u32 %v439, %v440
    %v442 = vshll.u32 920167782, %v427
    %v443 = vshrl.u32 1326507024, %v428
    %v444 = vor.u32 %v442, %v443
    %vm445 = vcmp.lt.s32.totalorder %v426, 1
    %vm446 = vcmp.lt.s32.totalorder %v426, 2
    %vm447 = vcmp.lt.s32.totalorder %v426, 3
    %vm448 = vcmp.lt.s32.totalorder %v426, 4
    %v449 = vsel %vm445, %v429, %v432
    %v450 = vsel %vm448, %v438, 2102212464
    %v451 = vsel %vm447, %v435, %v450
    %v452 = vsel %vm446, %v449, %v451
    %v453 = vsel %vm445, %v432, %v435
    %v454 = vsel %vm448, %v441, 920167782
    %v455 = vsel %vm447, %v438, %v454
    %v456 = vsel %vm446, %v453, %v455
    %v457 = vsel %vm445, %v435, %v438
    %v458 = vsel %vm448, %v444, 1326507024
    %v459 = vsel %vm447, %v441, %v458
    %v460 = vsel %vm446, %v457, %v459
    %v461 = vshll.u32 %v421, 8
    %v462 = vmul.u32.u64.compose %v461, %v460
    %v463 = vextract.low.u32 %v462
    %v464 = vextract.high.u32 %v462
    %v465 = vmul.u32.u64.compose %v461, %v456
    %v466 = vextract.low.u32 %v465
    %v467 = vextract.high.u32 %v465
    %v468 = vmul.u32 %v461, %v452
    %v469 = vadd.s32 %v464, %v466
    %vm470 = vc.u32 %v464, %v466
    %v471 = vadd.s32 %v467, 1
    %v472 = vsel %vm470, %v471, %v467
    %v473 = vadd.s32 %v468, %v472
    %v474 = vadd.s32 %v473, 536870912
    %v475 = vshrl.u32 %v474, 30
    %v476 = vshll.u32 %v475, 30
    %v477 = vsub.s32 %v473, %v476
    %vm478 = vcmp.lt.s32.totalorder %v477, 0
    %v479 = vsub.s32 0, %v477
    %v480 = vsel %vm478, %v479, %v477
    %v481 = vclz %v480
    %v482 = vsub.s32 %v481, 2
    %vm483 = vcmp.gt.s32.totalorder 0, %v482
    %v484 = vsel %vm483, 0, %v482
    %v485 = vsub.s32 32, %v484
    %v486 = vshll.u32 %v477, %v484
    %v487 = vshrl.u32 %v469, %v485
    %v488 = vor.u32 %v486, %v487
    %v489 = vsub.s32 4294967266, %v484
    %v490 = vadd.s32 %v489, 127
    %v491 = vshll.u32 %v490, 23
    %v492 = vor.u32 4788187, %v491
    %v493 = vand.u32 2147483647, %v492
    %v495 = vcvt.s32.f32 %v488
    %v496 = vmul.f32 %v495, %v493
    %v497 = vxor.u32 %v496, 2147483648
    %v498 = vsel %vm415, %v497, %v496
    %v499 = vsub.s32 4, %v475
    %v500 = vsel %vm415, %v499, %v475
    %v501 = vsel %vm414, %v309, %v498
    %v502 = vsel %vm414, 0, %v500
    %v503 = vcosq.f32.pop %v501
    %v504 = vsinq.f32.pop %v501
    %vm505 = vweird.f32 %v309
    %v506 = vadd.s32 %v502, 3
    %v507 = vand.u32 %v506, 3
    %vm508 = vcmp.lt.s32.totalorder %v507, 2
    %vm509 = vcmp.eq.s32.totalorder %v507, 0
    %v510 = vxor.u32 %v504, 2147483648
    %v511 = vsel %vm509, %v503, %v510
    %vm512 = vcmp.eq.s32.totalorder %v507, 2
    %v513 = vxor.u32 %v503, 2147483648
    %v514 = vsel %vm512, %v513, %v504
    %v515 = vsel %vm508, %v511, %v514
    %v516 = vsel %vm505, nan, %v515
    %v517 = vmul.f32 %v60, 0.5
    %v518 = vmul.f32 %v62, 0.5
    %v519 = vmul.f32 %v412, %v517
    %v520 = vmul.f32 %v516, %v517
    %v521 = vmul.f32 %v412, %v518
    %v522 = vmul.f32 %v516, %v518
    %v523 = vadd.f32 %v305, %v519
    %v524 = vsub.f32 %v523, %v522
    %v525 = vadd.f32 %v308, %v520
    %v526 = vadd.f32 %v525, %v521
    %v527 = vsub.f32 %v305, %v519
    %v528 = vsub.f32 %v527, %v522
    %v529 = vsub.f32 %v308, %v520
    %v530 = vadd.f32 %v529, %v521
    %v531 = vadd.f32 %v527, %v522
    %v532 = vsub.f32 %v529, %v521
    %v533 = vadd.f32 %v523, %v522
    %v534 = vsub.f32 %v525, %v521
    %v535 = vmul.f32 %v87, 0.5
    %v536 = vmul.f32 %v89, 0.5
    %v537 = vsub.f32 0.0, %v536
    %v538 = vsub.f32 0.0, %v535
    %v539 = vsub.f32 %v536, %v526
    %v540 = vsub.f32 %v536, %v530
    %vm541 = vcmp.ge.f32.partialorder %v539, 0.0
    %vm542 = vcmp.ge.f32.partialorder %v540, 0.0
    %vm543 = vmxor %vm541, %vm542
    %vm544 = vmand %vm541, %vm542
    %vm545 = vmxor %vm542, 1
    %vm546 = vmand %vm541, %vm545
    %v547 = vsub.f32 %v539, %v540
    %v548 = vsel %vm543, %v547, 1.0
    %v549 = vrcp.pop %v548
    %v550 = vmul.f32 %v539, %v549
    %v551 = vsub.f32 %v528, %v524
    %v552 = vmul.f32 %v550, %v551
    %v553 = vadd.f32 %v524, %v552
    %v554 = vsel %vm543, %v553, %v528
    %v555 = vsel %vm544, %v530, %v536
    %v556 = vsel %vm546, %v553, %v528
    %v557 = vsel %vm542, %v530, %v536
    %v558 = vsub.f32 %v554, %v538
    %v559 = vsub.f32 %v556, %v538
    %vm560 = vcmp.ge.f32.partialorder %v558, 0.0
    %vm561 = vcmp.ge.f32.partialorder %v559, 0.0
    %vm562 = vmxor %vm560, %vm561
    %vm563 = vmand %vm560, %vm561
    %vm564 = vmxor %vm561, 1
    %vm565 = vmand %vm560, %vm564
    %v566 = vsub.f32 %v558, %v559
    %v567 = vsel %vm562, %v566, 1.0
    %v568 = vrcp.pop %v567
    %v569 = vmul.f32 %v558, %v568
    %v570 = vsub.f32 %v557, %v555
    %v571 = vmul.f32 %v569, %v570
    %v572 = vadd.f32 %v555, %v571
    %v573 = vsel %vm562, %v572, %v557
    %v574 = vsel %vm563, %v556, %v538
    %v575 = vsel %vm565, %v572, %v557
    %v576 = vsel %vm561, %v556, %v538
    %v577 = vsub.f32 %v573, %v537
    %v578 = vsub.f32 %v575, %v537
    %vm579 = vcmp.ge.f32.partialorder %v577, 0.0
    %vm580 = vcmp.ge.f32.partialorder %v578, 0.0
    %vm581 = vmxor %vm579, %vm580
    %vm582 = vmand %vm579, %vm580
    %vm583 = vmxor %vm580, 1
    %vm584 = vmand %vm579, %vm583
    %v585 = vsub.f32 %v577, %v578
    %v586 = vsel %vm581, %v585, 1.0
    %v587 = vrcp.pop %v586
    %v588 = vmul.f32 %v577, %v587
    %v589 = vsub.f32 %v576, %v574
    %v590 = vmul.f32 %v588, %v589
    %v591 = vadd.f32 %v574, %v590
    %v592 = vsel %vm581, %v591, %v576
    %v593 = vsel %vm582, %v575, %v537
    %v594 = vsel %vm584, %v591, %v576
    %v595 = vsel %vm580, %v575, %v537
    %v596 = vsub.f32 %v535, %v592
    %v597 = vsub.f32 %v535, %v594
    %vm598 = vcmp.ge.f32.partialorder %v596, 0.0
    %vm599 = vcmp.ge.f32.partialorder %v597, 0.0
    %vm600 = vmxor %vm598, %vm599
    %vm601 = vmand %vm598, %vm599
    %vm602 = vmxor %vm599, 1
    %vm603 = vmand %vm598, %vm602
    %v604 = vsub.f32 %v596, %v597
    %v605 = vsel %vm600, %v604, 1.0
    %v606 = vrcp.pop %v605
    %v607 = vmul.f32 %v596, %v606
    %v608 = vsub.f32 %v595, %v593
    %v609 = vmul.f32 %v607, %v608
    %v610 = vadd.f32 %v593, %v609
    %v611 = vsel %vm600, %v610, %v595
    %v612 = vsel %vm601, %v594, %v535
    %v613 = vsel %vm603, %v610, %v595
    %v614 = vsel %vm599, %v594, %v535
    %v615 = vmul.f32 %v612, %v613
    %v616 = vmul.f32 %v614, %v611
    %v617 = vsub.f32 %v615, %v616
    %v618 = vsub.f32 %v536, %v532
    %vm619 = vcmp.ge.f32.partialorder %v618, 0.0
    %vm620 = vmxor %vm542, %vm619
    %vm621 = vmand %vm542, %vm619
    %vm622 = vmxor %vm619, 1
    %vm623 = vmand %vm542, %vm622
    %v624 = vsub.f32 %v540, %v618
    %v625 = vsel %vm620, %v624, 1.0
    %v626 = vrcp.pop %v625
    %v627 = vmul.f32 %v540, %v626
    %v628 = vsub.f32 %v531, %v528
    %v629 = vmul.f32 %v627, %v628
    %v630 = vadd.f32 %v528, %v629
    %v631 = vsel %vm620, %v630, %v531
    %v632 = vsel %vm621, %v532, %v536
    %v633 = vsel %vm623, %v630, %v531
    %v634 = vsel %vm619, %v532, %v536
    %v635 = vsub.f32 %v631, %v538
    %vm636 = vcmp.ge.f32.partialorder %v635, 0.0
    %vm637 = vmxor %vm561, %vm636
    %vm638 = vmand %vm561, %vm636
    %vm639 = vmxor %vm636, 1
    %vm640 = vmand %vm561, %vm639
    %v641 = vsub.f32 %v559, %v635
    %v642 = vsel %vm637, %v641, 1.0
    %v643 = vrcp.pop %v642
    %v644 = vmul.f32 %v559, %v643
    %v645 = vsub.f32 %v632, %v557
    %v646 = vmul.f32 %v644, %v645
    %v647 = vadd.f32 %v557, %v646
    %v648 = vsel %vm637, %v647, %v632
    %v649 = vsel %vm638, %v631, %v538
    %v650 = vsel %vm640, %v647, %v632
    %v651 = vsel %vm636, %v631, %v538
    %v652 = vsub.f32 %v648, %v537
    %vm653 = vcmp.ge.f32.partialorder %v652, 0.0
    %vm654 = vmxor %vm580, %vm653
    %vm655 = vmand %vm580, %vm653
    %vm656 = vmxor %vm653, 1
    %vm657 = vmand %vm580, %vm656
    %v658 = vsub.f32 %v578, %v652
    %v659 = vsel %vm654, %v658, 1.0
    %v660 = vrcp.pop %v659
    %v661 = vmul.f32 %v578, %v660
    %v662 = vsub.f32 %v649, %v576
    %v663 = vmul.f32 %v661, %v662
    %v664 = vadd.f32 %v576, %v663
    %v665 = vsel %vm654, %v664, %v649
    %v666 = vsel %vm655, %v648, %v537
    %v667 = vsel %vm657, %v664, %v649
    %v668 = vsel %vm653, %v648, %v537
    %v669 = vsub.f32 %v535, %v665
    %vm670 = vcmp.ge.f32.partialorder %v669, 0.0
    %vm671 = vmxor %vm599, %vm670
    %vm672 = vmand %vm599, %vm670
    %vm673 = vmxor %vm670, 1
    %vm674 = vmand %vm599, %vm673
    %v675 = vsub.f32 %v597, %v669
    %v676 = vsel %vm671, %v675, 1.0
    %v677 = vrcp.pop %v676
    %v678 = vmul.f32 %v597, %v677
    %v679 = vsub.f32 %v666, %v595
    %v680 = vmul.f32 %v678, %v679
    %v681 = vadd.f32 %v595, %v680
    %v682 = vsel %vm671, %v681, %v666
    %v683 = vsel %vm672, %v665, %v535
    %v684 = vsel %vm674, %v681, %v666
    %v685 = vsel %vm670, %v665, %v535
    %v686 = vmul.f32 %v614, %v682
    %v687 = vmul.f32 %v683, %v613
    %v688 = vsub.f32 %v686, %v687
    %v689 = vmul.f32 %v683, %v684
    %v690 = vmul.f32 %v685, %v682
    %v691 = vsub.f32 %v689, %v690
    %v692 = vsub.f32 %v535, %v667
    %vm693 = vcmp.ge.f32.partialorder %v692, 0.0
    %vm694 = vmxor %vm670, %vm693
    %vm695 = vmand %vm670, %vm693
    %vm696 = vmxor %vm693, 1
    %vm697 = vmand %vm670, %vm696
    %v698 = vsub.f32 %v669, %v692
    %v699 = vsel %vm694, %v698, 1.0
    %v700 = vrcp.pop %v699
    %v701 = vmul.f32 %v669, %v700
    %v702 = vsub.f32 %v668, %v666
    %v703 = vmul.f32 %v701, %v702
    %v704 = vadd.f32 %v666, %v703
    %v705 = vsel %vm694, %v704, %v668
    %v706 = vsel %vm695, %v667, %v535
    %v707 = vsel %vm697, %v704, %v668
    %v708 = vsel %vm693, %v667, %v535
    %v709 = vmul.f32 %v685, %v705
    %v710 = vmul.f32 %v706, %v684
    %v711 = vsub.f32 %v709, %v710
    %v712 = vmul.f32 %v706, %v707
    %v713 = vmul.f32 %v708, %v705
    %v714 = vsub.f32 %v712, %v713
    %v715 = vadd.f32 %v617, %v714
    %v716 = vsub.f32 %v650, %v537
    %vm717 = vcmp.ge.f32.partialorder %v716, 0.0
    %vm718 = vmxor %vm653, %vm717
    %vm719 = vmand %vm653, %vm717
    %vm720 = vmxor %vm717, 1
    %vm721 = vmand %vm653, %vm720
    %v722 = vsub.f32 %v652, %v716
    %v723 = vsel %vm718, %v722, 1.0
    %v724 = vrcp.pop %v723
    %v725 = vmul.f32 %v652, %v724
    %v726 = vsub.f32 %v651, %v649
    %v727 = vmul.f32 %v725, %v726
    %v728 = vadd.f32 %v649, %v727
    %v729 = vsel %vm718, %v728, %v651
    %v730 = vsel %vm719, %v650, %v537
    %v731 = vsel %vm721, %v728, %v651
    %v732 = vsel %vm717, %v650, %v537
    %v733 = vsub.f32 %v535, %v729
    %vm734 = vcmp.ge.f32.partialorder %v733, 0.0
    %vm735 = vmxor %vm693, %vm734
    %vm736 = vmand %vm693, %vm734
    %vm737 = vmxor %vm734, 1
    %vm738 = vmand %vm693, %vm737
    %v739 = vsub.f32 %v692, %v733
    %v740 = vsel %vm735, %v739, 1.0
    %v741 = vrcp.pop %v740
    %v742 = vmul.f32 %v692, %v741
    %v743 = vsub.f32 %v730, %v668
    %v744 = vmul.f32 %v742, %v743
    %v745 = vadd.f32 %v668, %v744
    %v746 = vsel %vm735, %v745, %v730
    %v747 = vsel %vm736, %v729, %v535
    %v748 = vsel %vm738, %v745, %v730
    %v749 = vsel %vm734, %v729, %v535
    %v750 = vmul.f32 %v708, %v746
    %v751 = vmul.f32 %v747, %v707
    %v752 = vsub.f32 %v750, %v751
    %v753 = vadd.f32 %v688, %v752
    %v754 = vmul.f32 %v747, %v748
    %v755 = vmul.f32 %v749, %v746
    %v756 = vsub.f32 %v754, %v755
    %v757 = vadd.f32 %v691, %v756
    %v758 = vsub.f32 %v535, %v731
    %vm759 = vcmp.ge.f32.partialorder %v758, 0.0
    %vm760 = vmxor %vm734, %vm759
    %vm761 = vmand %vm734, %vm759
    %vm762 = vmxor %vm759, 1
    %vm763 = vmand %vm734, %vm762
    %v764 = vsub.f32 %v733, %v758
    %v765 = vsel %vm760, %v764, 1.0
    %v766 = vrcp.pop %v765
    %v767 = vmul.f32 %v733, %v766
    %v768 = vsub.f32 %v732, %v730
    %v769 = vmul.f32 %v767, %v768
    %v770 = vadd.f32 %v730, %v769
    %v771 = vsel %vm760, %v770, %v732
    %v772 = vsel %vm761, %v731, %v535
    %v773 = vsel %vm763, %v770, %v732
    %v774 = vsel %vm759, %v731, %v535
    %v775 = vmul.f32 %v749, %v771
    %v776 = vmul.f32 %v772, %v748
    %v777 = vsub.f32 %v775, %v776
    %v778 = vadd.f32 %v711, %v777
    %v779 = vmul.f32 %v772, %v773
    %v780 = vmul.f32 %v774, %v771
    %v781 = vsub.f32 %v779, %v780
    %v782 = vadd.f32 %v715, %v781
    %v783 = vsub.f32 %v633, %v538
    %vm784 = vcmp.ge.f32.partialorder %v783, 0.0
    %vm785 = vmxor %vm636, %vm784
    %vm786 = vmand %vm636, %vm784
    %vm787 = vmxor %vm784, 1
    %vm788 = vmand %vm636, %vm787
    %v789 = vsub.f32 %v635, %v783
    %v790 = vsel %vm785, %v789, 1.0
    %v791 = vrcp.pop %v790
    %v792 = vmul.f32 %v635, %v791
    %v793 = vsub.f32 %v634, %v632
    %v794 = vmul.f32 %v792, %v793
    %v795 = vadd.f32 %v632, %v794
    %v796 = vsel %vm785, %v795, %v634
    %v797 = vsel %vm786, %v633, %v538
    %v798 = vsel %vm788, %v795, %v634
    %v799 = vsel %vm784, %v633, %v538
    %v800 = vsub.f32 %v796, %v537
    %vm801 = vcmp.ge.f32.partialorder %v800, 0.0
    %vm802 = vmxor %vm717, %vm801
    %vm803 = vmand %vm717, %vm801
    %vm804 = vmxor %vm801, 1
    %vm805 = vmand %vm717, %vm804
    %v806 = vsub.f32 %v716, %v800
    %v807 = vsel %vm802, %v806, 1.0
    %v808 = vrcp.pop %v807
    %v809 = vmul.f32 %v716, %v808
    %v810 = vsub.f32 %v797, %v651
    %v811 = vmul.f32 %v809, %v810
    %v812 = vadd.f32 %v651, %v811
    %v813 = vsel %vm802, %v812, %v797
    %v814 = vsel %vm803, %v796, %v537
    %v815 = vsel %vm805, %v812, %v797
    %v816 = vsel %vm801, %v796, %v537
    %v817 = vsub.f32 %v535, %v813
    %vm818 = vcmp.ge.f32.partialorder %v817, 0.0
    %vm819 = vmxor %vm759, %vm818
    %vm820 = vmand %vm759, %vm818
    %vm821 = vmxor %vm818, 1
    %vm822 = vmand %vm759, %vm821
    %v823 = vsub.f32 %v758, %v817
    %v824 = vsel %vm819, %v823, 1.0
    %v825 = vrcp.pop %v824
    %v826 = vmul.f32 %v758, %v825
    %v827 = vsub.f32 %v814, %v732
    %v828 = vmul.f32 %v826, %v827
    %v829 = vadd.f32 %v732, %v828
    %v830 = vsel %vm819, %v829, %v814
    %v831 = vsel %vm820, %v813, %v535
    %v832 = vsel %vm822, %v829, %v814
    %v833 = vsel %vm818, %v813, %v535
    %v834 = vmul.f32 %v774, %v830
    %v835 = vmul.f32 %v831, %v773
    %v836 = vsub.f32 %v834, %v835
    %v837 = vadd.f32 %v753, %v836
    %v838 = vmul.f32 %v831, %v832
    %v839 = vmul.f32 %v833, %v830
    %v840 = vsub.f32 %v838, %v839
    %v841 = vadd.f32 %v757, %v840
    %v842 = vsub.f32 %v535, %v815
    %vm843 = vcmp.ge.f32.partialorder %v842, 0.0
    %vm844 = vmxor %vm818, %vm843
    %vm845 = vmand %vm818, %vm843
    %vm846 = vmxor %vm843, 1
    %vm847 = vmand %vm818, %vm846
    %v848 = vsub.f32 %v817, %v842
    %v849 = vsel %vm844, %v848, 1.0
    %v850 = vrcp.pop %v849
    %v851 = vmul.f32 %v817, %v850
    %v852 = vsub.f32 %v816, %v814
    %v853 = vmul.f32 %v851, %v852
    %v854 = vadd.f32 %v814, %v853
    %v855 = vsel %vm844, %v854, %v816
    %v856 = vsel %vm845, %v815, %v535
    %v857 = vsel %vm847, %v854, %v816
    %v858 = vsel %vm843, %v815, %v535
    %v859 = vmul.f32 %v833, %v855
    %v860 = vmul.f32 %v856, %v832
    %v861 = vsub.f32 %v859, %v860
    %v862 = vadd.f32 %v778, %v861
    %v863 = vmul.f32 %v856, %v857
    %v864 = vmul.f32 %v858, %v855
    %v865 = vsub.f32 %v863, %v864
    %v866 = vadd.f32 %v782, %v865
    %v867 = vsub.f32 %v798, %v537
    %vm868 = vcmp.ge.f32.partialorder %v867, 0.0
    %vm869 = vmxor %vm801, %vm868
    %vm870 = vmand %vm801, %vm868
    %vm871 = vmxor %vm868, 1
    %vm872 = vmand %vm801, %vm871
    %v873 = vsub.f32 %v800, %v867
    %v874 = vsel %vm869, %v873, 1.0
    %v875 = vrcp.pop %v874
    %v876 = vmul.f32 %v800, %v875
    %v877 = vsub.f32 %v799, %v797
    %v878 = vmul.f32 %v876, %v877
    %v879 = vadd.f32 %v797, %v878
    %v880 = vsel %vm869, %v879, %v799
    %v881 = vsel %vm870, %v798, %v537
    %v882 = vsel %vm872, %v879, %v799
    %v883 = vsel %vm868, %v798, %v537
    %v884 = vsub.f32 %v535, %v880
    %vm885 = vcmp.ge.f32.partialorder %v884, 0.0
    %vm886 = vmxor %vm843, %vm885
    %vm887 = vmand %vm843, %vm885
    %vm888 = vmxor %vm885, 1
    %vm889 = vmand %vm843, %vm888
    %v890 = vsub.f32 %v842, %v884
    %v891 = vsel %vm886, %v890, 1.0
    %v892 = vrcp.pop %v891
    %v893 = vmul.f32 %v842, %v892
    %v894 = vsub.f32 %v881, %v816
    %v895 = vmul.f32 %v893, %v894
    %v896 = vadd.f32 %v816, %v895
    %v897 = vsel %vm886, %v896, %v881
    %v898 = vsel %vm887, %v880, %v535
    %v899 = vsel %vm889, %v896, %v881
    %v900 = vsel %vm885, %v880, %v535
    %v901 = vmul.f32 %v858, %v897
    %v902 = vmul.f32 %v898, %v857
    %v903 = vsub.f32 %v901, %v902
    %v904 = vadd.f32 %v837, %v903
    %v905 = vmul.f32 %v898, %v899
    %v906 = vmul.f32 %v900, %v897
    %v907 = vsub.f32 %v905, %v906
    %v908 = vadd.f32 %v841, %v907
    %v909 = vsub.f32 %v535, %v882
    %vm910 = vcmp.ge.f32.partialorder %v909, 0.0
    %vm911 = vmxor %vm885, %vm910
    %vm912 = vmand %vm885, %vm910
    %vm913 = vmxor %vm910, 1
    %vm914 = vmand %vm885, %vm913
    %v915 = vsub.f32 %v884, %v909
    %v916 = vsel %vm911, %v915, 1.0
    %v917 = vrcp.pop %v916
    %v918 = vmul.f32 %v884, %v917
    %v919 = vsub.f32 %v883, %v881
    %v920 = vmul.f32 %v918, %v919
    %v921 = vadd.f32 %v881, %v920
    %v922 = vsel %vm911, %v921, %v883
    %v923 = vsel %vm912, %v882, %v535
    %v924 = vsel %vm914, %v921, %v883
    %v925 = vsel %vm910, %v882, %v535
    %v926 = vmul.f32 %v900, %v922
    %v927 = vmul.f32 %v923, %v899
    %v928 = vsub.f32 %v926, %v927
    %v929 = vadd.f32 %v862, %v928
    %v930 = vmul.f32 %v923, %v924
    %v931 = vmul.f32 %v925, %v922
    %v932 = vsub.f32 %v930, %v931
    %v933 = vadd.f32 %v866, %v932
    %v934 = vsub.f32 %v536, %v534
    %vm935 = vcmp.ge.f32.partialorder %v934, 0.0
    %vm936 = vmxor %vm619, %vm935
    %vm937 = vmand %vm619, %vm935
    %vm938 = vmxor %vm935, 1
    %vm939 = vmand %vm619, %vm938
    %v940 = vsub.f32 %v618, %v934
    %v941 = vsel %vm936, %v940, 1.0
    %v942 = vrcp.pop %v941
    %v943 = vmul.f32 %v618, %v942
    %v944 = vsub.f32 %v533, %v531
    %v945 = vmul.f32 %v943, %v944
    %v946 = vadd.f32 %v531, %v945
    %v947 = vsel %vm936, %v946, %v533
    %v948 = vsel %vm937, %v534, %v536
    %v949 = vsel %vm939, %v946, %v533
    %v950 = vsel %vm935, %v534, %v536
    %v951 = vsub.f32 %v947, %v538
    %vm952 = vcmp.ge.f32.partialorder %v951, 0.0
    %vm953 = vmxor %vm784, %vm952
    %vm954 = vmand %vm784, %vm952
    %vm955 = vmxor %vm952, 1
    %vm956 = vmand %vm784, %vm955
    %v957 = vsub.f32 %v783, %v951
    %v958 = vsel %vm953, %v957, 1.0
    %v959 = vrcp.pop %v958
    %v960 = vmul.f32 %v783, %v959
    %v961 = vsub.f32 %v948, %v634
    %v962 = vmul.f32 %v960, %v961
    %v963 = vadd.f32 %v634, %v962
    %v964 = vsel %vm953, %v963, %v948
    %v965 = vsel %vm954, %v947, %v538
    %v966 = vsel %vm956, %v963, %v948
    %v967 = vsel %vm952, %v947, %v538
    %v968 = vsub.f32 %v964, %v537
    %vm969 = vcmp.ge.f32.partialorder %v968, 0.0
    %vm970 = vmxor %vm868, %vm969
    %vm971 = vmand %vm868, %vm969
    %vm972 = vmxor %vm969, 1
    %vm973 = vmand %vm868, %vm972
    %v974 = vsub.f32 %v867, %v968
    %v975 = vsel %vm970, %v974, 1.0
    %v976 = vrcp.pop %v975
    %v977 = vmul.f32 %v867, %v976
    %v978 = vsub.f32 %v965, %v799
    %v979 = vmul.f32 %v977, %v978
    %v980 = vadd.f32 %v799, %v979
    %v981 = vsel %vm970, %v980, %v965
    %v982 = vsel %vm971, %v964, %v537
    %v983 = vsel %vm973, %v980, %v965
    %v984 = vsel %vm969, %v964, %v537
    %v985 = vsub.f32 %v535, %v981
    %vm986 = vcmp.ge.f32.partialorder %v985, 0.0
    %vm987 = vmxor %vm910, %vm986
    %vm988 = vmand %vm910, %vm986
    %vm989 = vmxor %vm986, 1
    %vm990 = vmand %vm910, %vm989
    %v991 = vsub.f32 %v909, %v985
    %v992 = vsel %vm987, %v991, 1.0
    %v993 = vrcp.pop %v992
    %v994 = vmul.f32 %v909, %v993
    %v995 = vsub.f32 %v982, %v883
    %v996 = vmul.f32 %v994, %v995
    %v997 = vadd.f32 %v883, %v996
    %v998 = vsel %vm987, %v997, %v982
    %v999 = vsel %vm988, %v981, %v535
    %v1000 = vsel %vm990, %v997, %v982
    %v1001 = vsel %vm986, %v981, %v535
    %v1002 = vmul.f32 %v925, %v998
    %v1003 = vmul.f32 %v999, %v924
    %v1004 = vsub.f32 %v1002, %v1003
    %v1005 = vadd.f32 %v904, %v1004
    %v1006 = vmul.f32 %v999, %v1000
    %v1007 = vmul.f32 %v1001, %v998
    %v1008 = vsub.f32 %v1006, %v1007
    %v1009 = vadd.f32 %v908, %v1008
    %v1010 = vsub.f32 %v535, %v983
    %vm1011 = vcmp.ge.f32.partialorder %v1010, 0.0
    %vm1012 = vmxor %vm986, %vm1011
    %vm1013 = vmand %vm986, %vm1011
    %vm1014 = vmxor %vm1011, 1
    %vm1015 = vmand %vm986, %vm1014
    %v1016 = vsub.f32 %v985, %v1010
    %v1017 = vsel %vm1012, %v1016, 1.0
    %v1018 = vrcp.pop %v1017
    %v1019 = vmul.f32 %v985, %v1018
    %v1020 = vsub.f32 %v984, %v982
    %v1021 = vmul.f32 %v1019, %v1020
    %v1022 = vadd.f32 %v982, %v1021
    %v1023 = vsel %vm1012, %v1022, %v984
    %v1024 = vsel %vm1013, %v983, %v535
    %v1025 = vsel %vm1015, %v1022, %v984
    %v1026 = vsel %vm1011, %v983, %v535
    %v1027 = vmul.f32 %v1001, %v1023
    %v1028 = vmul.f32 %v1024, %v1000
    %v1029 = vsub.f32 %v1027, %v1028
    %v1030 = vadd.f32 %v929, %v1029
    %v1031 = vmul.f32 %v1024, %v1025
    %v1032 = vmul.f32 %v1026, %v1023
    %v1033 = vsub.f32 %v1031, %v1032
    %v1034 = vadd.f32 %v933, %v1033
    %v1035 = vsub.f32 %v966, %v537
    %vm1036 = vcmp.ge.f32.partialorder %v1035, 0.0
    %vm1037 = vmxor %vm969, %vm1036
    %vm1038 = vmand %vm969, %vm1036
    %vm1039 = vmxor %vm1036, 1
    %vm1040 = vmand %vm969, %vm1039
    %v1041 = vsub.f32 %v968, %v1035
    %v1042 = vsel %vm1037, %v1041, 1.0
    %v1043 = vrcp.pop %v1042
    %v1044 = vmul.f32 %v968, %v1043
    %v1045 = vsub.f32 %v967, %v965
    %v1046 = vmul.f32 %v1044, %v1045
    %v1047 = vadd.f32 %v965, %v1046
    %v1048 = vsel %vm1037, %v1047, %v967
    %v1049 = vsel %vm1038, %v966, %v537
    %v1050 = vsel %vm1040, %v1047, %v967
    %v1051 = vsel %vm1036, %v966, %v537
    %v1052 = vsub.f32 %v535, %v1048
    %vm1053 = vcmp.ge.f32.partialorder %v1052, 0.0
    %vm1054 = vmxor %vm1011, %vm1053
    %vm1055 = vmand %vm1011, %vm1053
    %vm1056 = vmxor %vm1053, 1
    %vm1057 = vmand %vm1011, %vm1056
    %v1058 = vsub.f32 %v1010, %v1052
    %v1059 = vsel %vm1054, %v1058, 1.0
    %v1060 = vrcp.pop %v1059
    %v1061 = vmul.f32 %v1010, %v1060
    %v1062 = vsub.f32 %v1049, %v984
    %v1063 = vmul.f32 %v1061, %v1062
    %v1064 = vadd.f32 %v984, %v1063
    %v1065 = vsel %vm1054, %v1064, %v1049
    %v1066 = vsel %vm1055, %v1048, %v535
    %v1067 = vsel %vm1057, %v1064, %v1049
    %v1068 = vsel %vm1053, %v1048, %v535
    %v1069 = vmul.f32 %v1026, %v1065
    %v1070 = vmul.f32 %v1066, %v1025
    %v1071 = vsub.f32 %v1069, %v1070
    %v1072 = vadd.f32 %v1005, %v1071
    %v1073 = vmul.f32 %v1066, %v1067
    %v1074 = vmul.f32 %v1068, %v1065
    %v1075 = vsub.f32 %v1073, %v1074
    %v1076 = vadd.f32 %v1009, %v1075
    %v1077 = vsub.f32 %v535, %v1050
    %vm1078 = vcmp.ge.f32.partialorder %v1077, 0.0
    %vm1079 = vmxor %vm1053, %vm1078
    %vm1080 = vmand %vm1053, %vm1078
    %vm1081 = vmxor %vm1078, 1
    %vm1082 = vmand %vm1053, %vm1081
    %v1083 = vsub.f32 %v1052, %v1077
    %v1084 = vsel %vm1079, %v1083, 1.0
    %v1085 = vrcp.pop %v1084
    %v1086 = vmul.f32 %v1052, %v1085
    %v1087 = vsub.f32 %v1051, %v1049
    %v1088 = vmul.f32 %v1086, %v1087
    %v1089 = vadd.f32 %v1049, %v1088
    %v1090 = vsel %vm1079, %v1089, %v1051
    %v1091 = vsel %vm1080, %v1050, %v535
    %v1092 = vsel %vm1082, %v1089, %v1051
    %v1093 = vsel %vm1078, %v1050, %v535
    %v1094 = vmul.f32 %v1068, %v1090
    %v1095 = vmul.f32 %v1091, %v1067
    %v1096 = vsub.f32 %v1094, %v1095
    %v1097 = vadd.f32 %v1030, %v1096
    %v1098 = vmul.f32 %v1091, %v1092
    %v1099 = vmul.f32 %v1093, %v1090
    %v1100 = vsub.f32 %v1098, %v1099
    %v1101 = vadd.f32 %v1034, %v1100
    %v1102 = vsub.f32 %v949, %v538
    %vm1103 = vcmp.ge.f32.partialorder %v1102, 0.0
    %vm1104 = vmxor %vm952, %vm1103
    %vm1105 = vmand %vm952, %vm1103
    %vm1106 = vmxor %vm1103, 1
    %vm1107 = vmand %vm952, %vm1106
    %v1108 = vsub.f32 %v951, %v1102
    %v1109 = vsel %vm1104, %v1108, 1.0
    %v1110 = vrcp.pop %v1109
    %v1111 = vmul.f32 %v951, %v1110
    %v1112 = vsub.f32 %v950, %v948
    %v1113 = vmul.f32 %v1111, %v1112
    %v1114 = vadd.f32 %v948, %v1113
    %v1115 = vsel %vm1104, %v1114, %v950
    %v1116 = vsel %vm1105, %v949, %v538
    %v1117 = vsel %vm1107, %v1114, %v950
    %v1118 = vsel %vm1103, %v949, %v538
    %v1119 = vsub.f32 %v1115, %v537
    %vm1120 = vcmp.ge.f32.partialorder %v1119, 0.0
    %vm1121 = vmxor %vm1036, %vm1120
    %vm1122 = vmand %vm1036, %vm1120
    %vm1123 = vmxor %vm1120, 1
    %vm1124 = vmand %vm1036, %vm1123
    %v1125 = vsub.f32 %v1035, %v1119
    %v1126 = vsel %vm1121, %v1125, 1.0
    %v1127 = vrcp.pop %v1126
    %v1128 = vmul.f32 %v1035, %v1127
    %v1129 = vsub.f32 %v1116, %v967
    %v1130 = vmul.f32 %v1128, %v1129
    %v1131 = vadd.f32 %v967, %v1130
    %v1132 = vsel %vm1121, %v1131, %v1116
    %v1133 = vsel %vm1122, %v1115, %v537
    %v1134 = vsel %vm1124, %v1131, %v1116
    %v1135 = vsel %vm1120, %v1115, %v537
    %v1136 = vsub.f32 %v535, %v1132
    %vm1137 = vcmp.ge.f32.partialorder %v1136, 0.0
    %vm1138 = vmxor %vm1078, %vm1137
    %vm1139 = vmand %vm1078, %vm1137
    %vm1140 = vmxor %vm1137, 1
    %vm1141 = vmand %vm1078, %vm1140
    %v1142 = vsub.f32 %v1077, %v1136
    %v1143 = vsel %vm1138, %v1142, 1.0
    %v1144 = vrcp.pop %v1143
    %v1145 = vmul.f32 %v1077, %v1144
    %v1146 = vsub.f32 %v1133, %v1051
    %v1147 = vmul.f32 %v1145, %v1146
    %v1148 = vadd.f32 %v1051, %v1147
    %v1149 = vsel %vm1138, %v1148, %v1133
    %v1150 = vsel %vm1139, %v1132, %v535
    %v1151 = vsel %vm1141, %v1148, %v1133
    %v1152 = vsel %vm1137, %v1132, %v535
    %v1153 = vmul.f32 %v1093, %v1149
    %v1154 = vmul.f32 %v1150, %v1092
    %v1155 = vsub.f32 %v1153, %v1154
    %v1156 = vadd.f32 %v1072, %v1155
    %v1157 = vmul.f32 %v1150, %v1151
    %v1158 = vmul.f32 %v1152, %v1149
    %v1159 = vsub.f32 %v1157, %v1158
    %v1160 = vadd.f32 %v1076, %v1159
    %v1161 = vsub.f32 %v535, %v1134
    %vm1162 = vcmp.ge.f32.partialorder %v1161, 0.0
    %vm1163 = vmxor %vm1137, %vm1162
    %vm1164 = vmand %vm1137, %vm1162
    %vm1165 = vmxor %vm1162, 1
    %vm1166 = vmand %vm1137, %vm1165
    %v1167 = vsub.f32 %v1136, %v1161
    %v1168 = vsel %vm1163, %v1167, 1.0
    %v1169 = vrcp.pop %v1168
    %v1170 = vmul.f32 %v1136, %v1169
    %v1171 = vsub.f32 %v1135, %v1133
    %v1172 = vmul.f32 %v1170, %v1171
    %v1173 = vadd.f32 %v1133, %v1172
    %v1174 = vsel %vm1163, %v1173, %v1135
    %v1175 = vsel %vm1164, %v1134, %v535
    %v1176 = vsel %vm1166, %v1173, %v1135
    %v1177 = vsel %vm1162, %v1134, %v535
    %v1178 = vmul.f32 %v1152, %v1174
    %v1179 = vmul.f32 %v1175, %v1151
    %v1180 = vsub.f32 %v1178, %v1179
    %v1181 = vadd.f32 %v1097, %v1180
    %v1182 = vmul.f32 %v1175, %v1176
    %v1183 = vmul.f32 %v1177, %v1174
    %v1184 = vsub.f32 %v1182, %v1183
    %v1185 = vadd.f32 %v1101, %v1184
    %v1186 = vsub.f32 %v1117, %v537
    %vm1187 = vcmp.ge.f32.partialorder %v1186, 0.0
    %vm1188 = vmxor %vm1120, %vm1187
    %vm1189 = vmand %vm1120, %vm1187
    %vm1190 = vmxor %vm1187, 1
    %vm1191 = vmand %vm1120, %vm1190
    %v1192 = vsub.f32 %v1119, %v1186
    %v1193 = vsel %vm1188, %v1192, 1.0
    %v1194 = vrcp.pop %v1193
    %v1195 = vmul.f32 %v1119, %v1194
    %v1196 = vsub.f32 %v1118, %v1116
    %v1197 = vmul.f32 %v1195, %v1196
    %v1198 = vadd.f32 %v1116, %v1197
    %v1199 = vsel %vm1188, %v1198, %v1118
    %v1200 = vsel %vm1189, %v1117, %v537
    %v1201 = vsel %vm1191, %v1198, %v1118
    %v1202 = vsel %vm1187, %v1117, %v537
    %v1203 = vsub.f32 %v535, %v1199
    %vm1204 = vcmp.ge.f32.partialorder %v1203, 0.0
    %vm1205 = vmxor %vm1162, %vm1204
    %vm1206 = vmand %vm1162, %vm1204
    %vm1207 = vmxor %vm1204, 1
    %vm1208 = vmand %vm1162, %vm1207
    %v1209 = vsub.f32 %v1161, %v1203
    %v1210 = vsel %vm1205, %v1209, 1.0
    %v1211 = vrcp.pop %v1210
    %v1212 = vmul.f32 %v1161, %v1211
    %v1213 = vsub.f32 %v1200, %v1135
    %v1214 = vmul.f32 %v1212, %v1213
    %v1215 = vadd.f32 %v1135, %v1214
    %v1216 = vsel %vm1205, %v1215, %v1200
    %v1217 = vsel %vm1206, %v1199, %v535
    %v1218 = vsel %vm1208, %v1215, %v1200
    %v1219 = vsel %vm1204, %v1199, %v535
    %v1220 = vmul.f32 %v1177, %v1216
    %v1221 = vmul.f32 %v1217, %v1176
    %v1222 = vsub.f32 %v1220, %v1221
    %v1223 = vadd.f32 %v1156, %v1222
    %v1224 = vmul.f32 %v1217, %v1218
    %v1225 = vmul.f32 %v1219, %v1216
    %v1226 = vsub.f32 %v1224, %v1225
    %v1227 = vadd.f32 %v1160, %v1226
    %v1228 = vsub.f32 %v535, %v1201
    %vm1229 = vcmp.ge.f32.partialorder %v1228, 0.0
    %vm1230 = vmxor %vm1204, %vm1229
    %vm1231 = vmand %vm1204, %vm1229
    %vm1232 = vmxor %vm1229, 1
    %vm1233 = vmand %vm1204, %vm1232
    %v1234 = vsub.f32 %v1203, %v1228
    %v1235 = vsel %vm1230, %v1234, 1.0
    %v1236 = vrcp.pop %v1235
    %v1237 = vmul.f32 %v1203, %v1236
    %v1238 = vsub.f32 %v1202, %v1200
    %v1239 = vmul.f32 %v1237, %v1238
    %v1240 = vadd.f32 %v1200, %v1239
    %v1241 = vsel %vm1230, %v1240, %v1202
    %v1242 = vsel %vm1231, %v1201, %v535
    %v1243 = vsel %vm1233, %v1240, %v1202
    %v1244 = vsel %vm1229, %v1201, %v535
    %v1245 = vmul.f32 %v1219, %v1241
    %v1246 = vmul.f32 %v1242, %v1218
    %v1247 = vsub.f32 %v1245, %v1246
    %v1248 = vadd.f32 %v1181, %v1247
    %v1249 = vmul.f32 %v1242, %v1243
    %v1250 = vmul.f32 %v1244, %v1241
    %v1251 = vsub.f32 %v1249, %v1250
    %v1252 = vadd.f32 %v1185, %v1251
    %vm1253 = vmxor %vm935, %vm541
    %vm1254 = vmand %vm935, %vm541
    %vm1255 = vmxor %vm541, 1
    %vm1256 = vmand %vm935, %vm1255
    %v1257 = vsub.f32 %v934, %v539
    %v1258 = vsel %vm1253, %v1257, 1.0
    %v1259 = vrcp.pop %v1258
    %v1260 = vmul.f32 %v934, %v1259
    %v1261 = vsub.f32 %v524, %v533
    %v1262 = vmul.f32 %v1260, %v1261
    %v1263 = vadd.f32 %v533, %v1262
    %v1264 = vsel %vm1253, %v1263, %v524
    %v1265 = vsel %vm1254, %v526, %v536
    %v1266 = vsel %vm1256, %v1263, %v524
    %v1267 = vsel %vm541, %v526, %v536
    %v1268 = vsub.f32 %v1264, %v538
    %vm1269 = vcmp.ge.f32.partialorder %v1268, 0.0
    %vm1270 = vmxor %vm1103, %vm1269
    %vm1271 = vmand %vm1103, %vm1269
    %vm1272 = vmxor %vm1269, 1
    %vm1273 = vmand %vm1103, %vm1272
    %v1274 = vsub.f32 %v1102, %v1268
    %v1275 = vsel %vm1270, %v1274, 1.0
    %v1276 = vrcp.pop %v1275
    %v1277 = vmul.f32 %v1102, %v1276
    %v1278 = vsub.f32 %v1265, %v950
    %v1279 = vmul.f32 %v1277, %v1278
    %v1280 = vadd.f32 %v950, %v1279
    %v1281 = vsel %vm1270, %v1280, %v1265
    %v1282 = vsel %vm1271, %v1264, %v538
    %v1283 = vsel %vm1273, %v1280, %v1265
    %v1284 = vsel %vm1269, %v1264, %v538
    %v1285 = vsub.f32 %v1281, %v537
    %vm1286 = vcmp.ge.f32.partialorder %v1285, 0.0
    %vm1287 = vmxor %vm1187, %vm1286
    %vm1288 = vmand %vm1187, %vm1286
    %vm1289 = vmxor %vm1286, 1
    %vm1290 = vmand %vm1187, %vm1289
    %v1291 = vsub.f32 %v1186, %v1285
    %v1292 = vsel %vm1287, %v1291, 1.0
    %v1293 = vrcp.pop %v1292
    %v1294 = vmul.f32 %v1186, %v1293
    %v1295 = vsub.f32 %v1282, %v1118
    %v1296 = vmul.f32 %v1294, %v1295
    %v1297 = vadd.f32 %v1118, %v1296
    %v1298 = vsel %vm1287, %v1297, %v1282
    %v1299 = vsel %vm1288, %v1281, %v537
    %v1300 = vsel %vm1290, %v1297, %v1282
    %v1301 = vsel %vm1286, %v1281, %v537
    %v1302 = vsub.f32 %v535, %v1298
    %vm1303 = vcmp.ge.f32.partialorder %v1302, 0.0
    %vm1304 = vmxor %vm1229, %vm1303
    %vm1305 = vmand %vm1229, %vm1303
    %vm1306 = vmxor %vm1303, 1
    %vm1307 = vmand %vm1229, %vm1306
    %v1308 = vsub.f32 %v1228, %v1302
    %v1309 = vsel %vm1304, %v1308, 1.0
    %v1310 = vrcp.pop %v1309
    %v1311 = vmul.f32 %v1228, %v1310
    %v1312 = vsub.f32 %v1299, %v1202
    %v1313 = vmul.f32 %v1311, %v1312
    %v1314 = vadd.f32 %v1202, %v1313
    %v1315 = vsel %vm1304, %v1314, %v1299
    %v1316 = vsel %vm1305, %v1298, %v535
    %v1317 = vsel %vm1307, %v1314, %v1299
    %v1318 = vsel %vm1303, %v1298, %v535
    %v1319 = vmul.f32 %v1244, %v1315
    %v1320 = vmul.f32 %v1316, %v1243
    %v1321 = vsub.f32 %v1319, %v1320
    %v1322 = vadd.f32 %v1223, %v1321
    %v1323 = vmul.f32 %v1316, %v1317
    %v1324 = vmul.f32 %v1318, %v1315
    %v1325 = vsub.f32 %v1323, %v1324
    %v1326 = vadd.f32 %v1227, %v1325
    %v1327 = vsub.f32 %v535, %v1300
    %vm1328 = vcmp.ge.f32.partialorder %v1327, 0.0
    %vm1329 = vmxor %vm1303, %vm1328
    %vm1330 = vmand %vm1303, %vm1328
    %vm1331 = vmxor %vm1328, 1
    %vm1332 = vmand %vm1303, %vm1331
    %v1333 = vsub.f32 %v1302, %v1327
    %v1334 = vsel %vm1329, %v1333, 1.0
    %v1335 = vrcp.pop %v1334
    %v1336 = vmul.f32 %v1302, %v1335
    %v1337 = vsub.f32 %v1301, %v1299
    %v1338 = vmul.f32 %v1336, %v1337
    %v1339 = vadd.f32 %v1299, %v1338
    %v1340 = vsel %vm1329, %v1339, %v1301
    %v1341 = vsel %vm1330, %v1300, %v535
    %v1342 = vsel %vm1332, %v1339, %v1301
    %v1343 = vsel %vm1328, %v1300, %v535
    %v1344 = vmul.f32 %v1318, %v1340
    %v1345 = vmul.f32 %v1341, %v1317
    %v1346 = vsub.f32 %v1344, %v1345
    %v1347 = vadd.f32 %v1248, %v1346
    %v1348 = vmul.f32 %v1341, %v1342
    %v1349 = vmul.f32 %v1343, %v1340
    %v1350 = vsub.f32 %v1348, %v1349
    %v1351 = vadd.f32 %v1252, %v1350
    %v1352 = vsub.f32 %v1283, %v537
    %vm1353 = vcmp.ge.f32.partialorder %v1352, 0.0
    %vm1354 = vmxor %vm1286, %vm1353
    %vm1355 = vmand %vm1286, %vm1353
    %vm1356 = vmxor %vm1353, 1
    %vm1357 = vmand %vm1286, %vm1356
    %v1358 = vsub.f32 %v1285, %v1352
    %v1359 = vsel %vm1354, %v1358, 1.0
    %v1360 = vrcp.pop %v1359
    %v1361 = vmul.f32 %v1285, %v1360
    %v1362 = vsub.f32 %v1284, %v1282
    %v1363 = vmul.f32 %v1361, %v1362
    %v1364 = vadd.f32 %v1282, %v1363
    %v1365 = vsel %vm1354, %v1364, %v1284
    %v1366 = vsel %vm1355, %v1283, %v537
    %v1367 = vsel %vm1357, %v1364, %v1284
    %v1368 = vsel %vm1353, %v1283, %v537
    %v1369 = vsub.f32 %v535, %v1365
    %vm1370 = vcmp.ge.f32.partialorder %v1369, 0.0
    %vm1371 = vmxor %vm1328, %vm1370
    %vm1372 = vmand %vm1328, %vm1370
    %vm1373 = vmxor %vm1370, 1
    %vm1374 = vmand %vm1328, %vm1373
    %v1375 = vsub.f32 %v1327, %v1369
    %v1376 = vsel %vm1371, %v1375, 1.0
    %v1377 = vrcp.pop %v1376
    %v1378 = vmul.f32 %v1327, %v1377
    %v1379 = vsub.f32 %v1366, %v1301
    %v1380 = vmul.f32 %v1378, %v1379
    %v1381 = vadd.f32 %v1301, %v1380
    %v1382 = vsel %vm1371, %v1381, %v1366
    %v1383 = vsel %vm1372, %v1365, %v535
    %v1384 = vsel %vm1374, %v1381, %v1366
    %v1385 = vsel %vm1370, %v1365, %v535
    %v1386 = vmul.f32 %v1343, %v1382
    %v1387 = vmul.f32 %v1383, %v1342
    %v1388 = vsub.f32 %v1386, %v1387
    %v1389 = vadd.f32 %v1322, %v1388
    %v1390 = vmul.f32 %v1383, %v1384
    %v1391 = vmul.f32 %v1385, %v1382
    %v1392 = vsub.f32 %v1390, %v1391
    %v1393 = vadd.f32 %v1326, %v1392
    %v1394 = vsub.f32 %v535, %v1367
    %vm1395 = vcmp.ge.f32.partialorder %v1394, 0.0
    %vm1396 = vmxor %vm1370, %vm1395
    %vm1397 = vmand %vm1370, %vm1395
    %vm1398 = vmxor %vm1395, 1
    %vm1399 = vmand %vm1370, %vm1398
    %v1400 = vsub.f32 %v1369, %v1394
    %v1401 = vsel %vm1396, %v1400, 1.0
    %v1402 = vrcp.pop %v1401
    %v1403 = vmul.f32 %v1369, %v1402
    %v1404 = vsub.f32 %v1368, %v1366
    %v1405 = vmul.f32 %v1403, %v1404
    %v1406 = vadd.f32 %v1366, %v1405
    %v1407 = vsel %vm1396, %v1406, %v1368
    %v1408 = vsel %vm1397, %v1367, %v535
    %v1409 = vsel %vm1399, %v1406, %v1368
    %v1410 = vsel %vm1395, %v1367, %v535
    %v1411 = vmul.f32 %v1385, %v1407
    %v1412 = vmul.f32 %v1408, %v1384
    %v1413 = vsub.f32 %v1411, %v1412
    %v1414 = vadd.f32 %v1347, %v1413
    %v1415 = vmul.f32 %v1408, %v1409
    %v1416 = vmul.f32 %v1410, %v1407
    %v1417 = vsub.f32 %v1415, %v1416
    %v1418 = vadd.f32 %v1351, %v1417
    %v1419 = vsub.f32 %v1266, %v538
    %vm1420 = vcmp.ge.f32.partialorder %v1419, 0.0
    %vm1421 = vmxor %vm1269, %vm1420
    %vm1422 = vmand %vm1269, %vm1420
    %vm1423 = vmxor %vm1420, 1
    %vm1424 = vmand %vm1269, %vm1423
    %v1425 = vsub.f32 %v1268, %v1419
    %v1426 = vsel %vm1421, %v1425, 1.0
    %v1427 = vrcp.pop %v1426
    %v1428 = vmul.f32 %v1268, %v1427
    %v1429 = vsub.f32 %v1267, %v1265
    %v1430 = vmul.f32 %v1428, %v1429
    %v1431 = vadd.f32 %v1265, %v1430
    %v1432 = vsel %vm1421, %v1431, %v1267
    %v1433 = vsel %vm1422, %v1266, %v538
    %v1434 = vsel %vm1424, %v1431, %v1267
    %v1435 = vsel %vm1420, %v1266, %v538
    %v1436 = vsub.f32 %v1432, %v537
    %vm1437 = vcmp.ge.f32.partialorder %v1436, 0.0
    %vm1438 = vmxor %vm1353, %vm1437
    %vm1439 = vmand %vm1353, %vm1437
    %vm1440 = vmxor %vm1437, 1
    %vm1441 = vmand %vm1353, %vm1440
    %v1442 = vsub.f32 %v1352, %v1436
    %v1443 = vsel %vm1438, %v1442, 1.0
    %v1444 = vrcp.pop %v1443
    %v1445 = vmul.f32 %v1352, %v1444
    %v1446 = vsub.f32 %v1433, %v1284
    %v1447 = vmul.f32 %v1445, %v1446
    %v1448 = vadd.f32 %v1284, %v1447
    %v1449 = vsel %vm1438, %v1448, %v1433
    %v1450 = vsel %vm1439, %v1432, %v537
    %v1451 = vsel %vm1441, %v1448, %v1433
    %v1452 = vsel %vm1437, %v1432, %v537
    %v1453 = vsub.f32 %v535, %v1449
    %vm1454 = vcmp.ge.f32.partialorder %v1453, 0.0
    %vm1455 = vmxor %vm1395, %vm1454
    %vm1456 = vmand %vm1395, %vm1454
    %vm1457 = vmxor %vm1454, 1
    %vm1458 = vmand %vm1395, %vm1457
    %v1459 = vsub.f32 %v1394, %v1453
    %v1460 = vsel %vm1455, %v1459, 1.0
    %v1461 = vrcp.pop %v1460
    %v1462 = vmul.f32 %v1394, %v1461
    %v1463 = vsub.f32 %v1450, %v1368
    %v1464 = vmul.f32 %v1462, %v1463
    %v1465 = vadd.f32 %v1368, %v1464
    %v1466 = vsel %vm1455, %v1465, %v1450
    %v1467 = vsel %vm1456, %v1449, %v535
    %v1468 = vsel %vm1458, %v1465, %v1450
    %v1469 = vsel %vm1454, %v1449, %v535
    %v1470 = vmul.f32 %v1410, %v1466
    %v1471 = vmul.f32 %v1467, %v1409
    %v1472 = vsub.f32 %v1470, %v1471
    %v1473 = vadd.f32 %v1389, %v1472
    %v1474 = vmul.f32 %v1467, %v1468
    %v1475 = vmul.f32 %v1469, %v1466
    %v1476 = vsub.f32 %v1474, %v1475
    %v1477 = vadd.f32 %v1393, %v1476
    %v1478 = vsub.f32 %v535, %v1451
    %vm1479 = vcmp.ge.f32.partialorder %v1478, 0.0
    %vm1480 = vmxor %vm1454, %vm1479
    %vm1481 = vmand %vm1454, %vm1479
    %vm1482 = vmxor %vm1479, 1
    %vm1483 = vmand %vm1454, %vm1482
    %v1484 = vsub.f32 %v1453, %v1478
    %v1485 = vsel %vm1480, %v1484, 1.0
    %v1486 = vrcp.pop %v1485
    %v1487 = vmul.f32 %v1453, %v1486
    %v1488 = vsub.f32 %v1452, %v1450
    %v1489 = vmul.f32 %v1487, %v1488
    %v1490 = vadd.f32 %v1450, %v1489
    %v1491 = vsel %vm1480, %v1490, %v1452
    %v1492 = vsel %vm1481, %v1451, %v535
    %v1493 = vsel %vm1483, %v1490, %v1452
    %v1494 = vsel %vm1479, %v1451, %v535
    %v1495 = vmul.f32 %v1469, %v1491
    %v1496 = vmul.f32 %v1492, %v1468
    %v1497 = vsub.f32 %v1495, %v1496
    %v1498 = vadd.f32 %v1414, %v1497
    %v1499 = vmul.f32 %v1492, %v1493
    %v1500 = vmul.f32 %v1494, %v1491
    %v1501 = vsub.f32 %v1499, %v1500
    %v1502 = vadd.f32 %v1418, %v1501
    %v1503 = vsub.f32 %v1434, %v537
    %vm1504 = vcmp.ge.f32.partialorder %v1503, 0.0
    %vm1505 = vmxor %vm1437, %vm1504
    %vm1506 = vmand %vm1437, %vm1504
    %vm1507 = vmxor %vm1504, 1
    %vm1508 = vmand %vm1437, %vm1507
    %v1509 = vsub.f32 %v1436, %v1503
    %v1510 = vsel %vm1505, %v1509, 1.0
    %v1511 = vrcp.pop %v1510
    %v1512 = vmul.f32 %v1436, %v1511
    %v1513 = vsub.f32 %v1435, %v1433
    %v1514 = vmul.f32 %v1512, %v1513
    %v1515 = vadd.f32 %v1433, %v1514
    %v1516 = vsel %vm1505, %v1515, %v1435
    %v1517 = vsel %vm1506, %v1434, %v537
    %v1518 = vsel %vm1508, %v1515, %v1435
    %v1519 = vsel %vm1504, %v1434, %v537
    %v1520 = vsub.f32 %v535, %v1516
    %vm1521 = vcmp.ge.f32.partialorder %v1520, 0.0
    %vm1522 = vmxor %vm1479, %vm1521
    %vm1523 = vmand %vm1479, %vm1521
    %vm1524 = vmxor %vm1521, 1
    %vm1525 = vmand %vm1479, %vm1524
    %v1526 = vsub.f32 %v1478, %v1520
    %v1527 = vsel %vm1522, %v1526, 1.0
    %v1528 = vrcp.pop %v1527
    %v1529 = vmul.f32 %v1478, %v1528
    %v1530 = vsub.f32 %v1517, %v1452
    %v1531 = vmul.f32 %v1529, %v1530
    %v1532 = vadd.f32 %v1452, %v1531
    %v1533 = vsel %vm1522, %v1532, %v1517
    %v1534 = vsel %vm1523, %v1516, %v535
    %v1535 = vsel %vm1525, %v1532, %v1517
    %v1536 = vsel %vm1521, %v1516, %v535
    %v1537 = vmul.f32 %v1494, %v1533
    %v1538 = vmul.f32 %v1534, %v1493
    %v1539 = vsub.f32 %v1537, %v1538
    %v1540 = vadd.f32 %v1473, %v1539
    %v1541 = vmul.f32 %v1534, %v1535
    %v1542 = vmul.f32 %v1536, %v1533
    %v1543 = vsub.f32 %v1541, %v1542
    %v1544 = vadd.f32 %v1477, %v1543
    %v1545 = vsub.f32 %v535, %v1518
    %vm1546 = vcmp.ge.f32.partialorder %v1545, 0.0
    %vm1547 = vmxor %vm1521, %vm1546
    %vm1548 = vmand %vm1521, %vm1546
    %vm1549 = vmxor %vm1546, 1
    %vm1550 = vmand %vm1521, %vm1549
    %v1551 = vsub.f32 %v1520, %v1545
    %v1552 = vsel %vm1547, %v1551, 1.0
    %v1553 = vrcp.pop %v1552
    %v1554 = vmul.f32 %v1520, %v1553
    %v1555 = vsub.f32 %v1519, %v1517
    %v1556 = vmul.f32 %v1554, %v1555
    %v1557 = vadd.f32 %v1517, %v1556
    %v1558 = vsel %vm1547, %v1557, %v1519
    %v1559 = vsel %vm1548, %v1518, %v535
    %v1560 = vsel %vm1550, %v1557, %v1519
    %v1561 = vsel %vm1546, %v1518, %v535
    %v1562 = vmul.f32 %v1536, %v1558
    %v1563 = vmul.f32 %v1559, %v1535
    %v1564 = vsub.f32 %v1562, %v1563
    %v1565 = vadd.f32 %v1498, %v1564
    %v1566 = vmul.f32 %v1559, %v1560
    %v1567 = vmul.f32 %v1561, %v1558
    %v1568 = vsub.f32 %v1566, %v1567
    %v1569 = vadd.f32 %v1502, %v1568
    %vm1570 = vmxor %vm1420, %vm560
    %vm1571 = vmand %vm1420, %vm560
    %vm1572 = vmxor %vm560, 1
    %vm1573 = vmand %vm1420, %vm1572
    %v1574 = vsub.f32 %v1419, %v558
    %v1575 = vsel %vm1570, %v1574, 1.0
    %v1576 = vrcp.pop %v1575
    %v1577 = vmul.f32 %v1419, %v1576
    %v1578 = vsub.f32 %v555, %v1267
    %v1579 = vmul.f32 %v1577, %v1578
    %v1580 = vadd.f32 %v1267, %v1579
    %v1581 = vsel %vm1570, %v1580, %v555
    %v1582 = vsel %vm1571, %v554, %v538
    %v1583 = vsel %vm1573, %v1580, %v555
    %v1584 = vsel %vm560, %v554, %v538
    %v1585 = vsub.f32 %v1581, %v537
    %vm1586 = vcmp.ge.f32.partialorder %v1585, 0.0
    %vm1587 = vmxor %vm1504, %vm1586
    %vm1588 = vmand %vm1504, %vm1586
    %vm1589 = vmxor %vm1586, 1
    %vm1590 = vmand %vm1504, %vm1589
    %v1591 = vsub.f32 %v1503, %v1585
    %v1592 = vsel %vm1587, %v1591, 1.0
    %v1593 = vrcp.pop %v1592
    %v1594 = vmul.f32 %v1503, %v1593
    %v1595 = vsub.f32 %v1582, %v1435
    %v1596 = vmul.f32 %v1594, %v1595
    %v1597 = vadd.f32 %v1435, %v1596
    %v1598 = vsel %vm1587, %v1597, %v1582
    %v1599 = vsel %vm1588, %v1581, %v537
    %v1600 = vsel %vm1590, %v1597, %v1582
    %v1601 = vsel %vm1586, %v1581, %v537
    %v1602 = vsub.f32 %v535, %v1598
    %vm1603 = vcmp.ge.f32.partialorder %v1602, 0.0
    %vm1604 = vmxor %vm1546, %vm1603
    %vm1605 = vmand %vm1546, %vm1603
    %vm1606 = vmxor %vm1603, 1
    %vm1607 = vmand %vm1546, %vm1606
    %v1608 = vsub.f32 %v1545, %v1602
    %v1609 = vsel %vm1604, %v1608, 1.0
    %v1610 = vrcp.pop %v1609
    %v1611 = vmul.f32 %v1545, %v1610
    %v1612 = vsub.f32 %v1599, %v1519
    %v1613 = vmul.f32 %v1611, %v1612
    %v1614 = vadd.f32 %v1519, %v1613
    %v1615 = vsel %vm1604, %v1614, %v1599
    %v1616 = vsel %vm1605, %v1598, %v535
    %v1617 = vsel %vm1607, %v1614, %v1599
    %v1618 = vsel %vm1603, %v1598, %v535
    %v1619 = vmul.f32 %v1561, %v1615
    %v1620 = vmul.f32 %v1616, %v1560
    %v1621 = vsub.f32 %v1619, %v1620
    %v1622 = vadd.f32 %v1540, %v1621
    %v1623 = vmul.f32 %v1616, %v1617
    %v1624 = vmul.f32 %v1618, %v1615
    %v1625 = vsub.f32 %v1623, %v1624
    %v1626 = vadd.f32 %v1544, %v1625
    %v1627 = vsub.f32 %v535, %v1600
    %vm1628 = vcmp.ge.f32.partialorder %v1627, 0.0
    %vm1629 = vmxor %vm1603, %vm1628
    %vm1630 = vmand %vm1603, %vm1628
    %vm1631 = vmxor %vm1628, 1
    %vm1632 = vmand %vm1603, %vm1631
    %v1633 = vsub.f32 %v1602, %v1627
    %v1634 = vsel %vm1629, %v1633, 1.0
    %v1635 = vrcp.pop %v1634
    %v1636 = vmul.f32 %v1602, %v1635
    %v1637 = vsub.f32 %v1601, %v1599
    %v1638 = vmul.f32 %v1636, %v1637
    %v1639 = vadd.f32 %v1599, %v1638
    %v1640 = vsel %vm1629, %v1639, %v1601
    %v1641 = vsel %vm1630, %v1600, %v535
    %v1642 = vsel %vm1632, %v1639, %v1601
    %v1643 = vsel %vm1628, %v1600, %v535
    %v1644 = vmul.f32 %v1618, %v1640
    %v1645 = vmul.f32 %v1641, %v1617
    %v1646 = vsub.f32 %v1644, %v1645
    %v1647 = vadd.f32 %v1565, %v1646
    %v1648 = vmul.f32 %v1641, %v1642
    %v1649 = vmul.f32 %v1643, %v1640
    %v1650 = vsub.f32 %v1648, %v1649
    %v1651 = vadd.f32 %v1569, %v1650
    %v1652 = vsub.f32 %v1583, %v537
    %vm1653 = vcmp.ge.f32.partialorder %v1652, 0.0
    %vm1654 = vmxor %vm1586, %vm1653
    %vm1655 = vmand %vm1586, %vm1653
    %vm1656 = vmxor %vm1653, 1
    %vm1657 = vmand %vm1586, %vm1656
    %v1658 = vsub.f32 %v1585, %v1652
    %v1659 = vsel %vm1654, %v1658, 1.0
    %v1660 = vrcp.pop %v1659
    %v1661 = vmul.f32 %v1585, %v1660
    %v1662 = vsub.f32 %v1584, %v1582
    %v1663 = vmul.f32 %v1661, %v1662
    %v1664 = vadd.f32 %v1582, %v1663
    %v1665 = vsel %vm1654, %v1664, %v1584
    %v1666 = vsel %vm1655, %v1583, %v537
    %v1667 = vsel %vm1657, %v1664, %v1584
    %v1668 = vsel %vm1653, %v1583, %v537
    %v1669 = vsub.f32 %v535, %v1665
    %vm1670 = vcmp.ge.f32.partialorder %v1669, 0.0
    %vm1671 = vmxor %vm1628, %vm1670
    %vm1672 = vmand %vm1628, %vm1670
    %vm1673 = vmxor %vm1670, 1
    %vm1674 = vmand %vm1628, %vm1673
    %v1675 = vsub.f32 %v1627, %v1669
    %v1676 = vsel %vm1671, %v1675, 1.0
    %v1677 = vrcp.pop %v1676
    %v1678 = vmul.f32 %v1627, %v1677
    %v1679 = vsub.f32 %v1666, %v1601
    %v1680 = vmul.f32 %v1678, %v1679
    %v1681 = vadd.f32 %v1601, %v1680
    %v1682 = vsel %vm1671, %v1681, %v1666
    %v1683 = vsel %vm1672, %v1665, %v535
    %v1684 = vsel %vm1674, %v1681, %v1666
    %v1685 = vsel %vm1670, %v1665, %v535
    %v1686 = vmul.f32 %v1643, %v1682
    %v1687 = vmul.f32 %v1683, %v1642
    %v1688 = vsub.f32 %v1686, %v1687
    %v1689 = vadd.f32 %v1622, %v1688
    %v1690 = vmul.f32 %v1683, %v1684
    %v1691 = vmul.f32 %v1685, %v1682
    %v1692 = vsub.f32 %v1690, %v1691
    %v1693 = vadd.f32 %v1626, %v1692
    %v1694 = vsub.f32 %v535, %v1667
    %vm1695 = vcmp.ge.f32.partialorder %v1694, 0.0
    %vm1696 = vmxor %vm1670, %vm1695
    %vm1697 = vmand %vm1670, %vm1695
    %vm1698 = vmxor %vm1695, 1
    %vm1699 = vmand %vm1670, %vm1698
    %v1700 = vsub.f32 %v1669, %v1694
    %v1701 = vsel %vm1696, %v1700, 1.0
    %v1702 = vrcp.pop %v1701
    %v1703 = vmul.f32 %v1669, %v1702
    %v1704 = vsub.f32 %v1668, %v1666
    %v1705 = vmul.f32 %v1703, %v1704
    %v1706 = vadd.f32 %v1666, %v1705
    %v1707 = vsel %vm1696, %v1706, %v1668
    %v1708 = vsel %vm1697, %v1667, %v535
    %v1709 = vsel %vm1699, %v1706, %v1668
    %v1710 = vsel %vm1695, %v1667, %v535
    %v1711 = vmul.f32 %v1685, %v1707
    %v1712 = vmul.f32 %v1708, %v1684
    %v1713 = vsub.f32 %v1711, %v1712
    %v1714 = vadd.f32 %v1647, %v1713
    %v1715 = vmul.f32 %v1708, %v1709
    %v1716 = vmul.f32 %v1710, %v1707
    %v1717 = vsub.f32 %v1715, %v1716
    %v1718 = vadd.f32 %v1651, %v1717
    %vm1719 = vmxor %vm1653, %vm579
    %vm1720 = vmand %vm1653, %vm579
    %vm1721 = vmxor %vm579, 1
    %vm1722 = vmand %vm1653, %vm1721
    %v1723 = vsub.f32 %v1652, %v577
    %v1724 = vsel %vm1719, %v1723, 1.0
    %v1725 = vrcp.pop %v1724
    %v1726 = vmul.f32 %v1652, %v1725
    %v1727 = vsub.f32 %v574, %v1584
    %v1728 = vmul.f32 %v1726, %v1727
    %v1729 = vadd.f32 %v1584, %v1728
    %v1730 = vsel %vm1719, %v1729, %v574
    %v1731 = vsel %vm1720, %v573, %v537
    %v1732 = vsel %vm1722, %v1729, %v574
    %v1733 = vsel %vm579, %v573, %v537
    %v1734 = vsub.f32 %v535, %v1730
    %vm1735 = vcmp.ge.f32.partialorder %v1734, 0.0
    %vm1736 = vmxor %vm1695, %vm1735
    %vm1737 = vmand %vm1695, %vm1735
    %vm1738 = vmxor %vm1735, 1
    %vm1739 = vmand %vm1695, %vm1738
    %v1740 = vsub.f32 %v1694, %v1734
    %v1741 = vsel %vm1736, %v1740, 1.0
    %v1742 = vrcp.pop %v1741
    %v1743 = vmul.f32 %v1694, %v1742
    %v1744 = vsub.f32 %v1731, %v1668
    %v1745 = vmul.f32 %v1743, %v1744
    %v1746 = vadd.f32 %v1668, %v1745
    %v1747 = vsel %vm1736, %v1746, %v1731
    %v1748 = vsel %vm1737, %v1730, %v535
    %v1749 = vsel %vm1739, %v1746, %v1731
    %v1750 = vsel %vm1735, %v1730, %v535
    %v1751 = vmul.f32 %v1710, %v1747
    %v1752 = vmul.f32 %v1748, %v1709
    %v1753 = vsub.f32 %v1751, %v1752
    %v1754 = vadd.f32 %v1689, %v1753
    %v1755 = vmul.f32 %v1748, %v1749
    %v1756 = vmul.f32 %v1750, %v1747
    %v1757 = vsub.f32 %v1755, %v1756
    %v1758 = vadd.f32 %v1693, %v1757
    %v1759 = vsub.f32 %v535, %v1732
    %vm1760 = vcmp.ge.f32.partialorder %v1759, 0.0
    %vm1761 = vmxor %vm1735, %vm1760
    %vm1762 = vmand %vm1735, %vm1760
    %vm1763 = vmxor %vm1760, 1
    %vm1764 = vmand %vm1735, %vm1763
    %v1765 = vsub.f32 %v1734, %v1759
    %v1766 = vsel %vm1761, %v1765, 1.0
    %v1767 = vrcp.pop %v1766
    %v1768 = vmul.f32 %v1734, %v1767
    %v1769 = vsub.f32 %v1733, %v1731
    %v1770 = vmul.f32 %v1768, %v1769
    %v1771 = vadd.f32 %v1731, %v1770
    %v1772 = vsel %vm1761, %v1771, %v1733
    %v1773 = vsel %vm1762, %v1732, %v535
    %v1774 = vsel %vm1764, %v1771, %v1733
    %v1775 = vsel %vm1760, %v1732, %v535
    %v1776 = vmul.f32 %v1750, %v1772
    %v1777 = vmul.f32 %v1773, %v1749
    %v1778 = vsub.f32 %v1776, %v1777
    %v1779 = vadd.f32 %v1714, %v1778
    %v1780 = vmul.f32 %v1773, %v1774
    %v1781 = vmul.f32 %v1775, %v1772
    %v1782 = vsub.f32 %v1780, %v1781
    %v1783 = vadd.f32 %v1718, %v1782
    %vm1784 = vmxor %vm1760, %vm598
    %vm1785 = vmand %vm1760, %vm598
    %vm1786 = vmxor %vm598, 1
    %vm1787 = vmand %vm1760, %vm1786
    %v1788 = vsub.f32 %v1759, %v596
    %v1789 = vsel %vm1784, %v1788, 1.0
    %v1790 = vrcp.pop %v1789
    %v1791 = vmul.f32 %v1759, %v1790
    %v1792 = vsub.f32 %v593, %v1733
    %v1793 = vmul.f32 %v1791, %v1792
    %v1794 = vadd.f32 %v1733, %v1793
    %v1795 = vsel %vm1784, %v1794, %v593
    %v1796 = vsel %vm1785, %v592, %v535
    %v1797 = vsel %vm1787, %v1794, %v593
    %v1798 = vsel %vm598, %v592, %v535
    %v1799 = vmul.f32 %v1775, %v1795
    %v1800 = vmul.f32 %v1796, %v1774
    %v1801 = vsub.f32 %v1799, %v1800
    %v1802 = vadd.f32 %v1754, %v1801
    %v1803 = vmul.f32 %v1796, %v1797
    %v1804 = vmul.f32 %v1798, %v1795
    %v1805 = vsub.f32 %v1803, %v1804
    %v1806 = vadd.f32 %v1758, %v1805
    %v1807 = vmul.f32 %v1798, %v611
    %v1808 = vmul.f32 %v612, %v1797
    %v1809 = vsub.f32 %v1807, %v1808
    %v1810 = vadd.f32 %v1779, %v1809
    %v1811 = vadd.f32 %v1783, %v1802
    %v1812 = vadd.f32 %v1806, %v1810
    %v1813 = vadd.f32 %v1811, %v1812
    %v1814 = vand.u32 2147483647, %v1813
    %v1815 = vmul.f32 %v1814, 0.5
    %v1816 = vmul.f32 %v60, %v62
    %v1817 = vmul.f32 %v87, %v89
    %v1818 = vmin.f32 %v1816, %v1817
    %v1819 = vmax.f32 %v1818, 0.0
    %v1820 = vmax.f32 %v1815, 0.0
    %v1821 = vmin.f32 %v1819, %v1820
    %v1822 = vmul.f32 %v64, 0.5
    %v1823 = vadd.f32 %v58, %v1822
    %v1824 = vmul.f32 %v91, 0.5
    %v1825 = vadd.f32 %v85, %v1824
    %v1826 = vmin.f32 %v1823, %v1825
    %v1827 = vsub.f32 %v58, %v1822
    %v1828 = vsub.f32 %v85, %v1824
    %v1829 = vmax.f32 %v1827, %v1828
    %v1830 = vsub.f32 %v1826, %v1829
    %v1831 = vmax.f32 %v1830, 0.0
    %v1832 = vmul.f32 %v1821, %v1831
    %v1833 = vmul.f32 %v1816, %v64
    %v1834 = vmul.f32 %v1817, %v91
    %v1835 = vadd.f32 %v1833, %v1834
    %v1836 = vsub.f32 %v1835, %v1832
    %v1837 = vmax.f32 %v1836, 1e-06
    %v1838 = vrcp.pop %v1837
    %v1839 = vmul.f32 %v1832, %v1838
    %v1840 = vsub.f32 1.0, %v1839
    %v1841 = vld [vmem:[#allocation7] sm:$0xff]
    %v1842 = vmul.f32 %v1840, %v1841
    %1843 = vst [vmem:[#allocation8] sm:$0xff] %v1842
    // Predicated region
    $region26: #{tpu_custom_call.1} parent=1 // pred_check
      _
    $region27: #{tpu_custom_call.1} parent=1 // pred_check_branch
      %1845 = sbr.rel (0) target = $region29
    $region28: #{tpu_custom_call.1} parent=1 // pred_region
      %s1847 = ssub.s32 128, 128
      %1848 = vsyncadd [#allocation4], %s1847
      %s1850 = sshll.u32 [#allocation8], 4
      %s1851 = int_to_ptr.vmem [resolvable:$true] %s1850
      %1853 = dma.vmem_to_hbm [thread:$0]  %s1851, 128, %s3, [#allocation4]
    $region29: #{tpu_custom_call.1} parent=1 // pred_fallthru
      _
    // Predicated region
    $region30: #{tpu_custom_call.1} parent=1 // pred_check
      _
    $region31: #{tpu_custom_call.1} parent=1 // pred_check_branch
      %1855 = sbr.rel (0) target = $region33
    $region32: #{tpu_custom_call.1} parent=1 // pred_region
      %1856 = dma.done [#allocation4], 128
    $region33: #{tpu_custom_call.1} parent=1 // pred_fallthru
      _
    %1857 = vsyncpa [#allocation3], 1
    %1858 = vsyncpa [#allocation6], 1
    %1859 = vsyncpa [#allocation4], 1

</llo_original>
